<compile_context>
chip_gen: v6e
topology: v6e:2x2x1
jax: 0.10.0
libtpu: 0.0.40
codegen_flags: <defaults>
</compile_context>

<pallas_src>
import jax
import jax.numpy as jnp
import numpy as np
from jax.experimental import pallas as pl
from jax.experimental.pallas import tpu as pltpu

# model dims: classifier Linear(1536, 6) => 128 * (L // 4) = 1536 => L = 48
L = 48
L2 = L // 2          # 24 after MaxPool1d(2, 2)
L4 = L // 4          # 12 after AvgPool1d(2, 2)
C1 = 64              # conv1 out channels
C2 = 128             # conv2 out channels
K1 = 9               # conv1 kernel (padding 4)
K2 = 5               # conv2 kernel (padding 2)
NCLASS = 6
EPS = 1e-5

BT = 8               # samples per grid step (batch tile)
R = L2 * BT          # 192 active rows per tile (length-major * batch)
PAD = 2 * BT         # pad rows each side of the length axis (|tap shift| <= 2)


# ----------------------------- Pallas kernel ------------------------------- #

def fused_kernel(xe_ref, xo_ref, w1e_ref, w1o_ref, s1_ref, t1_ref,
                 w2cat_ref, s2_ref, t2_ref, sj2_ref, tj2_ref,
                 wcat_ref, bias_ref,
                 out_ref, outj_ref,
                 p1pad_ref, cols2_ref, stk_ref):
    f32 = jnp.float32

    # ---- conv1 (1->64, k=9, pad=4) + BN1 + ReLU + MaxPool(2,2), on the VPU ----
    # Even / odd output positions are built from the de-interleaved inputs
    # xE / xO, so the stride-2 maxpool becomes a plain elementwise max.
    acc_e = jnp.zeros((R, C1), f32)
    acc_o = jnp.zeros((R, C1), f32)
    for a in range(5):                                # even taps w1[:, 2a]
        off = PAD + (a - 2) * BT
        we = w1e_ref[a:a + 1, :]                      # (1, C1)
        acc_e = acc_e + xe_ref[off:off + R, :] * we
        acc_o = acc_o + xo_ref[off:off + R, :] * we
    for a in range(4):                                # odd taps w1[:, 2a+1]
        wo = w1o_ref[a:a + 1, :]
        off = PAD + (a - 2) * BT
        acc_e = acc_e + xo_ref[off:off + R, :] * wo
        off1 = PAD + (a - 1) * BT
        acc_o = acc_o + xe_ref[off1:off1 + R, :] * wo
    s1 = s1_ref[...]
    t1 = t1_ref[...]
    a1e = jnp.maximum(acc_e * s1 + t1, 0.0)           # folded conv-bias + BN + ReLU
    a1o = jnp.maximum(acc_o * s1 + t1, 0.0)
    p1 = jnp.maximum(a1e, a1o)                        # (R, C1)  == MaxPool1d(2, 2)

    # ---- conv2 (64->128, k=5, pad=2) as one K=320 matmul (main + linear wt) ----
    p1pad_ref[0:PAD, :] = jnp.zeros((PAD, C1), f32)
    p1pad_ref[PAD + R:PAD + R + PAD, :] = jnp.zeros((PAD, C1), f32)
    p1pad_ref[PAD:PAD + R, :] = p1
    for k in range(K2):
        cols2_ref[:, k * C1:(k + 1) * C1] = p1pad_ref[k * BT:k * BT + R, :]
    cc = jnp.dot(cols2_ref[...], w2cat_ref[...],
                 preferred_element_type=f32)          # (R, 2*C2)
    cw = cc[:, 0:C2]                                  # conv2 with weight
    clw = cc[:, C2:2 * C2]                            # conv2 with linear_weight
    # folded conv bias + eval BatchNorm (main / jvp branches) + LinearReLU
    v = cw * s2_ref[...] + t2_ref[...]
    vj = cw * sj2_ref[...] + clw * s2_ref[...] + tj2_ref[...]
    pos = (v > 0.0).astype(f32)
    a2 = v * pos                                      # relu(v)
    a2j = vj * pos                                    # vj * (relu(v) > 0)

    # ---- AvgPool(2,2) + flatten + Linear(1536, 6), avgpool folded into wcat ----
    # stack rows 0:BT = main features, BT:2BT = jvp features, then one matmul.
    for m in range(L2):
        stk_ref[0:BT, m * C2:(m + 1) * C2] = a2[m * BT:(m + 1) * BT, :]
        stk_ref[BT:2 * BT, m * C2:(m + 1) * C2] = a2j[m * BT:(m + 1) * BT, :]
    z = jnp.dot(stk_ref[...], wcat_ref[...],
                preferred_element_type=f32)           # (2*BT, 2*NCLASS)
    bl = bias_ref[:, 0:NCLASS]
    lbl = bias_ref[:, NCLASS:2 * NCLASS]
    out_ref[...] = z[0:BT, 0:NCLASS] + bl
    outj_ref[...] = z[0:BT, NCLASS:2 * NCLASS] + z[BT:2 * BT, 0:NCLASS] + lbl


# ------------------------------- wrapper ----------------------------------- #

@jax.jit
def net_wisdm_tmc_forward(x, params):
    (w1e, w1o, s1, t1, w2cat, s2, t2, sj2, tj2, wcat, bias) = params
    B = x.shape[0]
    nb = pl.cdiv(B, BT)
    Bp = nb * BT
    xp = jnp.pad(x.astype(jnp.float32), ((0, Bp - B), (0, 0)))     # (Bp, L)

    def length_major(xs):        # (Bp, L2) -> (nb*(L2+4)*BT, 1), zero borders
        xs = xs.reshape(nb, BT, L2)
        xs = jnp.transpose(xs, (0, 2, 1))                          # (nb, L2, BT)
        xs = jnp.pad(xs, ((0, 0), (2, 2), (0, 0)))                 # (nb, L2+4, BT)
        return xs.reshape(nb * (L2 + 4) * BT, 1)

    xe = length_major(xp[:, 0::2])     # even input positions
    xo = length_major(xp[:, 1::2])     # odd input positions

    tile_rows = (L2 + 4) * BT
    const = lambda t: (0, 0)

    out, outj = pl.pallas_call(
        fused_kernel,
        out_shape=(jax.ShapeDtypeStruct((Bp, NCLASS), jnp.float32),
                   jax.ShapeDtypeStruct((Bp, NCLASS), jnp.float32)),
        grid=(nb,),
        in_specs=[
            pl.BlockSpec((tile_rows, 1), lambda t: (t, 0)),        # xE (per tile)
            pl.BlockSpec((tile_rows, 1), lambda t: (t, 0)),        # xO (per tile)
            pl.BlockSpec((5, C1), const),                          # w1 even taps
            pl.BlockSpec((4, C1), const),                          # w1 odd taps
            pl.BlockSpec((1, C1), const),                          # s1
            pl.BlockSpec((1, C1), const),                          # t1
            pl.BlockSpec((K2 * C1, 2 * C2), const),                # [w2 | lw2]
            pl.BlockSpec((1, C2), const),                          # s2
            pl.BlockSpec((1, C2), const),                          # t2
            pl.BlockSpec((1, C2), const),                          # sj2
            pl.BlockSpec((1, C2), const),                          # tj2
            pl.BlockSpec((L2 * C2, 2 * NCLASS), const),            # [Wl | lWl] folded
            pl.BlockSpec((1, 2 * NCLASS), const),                  # [bl | lbl]
        ],
        out_specs=(pl.BlockSpec((BT, NCLASS), lambda t: (t, 0)),
                   pl.BlockSpec((BT, NCLASS), lambda t: (t, 0))),
        scratch_shapes=[
            pltpu.VMEM(((L2 + 4) * BT, C1), jnp.float32),          # padded conv2 input
            pltpu.VMEM((R, K2 * C1), jnp.float32),                 # conv2 im2col cols
            pltpu.VMEM((2 * BT, L2 * C2), jnp.float32),            # [f; f_jvp] stacked
        ],
        compiler_params=pltpu.CompilerParams(dimension_semantics=("parallel",)),
    )(xe, xo, w1e, w1o, s1, t1, w2cat, s2, t2, sj2, tj2, wcat, bias)
    return out[:B], outj[:B]


# --------------------------- parameters & reference ------------------------ #

def init_params(key):
    ks = jax.random.split(key, 20)
    # conv block 1: Conv1d(1, 64, 9, pad=4) + BatchNorm1d(64)
    w1 = 0.2 * jax.random.normal(ks[0], (C1, K1), jnp.float32)     # (64,1,9) squeezed
    b1 = 0.1 * jax.random.normal(ks[1], (C1,), jnp.float32)
    g1 = jax.random.uniform(ks[2], (C1,), jnp.float32, 0.5, 1.5)
    be1 = 0.1 * jax.random.normal(ks[3], (C1,), jnp.float32)
    rm1 = 0.1 * jax.random.normal(ks[4], (C1,), jnp.float32)
    rv1 = jax.random.uniform(ks[5], (C1,), jnp.float32, 0.5, 1.5)
    # LinearConv1D(64, 128, 5, pad=2)
    w2 = 0.05 * jax.random.normal(ks[6], (C2, C1, K2), jnp.float32)
    b2 = 0.1 * jax.random.normal(ks[7], (C2,), jnp.float32)
    lw2 = 0.05 * jax.random.normal(ks[8], (C2, C1, K2), jnp.float32)   # linear_weight
    lb2 = 0.1 * jax.random.normal(ks[9], (C2,), jnp.float32)           # linear_bias
    # LinearBatchNorm1d(128)
    g2 = jax.random.uniform(ks[10], (C2,), jnp.float32, 0.5, 1.5)
    be2 = 0.1 * jax.random.normal(ks[11], (C2,), jnp.float32)
    rm2 = 0.1 * jax.random.normal(ks[12], (C2,), jnp.float32)
    rv2 = jax.random.uniform(ks[13], (C2,), jnp.float32, 0.5, 1.5)
    lg2 = 0.5 * jax.random.normal(ks[14], (C2,), jnp.float32)          # linear_weight
    lbe2 = 0.1 * jax.random.normal(ks[15], (C2,), jnp.float32)         # linear_bias
    # LinearLinear(1536, 6)
    wl = 0.02 * jax.random.normal(ks[16], (NCLASS, C2 * L4), jnp.float32)
    bl = 0.1 * jax.random.normal(ks[17], (NCLASS,), jnp.float32)
    lwl = 0.02 * jax.random.normal(ks[18], (NCLASS, C2 * L4), jnp.float32)  # linear_weight
    lbl = 0.1 * jax.random.normal(ks[19], (NCLASS,), jnp.float32)           # linear_bias
    # NOTE: torch initializes the linear_* parameters to 1e-12; random values are
    # used here so the JVP branch is actually exercised numerically.

    raw = dict(w1=w1, b1=b1, g1=g1, be1=be1, rm1=rm1, rv1=rv1,
               w2=w2, b2=b2, lw2=lw2, lb2=lb2,
               g2=g2, be2=be2, rm2=rm2, rv2=rv2, lg2=lg2, lbe2=lbe2,
               wl=wl, bl=bl, lwl=lwl, lbl=lbl)

    # fold conv biases + eval BatchNorm into per-channel scale / shift
    inv1 = 1.0 / jnp.sqrt(rv1 + EPS)
    s1 = (g1 * inv1).reshape(1, C1)
    t1 = (be1 + (b1 - rm1) * g1 * inv1).reshape(1, C1)

    inv2 = 1.0 / jnp.sqrt(rv2 + EPS)
    s2v = g2 * inv2                      # main BN scale
    sj2v = lg2 * inv2                    # linear-BN scale (jvp branch)
    t2v = be2 + (b2 - rm2) * s2v
    tj2v = lbe2 + (b2 - rm2) * sj2v + lb2 * s2v
    s2, t2 = s2v.reshape(1, C2), t2v.reshape(1, C2)
    sj2, tj2 = sj2v.reshape(1, C2), tj2v.reshape(1, C2)

    # conv1 taps split into even / odd (match the de-interleaved inputs)
    w1e = jnp.transpose(w1[:, 0::2])     # (5, C1)
    w1o = jnp.transpose(w1[:, 1::2])     # (4, C1)

    # conv2 weights -> (K2*C1, C2); main and linear concatenated on the N axis
    def fold_w2(w):
        return jnp.transpose(w, (2, 1, 0)).reshape(K2 * C1, C2)
    w2cat = jnp.concatenate([fold_w2(w2), fold_w2(lw2)], axis=1)   # (320, 256)

    # classifier with AvgPool1d(2,2) + channel-major flatten folded in:
    #   wcat[m*C2 + c, n]     = 0.5 * wl [n, c*L4 + m//2]
    #   wcat[m*C2 + c, N + n] = 0.5 * lwl[n, c*L4 + m//2]
    def fold_cls(w):
        w3 = w.reshape(NCLASS, C2, L4)
        w3 = jnp.repeat(w3, 2, axis=2)                             # (N, C2, L2)
        return 0.5 * jnp.transpose(w3, (2, 1, 0)).reshape(L2 * C2, NCLASS)
    wcat = jnp.concatenate([fold_cls(wl), fold_cls(lwl)], axis=1)  # (3072, 12)
    bias = jnp.concatenate([bl, lbl]).reshape(1, 2 * NCLASS)

    kernel_params = (w1e, w1o, s1, t1, w2cat, s2, t2, sj2, tj2, wcat, bias)
    return kernel_params, raw


def reference_forward(x, p):
    """Pure-JAX eval-mode reference for NetWISDM_TMC: returns (logits, logits_jvp)."""
    hp = jax.lax.Precision.HIGHEST

    def conv1d(h, w, pad):
        return jax.lax.conv_general_dilated(
            h, w, (1,), [(pad, pad)],
            dimension_numbers=('NCH', 'OIH', 'NCH'), precision=hp)

    B = x.shape[0]
    h = x[:, None, :]                                              # unsqueeze(1)
    h = conv1d(h, p['w1'][:, None, :], 4) + p['b1'][None, :, None]
    h = ((h - p['rm1'][None, :, None]) / jnp.sqrt(p['rv1'] + EPS)[None, :, None]
         * p['g1'][None, :, None] + p['be1'][None, :, None])
    h = jnp.maximum(h, 0.0)
    # F.dropout (eval) = identity
    h = jnp.max(h.reshape(B, C1, L2, 2), axis=-1)                  # MaxPool1d(2,2)
    hj = jnp.zeros_like(h)
    # LinearConv1D
    u = conv1d(h, p['w2'], 2) + p['b2'][None, :, None]
    uj = (conv1d(h, p['lw2'], 2) + p['lb2'][None, :, None]
          + conv1d(hj, p['w2'], 2))
    # LinearBatchNorm1d (eval)
    inv2 = 1.0 / jnp.sqrt(p['rv2'] + EPS)
    v = ((u - p['rm2'][None, :, None]) * inv2[None, :, None]
         * p['g2'][None, :, None] + p['be2'][None, :, None])
    vj = ((u - p['rm2'][None, :, None]) * inv2[None, :, None] * p['lg2'][None, :, None]
          + p['lbe2'][None, :, None]
          + uj * inv2[None, :, None] * p['g2'][None, :, None])
    # LinearReLU
    a = jnp.maximum(v, 0.0)
    aj = vj * (a > 0.0).astype(jnp.float32)
    # LinearDropout (eval) = identity; LinearAvgPool1d(2,2)
    pa = jnp.mean(a.reshape(B, C2, L4, 2), axis=-1)
    paj = jnp.mean(aj.reshape(B, C2, L4, 2), axis=-1)
    f = pa.reshape(B, -1)                                          # (B, 1536)
    fj = paj.reshape(B, -1)
    out = jnp.dot(f, p['wl'].T, precision=hp) + p['bl'][None, :]
    outj = (jnp.dot(f, p['lwl'].T, precision=hp) + p['lbl'][None, :]
            + jnp.dot(fj, p['wl'].T, precision=hp))
    return out, outj


if __name__ == "__main__":
    key = jax.random.PRNGKey(0)
    kp, kx = jax.random.split(key)
    params, raw = init_params(kp)

    B = 2
    x = jax.random.normal(kx, (B, L), jnp.float32)                 # input (2, 48)

    out, out_jvp = net_wisdm_tmc_forward(x, params)
    out = jax.block_until_ready(out)
    out_jvp = jax.block_until_ready(out_jvp)

    assert out.shape == (B, NCLASS) and out_jvp.shape == (B, NCLASS)
    assert np.isfinite(np.asarray(out)).all()
    assert np.isfinite(np.asarray(out_jvp)).all()

    ref, ref_jvp = reference_forward(x, raw)
    err = float(jnp.max(jnp.abs(out - ref)))
    errj = float(jnp.max(jnp.abs(out_jvp - ref_jvp)))
    assert err < 3e-2, f"main-branch max abs err vs reference: {err}"
    assert errj < 3e-2, f"jvp-branch max abs err vs reference: {errj}"
    print("KERNEL_OK")
</pallas_src>

<mosaic_0001>
module attributes {stable_mosaic.version = 11 : i64} {
  func.func @fused_kernel(%arg0: i32, %arg1: memref<224x1xf32, #tpu.memory_space<vmem>>, %arg2: memref<224x1xf32, #tpu.memory_space<vmem>>, %arg3: memref<5x64xf32, #tpu.memory_space<vmem>>, %arg4: memref<4x64xf32, #tpu.memory_space<vmem>>, %arg5: memref<1x64xf32, #tpu.memory_space<vmem>>, %arg6: memref<1x64xf32, #tpu.memory_space<vmem>>, %arg7: memref<320x256xf32, #tpu.memory_space<vmem>>, %arg8: memref<1x128xf32, #tpu.memory_space<vmem>>, %arg9: memref<1x128xf32, #tpu.memory_space<vmem>>, %arg10: memref<1x128xf32, #tpu.memory_space<vmem>>, %arg11: memref<1x128xf32, #tpu.memory_space<vmem>>, %arg12: memref<3072x12xf32, #tpu.memory_space<vmem>>, %arg13: memref<1x12xf32, #tpu.memory_space<vmem>>, %arg14: memref<8x6xf32, #tpu.memory_space<vmem>>, %arg15: memref<8x6xf32, #tpu.memory_space<vmem>>, %arg16: memref<224x64xf32, #tpu.memory_space<vmem>>, %arg17: memref<192x320xf32, #tpu.memory_space<vmem>>, %arg18: memref<16x3072xf32, #tpu.memory_space<vmem>>) attributes {dimension_semantics = [#tpu.dimension_semantics<parallel>], iteration_bounds = array<i64: 1>, scalar_prefetch = 0 : i64, scratch_operands = 3 : i64, tpu.core_type = #tpu.core_type<tc>, window_params = [{transform_indices = @transform_0, window_bounds = array<i64: 224, 1>}, {transform_indices = @transform_1, window_bounds = array<i64: 224, 1>}, {pipeline_mode = #tpu.pipeline_mode<synchronous>, transform_indices = @transform_2, window_bounds = array<i64: 5, 64>}, {pipeline_mode = #tpu.pipeline_mode<synchronous>, transform_indices = @transform_3, window_bounds = array<i64: 4, 64>}, {pipeline_mode = #tpu.pipeline_mode<synchronous>, transform_indices = @transform_4, window_bounds = array<i64: 1, 64>}, {pipeline_mode = #tpu.pipeline_mode<synchronous>, transform_indices = @transform_5, window_bounds = array<i64: 1, 64>}, {pipeline_mode = #tpu.pipeline_mode<synchronous>, transform_indices = @transform_6, window_bounds = array<i64: 320, 256>}, {pipeline_mode = #tpu.pipeline_mode<synchronous>, transform_indices = @transform_7, window_bounds = array<i64: 1, 128>}, {pipeline_mode = #tpu.pipeline_mode<synchronous>, transform_indices = @transform_8, window_bounds = array<i64: 1, 128>}, {pipeline_mode = #tpu.pipeline_mode<synchronous>, transform_indices = @transform_9, window_bounds = array<i64: 1, 128>}, {pipeline_mode = #tpu.pipeline_mode<synchronous>, transform_indices = @transform_10, window_bounds = array<i64: 1, 128>}, {pipeline_mode = #tpu.pipeline_mode<synchronous>, transform_indices = @transform_11, window_bounds = array<i64: 3072, 12>}, {pipeline_mode = #tpu.pipeline_mode<synchronous>, transform_indices = @transform_12, window_bounds = array<i64: 1, 12>}, {transform_indices = @transform_13, window_bounds = array<i64: 8, 6>}, {transform_indices = @transform_14, window_bounds = array<i64: 8, 6>}]} {
    %cst = arith.constant 0.000000e+00 : f32
    %0 = vector.broadcast %cst : f32 to vector<192x64xf32>
    %cst_0 = arith.constant 0.000000e+00 : f32
    %1 = vector.broadcast %cst_0 : f32 to vector<192x64xf32>
    %c0 = arith.constant 0 : index
    %c0_1 = arith.constant 0 : index
    %2 = vector.load %arg3[%c0, %c0_1] : memref<5x64xf32, #tpu.memory_space<vmem>>, vector<1x64xf32>
    %c0_2 = arith.constant 0 : index
    %c0_3 = arith.constant 0 : index
    %3 = vector.load %arg1[%c0_2, %c0_3] : memref<224x1xf32, #tpu.memory_space<vmem>>, vector<192x1xf32>
    %4 = vector.broadcast %3 : vector<192x1xf32> to vector<192x64xf32>
    %5 = vector.broadcast %2 : vector<1x64xf32> to vector<192x64xf32>
    %6 = arith.mulf %4, %5 : vector<192x64xf32>
    %7 = arith.addf %0, %6 : vector<192x64xf32>
    %c0_4 = arith.constant 0 : index
    %c0_5 = arith.constant 0 : index
    %8 = vector.load %arg2[%c0_4, %c0_5] : memref<224x1xf32, #tpu.memory_space<vmem>>, vector<192x1xf32>
    %9 = vector.broadcast %8 : vector<192x1xf32> to vector<192x64xf32>
    %10 = vector.broadcast %2 : vector<1x64xf32> to vector<192x64xf32>
    %11 = arith.mulf %9, %10 : vector<192x64xf32>
    %12 = arith.addf %1, %11 : vector<192x64xf32>
    %c1 = arith.constant 1 : index
    %c0_6 = arith.constant 0 : index
    %13 = vector.load %arg3[%c1, %c0_6] : memref<5x64xf32, #tpu.memory_space<vmem>>, vector<1x64xf32>
    %c8 = arith.constant 8 : index
    %c0_7 = arith.constant 0 : index
    %14 = vector.load %arg1[%c8, %c0_7] : memref<224x1xf32, #tpu.memory_space<vmem>>, vector<192x1xf32>
    %15 = vector.broadcast %14 : vector<192x1xf32> to vector<192x64xf32>
    %16 = vector.broadcast %13 : vector<1x64xf32> to vector<192x64xf32>
    %17 = arith.mulf %15, %16 : vector<192x64xf32>
    %18 = arith.addf %7, %17 : vector<192x64xf32>
    %c8_8 = arith.constant 8 : index
    %c0_9 = arith.constant 0 : index
    %19 = vector.load %arg2[%c8_8, %c0_9] : memref<224x1xf32, #tpu.memory_space<vmem>>, vector<192x1xf32>
    %20 = vector.broadcast %19 : vector<192x1xf32> to vector<192x64xf32>
    %21 = vector.broadcast %13 : vector<1x64xf32> to vector<192x64xf32>
    %22 = arith.mulf %20, %21 : vector<192x64xf32>
    %23 = arith.addf %12, %22 : vector<192x64xf32>
    %c2 = arith.constant 2 : index
    %c0_10 = arith.constant 0 : index
    %24 = vector.load %arg3[%c2, %c0_10] : memref<5x64xf32, #tpu.memory_space<vmem>>, vector<1x64xf32>
    %c16 = arith.constant 16 : index
    %c0_11 = arith.constant 0 : index
    %25 = vector.load %arg1[%c16, %c0_11] : memref<224x1xf32, #tpu.memory_space<vmem>>, vector<192x1xf32>
    %26 = vector.broadcast %25 : vector<192x1xf32> to vector<192x64xf32>
    %27 = vector.broadcast %24 : vector<1x64xf32> to vector<192x64xf32>
    %28 = arith.mulf %26, %27 : vector<192x64xf32>
    %29 = arith.addf %18, %28 : vector<192x64xf32>
    %c16_12 = arith.constant 16 : index
    %c0_13 = arith.constant 0 : index
    %30 = vector.load %arg2[%c16_12, %c0_13] : memref<224x1xf32, #tpu.memory_space<vmem>>, vector<192x1xf32>
    %31 = vector.broadcast %30 : vector<192x1xf32> to vector<192x64xf32>
    %32 = vector.broadcast %24 : vector<1x64xf32> to vector<192x64xf32>
    %33 = arith.mulf %31, %32 : vector<192x64xf32>
    %34 = arith.addf %23, %33 : vector<192x64xf32>
    %c3 = arith.constant 3 : index
    %c0_14 = arith.constant 0 : index
    %35 = vector.load %arg3[%c3, %c0_14] : memref<5x64xf32, #tpu.memory_space<vmem>>, vector<1x64xf32>
    %c24 = arith.constant 24 : index
    %c0_15 = arith.constant 0 : index
    %36 = vector.load %arg1[%c24, %c0_15] : memref<224x1xf32, #tpu.memory_space<vmem>>, vector<192x1xf32>
    %37 = vector.broadcast %36 : vector<192x1xf32> to vector<192x64xf32>
    %38 = vector.broadcast %35 : vector<1x64xf32> to vector<192x64xf32>
    %39 = arith.mulf %37, %38 : vector<192x64xf32>
    %40 = arith.addf %29, %39 : vector<192x64xf32>
    %c24_16 = arith.constant 24 : index
    %c0_17 = arith.constant 0 : index
    %41 = vector.load %arg2[%c24_16, %c0_17] : memref<224x1xf32, #tpu.memory_space<vmem>>, vector<192x1xf32>
    %42 = vector.broadcast %41 : vector<192x1xf32> to vector<192x64xf32>
    %43 = vector.broadcast %35 : vector<1x64xf32> to vector<192x64xf32>
    %44 = arith.mulf %42, %43 : vector<192x64xf32>
    %45 = arith.addf %34, %44 : vector<192x64xf32>
    %c4 = arith.constant 4 : index
    %c0_18 = arith.constant 0 : index
    %46 = vector.load %arg3[%c4, %c0_18] : memref<5x64xf32, #tpu.memory_space<vmem>>, vector<1x64xf32>
    %c32 = arith.constant 32 : index
    %c0_19 = arith.constant 0 : index
    %47 = vector.load %arg1[%c32, %c0_19] : memref<224x1xf32, #tpu.memory_space<vmem>>, vector<192x1xf32>
    %48 = vector.broadcast %47 : vector<192x1xf32> to vector<192x64xf32>
    %49 = vector.broadcast %46 : vector<1x64xf32> to vector<192x64xf32>
    %50 = arith.mulf %48, %49 : vector<192x64xf32>
    %51 = arith.addf %40, %50 : vector<192x64xf32>
    %c32_20 = arith.constant 32 : index
    %c0_21 = arith.constant 0 : index
    %52 = vector.load %arg2[%c32_20, %c0_21] : memref<224x1xf32, #tpu.memory_space<vmem>>, vector<192x1xf32>
    %53 = vector.broadcast %52 : vector<192x1xf32> to vector<192x64xf32>
    %54 = vector.broadcast %46 : vector<1x64xf32> to vector<192x64xf32>
    %55 = arith.mulf %53, %54 : vector<192x64xf32>
    %56 = arith.addf %45, %55 : vector<192x64xf32>
    %c0_22 = arith.constant 0 : index
    %c0_23 = arith.constant 0 : index
    %57 = vector.load %arg4[%c0_22, %c0_23] : memref<4x64xf32, #tpu.memory_space<vmem>>, vector<1x64xf32>
    %c0_24 = arith.constant 0 : index
    %c0_25 = arith.constant 0 : index
    %58 = vector.load %arg2[%c0_24, %c0_25] : memref<224x1xf32, #tpu.memory_space<vmem>>, vector<192x1xf32>
    %59 = vector.broadcast %58 : vector<192x1xf32> to vector<192x64xf32>
    %60 = vector.broadcast %57 : vector<1x64xf32> to vector<192x64xf32>
    %61 = arith.mulf %59, %60 : vector<192x64xf32>
    %62 = arith.addf %51, %61 : vector<192x64xf32>
    %c8_26 = arith.constant 8 : index
    %c0_27 = arith.constant 0 : index
    %63 = vector.load %arg1[%c8_26, %c0_27] : memref<224x1xf32, #tpu.memory_space<vmem>>, vector<192x1xf32>
    %64 = vector.broadcast %63 : vector<192x1xf32> to vector<192x64xf32>
    %65 = vector.broadcast %57 : vector<1x64xf32> to vector<192x64xf32>
    %66 = arith.mulf %64, %65 : vector<192x64xf32>
    %67 = arith.addf %56, %66 : vector<192x64xf32>
    %c1_28 = arith.constant 1 : index
    %c0_29 = arith.constant 0 : index
    %68 = vector.load %arg4[%c1_28, %c0_29] : memref<4x64xf32, #tpu.memory_space<vmem>>, vector<1x64xf32>
    %c8_30 = arith.constant 8 : index
    %c0_31 = arith.constant 0 : index
    %69 = vector.load %arg2[%c8_30, %c0_31] : memref<224x1xf32, #tpu.memory_space<vmem>>, vector<192x1xf32>
    %70 = vector.broadcast %69 : vector<192x1xf32> to vector<192x64xf32>
    %71 = vector.broadcast %68 : vector<1x64xf32> to vector<192x64xf32>
    %72 = arith.mulf %70, %71 : vector<192x64xf32>
    %73 = arith.addf %62, %72 : vector<192x64xf32>
    %c16_32 = arith.constant 16 : index
    %c0_33 = arith.constant 0 : index
    %74 = vector.load %arg1[%c16_32, %c0_33] : memref<224x1xf32, #tpu.memory_space<vmem>>, vector<192x1xf32>
    %75 = vector.broadcast %74 : vector<192x1xf32> to vector<192x64xf32>
    %76 = vector.broadcast %68 : vector<1x64xf32> to vector<192x64xf32>
    %77 = arith.mulf %75, %76 : vector<192x64xf32>
    %78 = arith.addf %67, %77 : vector<192x64xf32>
    %c2_34 = arith.constant 2 : index
    %c0_35 = arith.constant 0 : index
    %79 = vector.load %arg4[%c2_34, %c0_35] : memref<4x64xf32, #tpu.memory_space<vmem>>, vector<1x64xf32>
    %c16_36 = arith.constant 16 : index
    %c0_37 = arith.constant 0 : index
    %80 = vector.load %arg2[%c16_36, %c0_37] : memref<224x1xf32, #tpu.memory_space<vmem>>, vector<192x1xf32>
    %81 = vector.broadcast %80 : vector<192x1xf32> to vector<192x64xf32>
    %82 = vector.broadcast %79 : vector<1x64xf32> to vector<192x64xf32>
    %83 = arith.mulf %81, %82 : vector<192x64xf32>
    %84 = arith.addf %73, %83 : vector<192x64xf32>
    %c24_38 = arith.constant 24 : index
    %c0_39 = arith.constant 0 : index
    %85 = vector.load %arg1[%c24_38, %c0_39] : memref<224x1xf32, #tpu.memory_space<vmem>>, vector<192x1xf32>
    %86 = vector.broadcast %85 : vector<192x1xf32> to vector<192x64xf32>
    %87 = vector.broadcast %79 : vector<1x64xf32> to vector<192x64xf32>
    %88 = arith.mulf %86, %87 : vector<192x64xf32>
    %89 = arith.addf %78, %88 : vector<192x64xf32>
    %c3_40 = arith.constant 3 : index
    %c0_41 = arith.constant 0 : index
    %90 = vector.load %arg4[%c3_40, %c0_41] : memref<4x64xf32, #tpu.memory_space<vmem>>, vector<1x64xf32>
    %c24_42 = arith.constant 24 : index
    %c0_43 = arith.constant 0 : index
    %91 = vector.load %arg2[%c24_42, %c0_43] : memref<224x1xf32, #tpu.memory_space<vmem>>, vector<192x1xf32>
    %92 = vector.broadcast %91 : vector<192x1xf32> to vector<192x64xf32>
    %93 = vector.broadcast %90 : vector<1x64xf32> to vector<192x64xf32>
    %94 = arith.mulf %92, %93 : vector<192x64xf32>
    %95 = arith.addf %84, %94 : vector<192x64xf32>
    %c32_44 = arith.constant 32 : index
    %c0_45 = arith.constant 0 : index
    %96 = vector.load %arg1[%c32_44, %c0_45] : memref<224x1xf32, #tpu.memory_space<vmem>>, vector<192x1xf32>
    %97 = vector.broadcast %96 : vector<192x1xf32> to vector<192x64xf32>
    %98 = vector.broadcast %90 : vector<1x64xf32> to vector<192x64xf32>
    %99 = arith.mulf %97, %98 : vector<192x64xf32>
    %100 = arith.addf %89, %99 : vector<192x64xf32>
    %c0_46 = arith.constant 0 : index
    %c0_47 = arith.constant 0 : index
    %101 = vector.load %arg5[%c0_46, %c0_47] : memref<1x64xf32, #tpu.memory_space<vmem>>, vector<1x64xf32>
    %c0_48 = arith.constant 0 : index
    %c0_49 = arith.constant 0 : index
    %102 = vector.load %arg6[%c0_48, %c0_49] : memref<1x64xf32, #tpu.memory_space<vmem>>, vector<1x64xf32>
    %103 = vector.broadcast %101 : vector<1x64xf32> to vector<192x64xf32>
    %104 = arith.mulf %95, %103 : vector<192x64xf32>
    %105 = vector.broadcast %102 : vector<1x64xf32> to vector<192x64xf32>
    %106 = arith.addf %104, %105 : vector<192x64xf32>
    %cst_50 = arith.constant 0.000000e+00 : f32
    %107 = vector.broadcast %cst_50 : f32 to vector<192x64xf32>
    %108 = arith.maximumf %106, %107 : vector<192x64xf32>
    %109 = vector.broadcast %101 : vector<1x64xf32> to vector<192x64xf32>
    %110 = arith.mulf %100, %109 : vector<192x64xf32>
    %111 = vector.broadcast %102 : vector<1x64xf32> to vector<192x64xf32>
    %112 = arith.addf %110, %111 : vector<192x64xf32>
    %cst_51 = arith.constant 0.000000e+00 : f32
    %113 = vector.broadcast %cst_51 : f32 to vector<192x64xf32>
    %114 = arith.maximumf %112, %113 : vector<192x64xf32>
    %115 = arith.maximumf %108, %114 : vector<192x64xf32>
    %cst_52 = arith.constant 0.000000e+00 : f32
    %116 = vector.broadcast %cst_52 : f32 to vector<16x64xf32>
    %c0_53 = arith.constant 0 : index
    %c0_54 = arith.constant 0 : index
    %117 = vector.load %arg16[%c0_53, %c0_54] : memref<224x64xf32, #tpu.memory_space<vmem>>, vector<16x64xf32>
    tpu.vector_store %arg16[%c0_53, %c0_54], %116 {strides = array<i32>} : memref<224x64xf32, #tpu.memory_space<vmem>>, vector<16x64xf32>,
    %cst_55 = arith.constant 0.000000e+00 : f32
    %118 = vector.broadcast %cst_55 : f32 to vector<16x64xf32>
    %c208 = arith.constant 208 : index
    %c0_56 = arith.constant 0 : index
    %119 = vector.load %arg16[%c208, %c0_56] : memref<224x64xf32, #tpu.memory_space<vmem>>, vector<16x64xf32>
    tpu.vector_store %arg16[%c208, %c0_56], %118 {strides = array<i32>} : memref<224x64xf32, #tpu.memory_space<vmem>>, vector<16x64xf32>,
    %c16_57 = arith.constant 16 : index
    %c0_58 = arith.constant 0 : index
    %120 = vector.load %arg16[%c16_57, %c0_58] : memref<224x64xf32, #tpu.memory_space<vmem>>, vector<192x64xf32>
    tpu.vector_store %arg16[%c16_57, %c0_58], %115 {strides = array<i32>} : memref<224x64xf32, #tpu.memory_space<vmem>>, vector<192x64xf32>,
    %c0_59 = arith.constant 0 : index
    %c0_60 = arith.constant 0 : index
    %121 = vector.load %arg16[%c0_59, %c0_60] : memref<224x64xf32, #tpu.memory_space<vmem>>, vector<192x64xf32>
    %c0_61 = arith.constant 0 : index
    %c0_62 = arith.constant 0 : index
    %122 = vector.load %arg17[%c0_61, %c0_62] : memref<192x320xf32, #tpu.memory_space<vmem>>, vector<192x64xf32>
    tpu.vector_store %arg17[%c0_61, %c0_62], %121 {strides = array<i32>} : memref<192x320xf32, #tpu.memory_space<vmem>>, vector<192x64xf32>,
    %c8_63 = arith.constant 8 : index
    %c0_64 = arith.constant 0 : index
    %123 = vector.load %arg16[%c8_63, %c0_64] : memref<224x64xf32, #tpu.memory_space<vmem>>, vector<192x64xf32>
    %c0_65 = arith.constant 0 : index
    %c64 = arith.constant 64 : index
    %124 = vector.load %arg17[%c0_65, %c64] : memref<192x320xf32, #tpu.memory_space<vmem>>, vector<192x64xf32>
    tpu.vector_store %arg17[%c0_65, %c64], %123 {strides = array<i32>} : memref<192x320xf32, #tpu.memory_space<vmem>>, vector<192x64xf32>,
    %c16_66 = arith.constant 16 : index
    %c0_67 = arith.constant 0 : index
    %125 = vector.load %arg16[%c16_66, %c0_67] : memref<224x64xf32, #tpu.memory_space<vmem>>, vector<192x64xf32>
    %c0_68 = arith.constant 0 : index
    %c128 = arith.constant 128 : index
    %126 = vector.load %arg17[%c0_68, %c128] : memref<192x320xf32, #tpu.memory_space<vmem>>, vector<192x64xf32>
    tpu.vector_store %arg17[%c0_68, %c128], %125 {strides = array<i32>} : memref<192x320xf32, #tpu.memory_space<vmem>>, vector<192x64xf32>,
    %c24_69 = arith.constant 24 : index
    %c0_70 = arith.constant 0 : index
    %127 = vector.load %arg16[%c24_69, %c0_70] : memref<224x64xf32, #tpu.memory_space<vmem>>, vector<192x64xf32>
    %c0_71 = arith.constant 0 : index
    %c192 = arith.constant 192 : index
    %128 = vector.load %arg17[%c0_71, %c192] : memref<192x320xf32, #tpu.memory_space<vmem>>, vector<192x64xf32>
    tpu.vector_store %arg17[%c0_71, %c192], %127 {strides = array<i32>} : memref<192x320xf32, #tpu.memory_space<vmem>>, vector<192x64xf32>,
    %c32_72 = arith.constant 32 : index
    %c0_73 = arith.constant 0 : index
    %129 = vector.load %arg16[%c32_72, %c0_73] : memref<224x64xf32, #tpu.memory_space<vmem>>, vector<192x64xf32>
    %c0_74 = arith.constant 0 : index
    %c256 = arith.constant 256 : index
    %130 = vector.load %arg17[%c0_74, %c256] : memref<192x320xf32, #tpu.memory_space<vmem>>, vector<192x64xf32>
    tpu.vector_store %arg17[%c0_74, %c256], %129 {strides = array<i32>} : memref<192x320xf32, #tpu.memory_space<vmem>>, vector<192x64xf32>,
    %c0_75 = arith.constant 0 : index
    %c0_76 = arith.constant 0 : index
    %131 = vector.load %arg17[%c0_75, %c0_76] : memref<192x320xf32, #tpu.memory_space<vmem>>, vector<192x320xf32>
    %c0_77 = arith.constant 0 : index
    %c0_78 = arith.constant 0 : index
    %132 = vector.load %arg7[%c0_77, %c0_78] : memref<320x256xf32, #tpu.memory_space<vmem>>, vector<320x256xf32>
    %cst_79 = arith.constant dense<0.000000e+00> : vector<192x256xf32>
    %133 = tpu.matmul %131, %132, %cst_79 {dimension_numbers = #tpu.dot_dimension_numbers<[1], [0], [0], [1], [0, 0, 1, 1], [], []>} : vector<192x320xf32>, vector<320x256xf32>, vector<192x256xf32> -> vector<192x256xf32>
    %134 = vector.extract_strided_slice %133 {offsets = [0, 0], sizes = [192, 128], strides = [1, 1]} : vector<192x256xf32> to vector<192x128xf32>
    %135 = vector.extract_strided_slice %133 {offsets = [0, 128], sizes = [192, 128], strides = [1, 1]} : vector<192x256xf32> to vector<192x128xf32>
    %c0_80 = arith.constant 0 : index
    %c0_81 = arith.constant 0 : index
    %136 = vector.load %arg8[%c0_80, %c0_81] : memref<1x128xf32, #tpu.memory_space<vmem>>, vector<1x128xf32>
    %137 = vector.broadcast %136 : vector<1x128xf32> to vector<192x128xf32>
    %138 = arith.mulf %134, %137 : vector<192x128xf32>
    %c0_82 = arith.constant 0 : index
    %c0_83 = arith.constant 0 : index
    %139 = vector.load %arg9[%c0_82, %c0_83] : memref<1x128xf32, #tpu.memory_space<vmem>>, vector<1x128xf32>
    %140 = vector.broadcast %139 : vector<1x128xf32> to vector<192x128xf32>
    %141 = arith.addf %138, %140 : vector<192x128xf32>
    %c0_84 = arith.constant 0 : index
    %c0_85 = arith.constant 0 : index
    %142 = vector.load %arg10[%c0_84, %c0_85] : memref<1x128xf32, #tpu.memory_space<vmem>>, vector<1x128xf32>
    %143 = vector.broadcast %142 : vector<1x128xf32> to vector<192x128xf32>
    %144 = arith.mulf %134, %143 : vector<192x128xf32>
    %c0_86 = arith.constant 0 : index
    %c0_87 = arith.constant 0 : index
    %145 = vector.load %arg8[%c0_86, %c0_87] : memref<1x128xf32, #tpu.memory_space<vmem>>, vector<1x128xf32>
    %146 = vector.broadcast %145 : vector<1x128xf32> to vector<192x128xf32>
    %147 = arith.mulf %135, %146 : vector<192x128xf32>
    %148 = arith.addf %144, %147 : vector<192x128xf32>
    %c0_88 = arith.constant 0 : index
    %c0_89 = arith.constant 0 : index
    %149 = vector.load %arg11[%c0_88, %c0_89] : memref<1x128xf32, #tpu.memory_space<vmem>>, vector<1x128xf32>
    %150 = vector.broadcast %149 : vector<1x128xf32> to vector<192x128xf32>
    %151 = arith.addf %148, %150 : vector<192x128xf32>
    %cst_90 = arith.constant 0.000000e+00 : f32
    %152 = vector.broadcast %cst_90 : f32 to vector<192x128xf32>
    %153 = arith.cmpf ogt, %141, %152 : vector<192x128xf32>
    %154 = arith.extui %153 : vector<192x128xi1> to vector<192x128xi32>
    %155 = arith.sitofp %154 : vector<192x128xi32> to vector<192x128xf32>
    %156 = arith.mulf %141, %155 : vector<192x128xf32>
    %157 = arith.mulf %151, %155 : vector<192x128xf32>
    %158 = vector.extract_strided_slice %156 {offsets = [0, 0], sizes = [8, 128], strides = [1, 1]} : vector<192x128xf32> to vector<8x128xf32>
    %c0_91 = arith.constant 0 : index
    %c0_92 = arith.constant 0 : index
    %159 = vector.load %arg18[%c0_91, %c0_92] : memref<16x3072xf32, #tpu.memory_space<vmem>>, vector<8x128xf32>
    tpu.vector_store %arg18[%c0_91, %c0_92], %158 {strides = array<i32>} : memref<16x3072xf32, #tpu.memory_space<vmem>>, vector<8x128xf32>,
    %160 = vector.extract_strided_slice %157 {offsets = [0, 0], sizes = [8, 128], strides = [1, 1]} : vector<192x128xf32> to vector<8x128xf32>
    %c8_93 = arith.constant 8 : index
    %c0_94 = arith.constant 0 : index
    %161 = vector.load %arg18[%c8_93, %c0_94] : memref<16x3072xf32, #tpu.memory_space<vmem>>, vector<8x128xf32>
    tpu.vector_store %arg18[%c8_93, %c0_94], %160 {strides = array<i32>} : memref<16x3072xf32, #tpu.memory_space<vmem>>, vector<8x128xf32>,
    %162 = vector.extract_strided_slice %156 {offsets = [8, 0], sizes = [8, 128], strides = [1, 1]} : vector<192x128xf32> to vector<8x128xf32>
    %c0_95 = arith.constant 0 : index
    %c128_96 = arith.constant 128 : index
    %163 = vector.load %arg18[%c0_95, %c128_96] : memref<16x3072xf32, #tpu.memory_space<vmem>>, vector<8x128xf32>
    tpu.vector_store %arg18[%c0_95, %c128_96], %162 {strides = array<i32>} : memref<16x3072xf32, #tpu.memory_space<vmem>>, vector<8x128xf32>,
    %164 = vector.extract_strided_slice %157 {offsets = [8, 0], sizes = [8, 128], strides = [1, 1]} : vector<192x128xf32> to vector<8x128xf32>
    %c8_97 = arith.constant 8 : index
    %c128_98 = arith.constant 128 : index
    %165 = vector.load %arg18[%c8_97, %c128_98] : memref<16x3072xf32, #tpu.memory_space<vmem>>, vector<8x128xf32>
    tpu.vector_store %arg18[%c8_97, %c128_98], %164 {strides = array<i32>} : memref<16x3072xf32, #tpu.memory_space<vmem>>, vector<8x128xf32>,
    %166 = vector.extract_strided_slice %156 {offsets = [16, 0], sizes = [8, 128], strides = [1, 1]} : vector<192x128xf32> to vector<8x128xf32>
    %c0_99 = arith.constant 0 : index
    %c256_100 = arith.constant 256 : index
    %167 = vector.load %arg18[%c0_99, %c256_100] : memref<16x3072xf32, #tpu.memory_space<vmem>>, vector<8x128xf32>
    tpu.vector_store %arg18[%c0_99, %c256_100], %166 {strides = array<i32>} : memref<16x3072xf32, #tpu.memory_space<vmem>>, vector<8x128xf32>,
    %168 = vector.extract_strided_slice %157 {offsets = [16, 0], sizes = [8, 128], strides = [1, 1]} : vector<192x128xf32> to vector<8x128xf32>
    %c8_101 = arith.constant 8 : index
    %c256_102 = arith.constant 256 : index
    %169 = vector.load %arg18[%c8_101, %c256_102] : memref<16x3072xf32, #tpu.memory_space<vmem>>, vector<8x128xf32>
    tpu.vector_store %arg18[%c8_101, %c256_102], %168 {strides = array<i32>} : memref<16x3072xf32, #tpu.memory_space<vmem>>, vector<8x128xf32>,
    %170 = vector.extract_strided_slice %156 {offsets = [24, 0], sizes = [8, 128], strides = [1, 1]} : vector<192x128xf32> to vector<8x128xf32>
    %c0_103 = arith.constant 0 : index
    %c384 = arith.constant 384 : index
    %171 = vector.load %arg18[%c0_103, %c384] : memref<16x3072xf32, #tpu.memory_space<vmem>>, vector<8x128xf32>
    tpu.vector_store %arg18[%c0_103, %c384], %170 {strides = array<i32>} : memref<16x3072xf32, #tpu.memory_space<vmem>>, vector<8x128xf32>,
    %172 = vector.extract_strided_slice %157 {offsets = [24, 0], sizes = [8, 128], strides = [1, 1]} : vector<192x128xf32> to vector<8x128xf32>
    %c8_104 = arith.constant 8 : index
    %c384_105 = arith.constant 384 : index
    %173 = vector.load %arg18[%c8_104, %c384_105] : memref<16x3072xf32, #tpu.memory_space<vmem>>, vector<8x128xf32>
    tpu.vector_store %arg18[%c8_104, %c384_105], %172 {strides = array<i32>} : memref<16x3072xf32, #tpu.memory_space<vmem>>, vector<8x128xf32>,
    %174 = vector.extract_strided_slice %156 {offsets = [32, 0], sizes = [8, 128], strides = [1, 1]} : vector<192x128xf32> to vector<8x128xf32>
    %c0_106 = arith.constant 0 : index
    %c512 = arith.constant 512 : index
    %175 = vector.load %arg18[%c0_106, %c512] : memref<16x3072xf32, #tpu.memory_space<vmem>>, vector<8x128xf32>
    tpu.vector_store %arg18[%c0_106, %c512], %174 {strides = array<i32>} : memref<16x3072xf32, #tpu.memory_space<vmem>>, vector<8x128xf32>,
    %176 = vector.extract_strided_slice %157 {offsets = [32, 0], sizes = [8, 128], strides = [1, 1]} : vector<192x128xf32> to vector<8x128xf32>
    %c8_107 = arith.constant 8 : index
    %c512_108 = arith.constant 512 : index
    %177 = vector.load %arg18[%c8_107, %c512_108] : memref<16x3072xf32, #tpu.memory_space<vmem>>, vector<8x128xf32>
    tpu.vector_store %arg18[%c8_107, %c512_108], %176 {strides = array<i32>} : memref<16x3072xf32, #tpu.memory_space<vmem>>, vector<8x128xf32>,
    %178 = vector.extract_strided_slice %156 {offsets = [40, 0], sizes = [8, 128], strides = [1, 1]} : vector<192x128xf32> to vector<8x128xf32>
    %c0_109 = arith.constant 0 : index
    %c640 = arith.constant 640 : index
    %179 = vector.load %arg18[%c0_109, %c640] : memref<16x3072xf32, #tpu.memory_space<vmem>>, vector<8x128xf32>
    tpu.vector_store %arg18[%c0_109, %c640], %178 {strides = array<i32>} : memref<16x3072xf32, #tpu.memory_space<vmem>>, vector<8x128xf32>,
    %180 = vector.extract_strided_slice %157 {offsets = [40, 0], sizes = [8, 128], strides = [1, 1]} : vector<192x128xf32> to vector<8x128xf32>
    %c8_110 = arith.constant 8 : index
    %c640_111 = arith.constant 640 : index
    %181 = vector.load %arg18[%c8_110, %c640_111] : memref<16x3072xf32, #tpu.memory_space<vmem>>, vector<8x128xf32>
    tpu.vector_store %arg18[%c8_110, %c640_111], %180 {strides = array<i32>} : memref<16x3072xf32, #tpu.memory_space<vmem>>, vector<8x128xf32>,
    %182 = vector.extract_strided_slice %156 {offsets = [48, 0], sizes = [8, 128], strides = [1, 1]} : vector<192x128xf32> to vector<8x128xf32>
    %c0_112 = arith.constant 0 : index
    %c768 = arith.constant 768 : index
    %183 = vector.load %arg18[%c0_112, %c768] : memref<16x3072xf32, #tpu.memory_space<vmem>>, vector<8x128xf32>
    tpu.vector_store %arg18[%c0_112, %c768], %182 {strides = array<i32>} : memref<16x3072xf32, #tpu.memory_space<vmem>>, vector<8x128xf32>,
    %184 = vector.extract_strided_slice %157 {offsets = [48, 0], sizes = [8, 128], strides = [1, 1]} : vector<192x128xf32> to vector<8x128xf32>
    %c8_113 = arith.constant 8 : index
    %c768_114 = arith.constant 768 : index
    %185 = vector.load %arg18[%c8_113, %c768_114] : memref<16x3072xf32, #tpu.memory_space<vmem>>, vector<8x128xf32>
    tpu.vector_store %arg18[%c8_113, %c768_114], %184 {strides = array<i32>} : memref<16x3072xf32, #tpu.memory_space<vmem>>, vector<8x128xf32>,
    %186 = vector.extract_strided_slice %156 {offsets = [56, 0], sizes = [8, 128], strides = [1, 1]} : vector<192x128xf32> to vector<8x128xf32>
    %c0_115 = arith.constant 0 : index
    %c896 = arith.constant 896 : index
    %187 = vector.load %arg18[%c0_115, %c896] : memref<16x3072xf32, #tpu.memory_space<vmem>>, vector<8x128xf32>
    tpu.vector_store %arg18[%c0_115, %c896], %186 {strides = array<i32>} : memref<16x3072xf32, #tpu.memory_space<vmem>>, vector<8x128xf32>,
    %188 = vector.extract_strided_slice %157 {offsets = [56, 0], sizes = [8, 128], strides = [1, 1]} : vector<192x128xf32> to vector<8x128xf32>
    %c8_116 = arith.constant 8 : index
    %c896_117 = arith.constant 896 : index
    %189 = vector.load %arg18[%c8_116, %c896_117] : memref<16x3072xf32, #tpu.memory_space<vmem>>, vector<8x128xf32>
    tpu.vector_store %arg18[%c8_116, %c896_117], %188 {strides = array<i32>} : memref<16x3072xf32, #tpu.memory_space<vmem>>, vector<8x128xf32>,
    %190 = vector.extract_strided_slice %156 {offsets = [64, 0], sizes = [8, 128], strides = [1, 1]} : vector<192x128xf32> to vector<8x128xf32>
    %c0_118 = arith.constant 0 : index
    %c1024 = arith.constant 1024 : index
    %191 = vector.load %arg18[%c0_118, %c1024] : memref<16x3072xf32, #tpu.memory_space<vmem>>, vector<8x128xf32>
    tpu.vector_store %arg18[%c0_118, %c1024], %190 {strides = array<i32>} : memref<16x3072xf32, #tpu.memory_space<vmem>>, vector<8x128xf32>,
    %192 = vector.extract_strided_slice %157 {offsets = [64, 0], sizes = [8, 128], strides = [1, 1]} : vector<192x128xf32> to vector<8x128xf32>
    %c8_119 = arith.constant 8 : index
    %c1024_120 = arith.constant 1024 : index
    %193 = vector.load %arg18[%c8_119, %c1024_120] : memref<16x3072xf32, #tpu.memory_space<vmem>>, vector<8x128xf32>
    tpu.vector_store %arg18[%c8_119, %c1024_120], %192 {strides = array<i32>} : memref<16x3072xf32, #tpu.memory_space<vmem>>, vector<8x128xf32>,
    %194 = vector.extract_strided_slice %156 {offsets = [72, 0], sizes = [8, 128], strides = [1, 1]} : vector<192x128xf32> to vector<8x128xf32>
    %c0_121 = arith.constant 0 : index
    %c1152 = arith.constant 1152 : index
    %195 = vector.load %arg18[%c0_121, %c1152] : memref<16x3072xf32, #tpu.memory_space<vmem>>, vector<8x128xf32>
    tpu.vector_store %arg18[%c0_121, %c1152], %194 {strides = array<i32>} : memref<16x3072xf32, #tpu.memory_space<vmem>>, vector<8x128xf32>,
    %196 = vector.extract_strided_slice %157 {offsets = [72, 0], sizes = [8, 128], strides = [1, 1]} : vector<192x128xf32> to vector<8x128xf32>
    %c8_122 = arith.constant 8 : index
    %c1152_123 = arith.constant 1152 : index
    %197 = vector.load %arg18[%c8_122, %c1152_123] : memref<16x3072xf32, #tpu.memory_space<vmem>>, vector<8x128xf32>
    tpu.vector_store %arg18[%c8_122, %c1152_123], %196 {strides = array<i32>} : memref<16x3072xf32, #tpu.memory_space<vmem>>, vector<8x128xf32>,
    %198 = vector.extract_strided_slice %156 {offsets = [80, 0], sizes = [8, 128], strides = [1, 1]} : vector<192x128xf32> to vector<8x128xf32>
    %c0_124 = arith.constant 0 : index
    %c1280 = arith.constant 1280 : index
    %199 = vector.load %arg18[%c0_124, %c1280] : memref<16x3072xf32, #tpu.memory_space<vmem>>, vector<8x128xf32>
    tpu.vector_store %arg18[%c0_124, %c1280], %198 {strides = array<i32>} : memref<16x3072xf32, #tpu.memory_space<vmem>>, vector<8x128xf32>,
    %200 = vector.extract_strided_slice %157 {offsets = [80, 0], sizes = [8, 128], strides = [1, 1]} : vector<192x128xf32> to vector<8x128xf32>
    %c8_125 = arith.constant 8 : index
    %c1280_126 = arith.constant 1280 : index
    %201 = vector.load %arg18[%c8_125, %c1280_126] : memref<16x3072xf32, #tpu.memory_space<vmem>>, vector<8x128xf32>
    tpu.vector_store %arg18[%c8_125, %c1280_126], %200 {strides = array<i32>} : memref<16x3072xf32, #tpu.memory_space<vmem>>, vector<8x128xf32>,
    %202 = vector.extract_strided_slice %156 {offsets = [88, 0], sizes = [8, 128], strides = [1, 1]} : vector<192x128xf32> to vector<8x128xf32>
    %c0_127 = arith.constant 0 : index
    %c1408 = arith.constant 1408 : index
    %203 = vector.load %arg18[%c0_127, %c1408] : memref<16x3072xf32, #tpu.memory_space<vmem>>, vector<8x128xf32>
    tpu.vector_store %arg18[%c0_127, %c1408], %202 {strides = array<i32>} : memref<16x3072xf32, #tpu.memory_space<vmem>>, vector<8x128xf32>,
    %204 = vector.extract_strided_slice %157 {offsets = [88, 0], sizes = [8, 128], strides = [1, 1]} : vector<192x128xf32> to vector<8x128xf32>
    %c8_128 = arith.constant 8 : index
    %c1408_129 = arith.constant 1408 : index
    %205 = vector.load %arg18[%c8_128, %c1408_129] : memref<16x3072xf32, #tpu.memory_space<vmem>>, vector<8x128xf32>
    tpu.vector_store %arg18[%c8_128, %c1408_129], %204 {strides = array<i32>} : memref<16x3072xf32, #tpu.memory_space<vmem>>, vector<8x128xf32>,
    %206 = vector.extract_strided_slice %156 {offsets = [96, 0], sizes = [8, 128], strides = [1, 1]} : vector<192x128xf32> to vector<8x128xf32>
    %c0_130 = arith.constant 0 : index
    %c1536 = arith.constant 1536 : index
    %207 = vector.load %arg18[%c0_130, %c1536] : memref<16x3072xf32, #tpu.memory_space<vmem>>, vector<8x128xf32>
    tpu.vector_store %arg18[%c0_130, %c1536], %206 {strides = array<i32>} : memref<16x3072xf32, #tpu.memory_space<vmem>>, vector<8x128xf32>,
    %208 = vector.extract_strided_slice %157 {offsets = [96, 0], sizes = [8, 128], strides = [1, 1]} : vector<192x128xf32> to vector<8x128xf32>
    %c8_131 = arith.constant 8 : index
    %c1536_132 = arith.constant 1536 : index
    %209 = vector.load %arg18[%c8_131, %c1536_132] : memref<16x3072xf32, #tpu.memory_space<vmem>>, vector<8x128xf32>
    tpu.vector_store %arg18[%c8_131, %c1536_132], %208 {strides = array<i32>} : memref<16x3072xf32, #tpu.memory_space<vmem>>, vector<8x128xf32>,
    %210 = vector.extract_strided_slice %156 {offsets = [104, 0], sizes = [8, 128], strides = [1, 1]} : vector<192x128xf32> to vector<8x128xf32>
    %c0_133 = arith.constant 0 : index
    %c1664 = arith.constant 1664 : index
    %211 = vector.load %arg18[%c0_133, %c1664] : memref<16x3072xf32, #tpu.memory_space<vmem>>, vector<8x128xf32>
    tpu.vector_store %arg18[%c0_133, %c1664], %210 {strides = array<i32>} : memref<16x3072xf32, #tpu.memory_space<vmem>>, vector<8x128xf32>,
    %212 = vector.extract_strided_slice %157 {offsets = [104, 0], sizes = [8, 128], strides = [1, 1]} : vector<192x128xf32> to vector<8x128xf32>
    %c8_134 = arith.constant 8 : index
    %c1664_135 = arith.constant 1664 : index
    %213 = vector.load %arg18[%c8_134, %c1664_135] : memref<16x3072xf32, #tpu.memory_space<vmem>>, vector<8x128xf32>
    tpu.vector_store %arg18[%c8_134, %c1664_135], %212 {strides = array<i32>} : memref<16x3072xf32, #tpu.memory_space<vmem>>, vector<8x128xf32>,
    %214 = vector.extract_strided_slice %156 {offsets = [112, 0], sizes = [8, 128], strides = [1, 1]} : vector<192x128xf32> to vector<8x128xf32>
    %c0_136 = arith.constant 0 : index
    %c1792 = arith.constant 1792 : index
    %215 = vector.load %arg18[%c0_136, %c1792] : memref<16x3072xf32, #tpu.memory_space<vmem>>, vector<8x128xf32>
    tpu.vector_store %arg18[%c0_136, %c1792], %214 {strides = array<i32>} : memref<16x3072xf32, #tpu.memory_space<vmem>>, vector<8x128xf32>,
    %216 = vector.extract_strided_slice %157 {offsets = [112, 0], sizes = [8, 128], strides = [1, 1]} : vector<192x128xf32> to vector<8x128xf32>
    %c8_137 = arith.constant 8 : index
    %c1792_138 = arith.constant 1792 : index
    %217 = vector.load %arg18[%c8_137, %c1792_138] : memref<16x3072xf32, #tpu.memory_space<vmem>>, vector<8x128xf32>
    tpu.vector_store %arg18[%c8_137, %c1792_138], %216 {strides = array<i32>} : memref<16x3072xf32, #tpu.memory_space<vmem>>, vector<8x128xf32>,
    %218 = vector.extract_strided_slice %156 {offsets = [120, 0], sizes = [8, 128], strides = [1, 1]} : vector<192x128xf32> to vector<8x128xf32>
    %c0_139 = arith.constant 0 : index
    %c1920 = arith.constant 1920 : index
    %219 = vector.load %arg18[%c0_139, %c1920] : memref<16x3072xf32, #tpu.memory_space<vmem>>, vector<8x128xf32>
    tpu.vector_store %arg18[%c0_139, %c1920], %218 {strides = array<i32>} : memref<16x3072xf32, #tpu.memory_space<vmem>>, vector<8x128xf32>,
    %220 = vector.extract_strided_slice %157 {offsets = [120, 0], sizes = [8, 128], strides = [1, 1]} : vector<192x128xf32> to vector<8x128xf32>
    %c8_140 = arith.constant 8 : index
    %c1920_141 = arith.constant 1920 : index
    %221 = vector.load %arg18[%c8_140, %c1920_141] : memref<16x3072xf32, #tpu.memory_space<vmem>>, vector<8x128xf32>
    tpu.vector_store %arg18[%c8_140, %c1920_141], %220 {strides = array<i32>} : memref<16x3072xf32, #tpu.memory_space<vmem>>, vector<8x128xf32>,
    %222 = vector.extract_strided_slice %156 {offsets = [128, 0], sizes = [8, 128], strides = [1, 1]} : vector<192x128xf32> to vector<8x128xf32>
    %c0_142 = arith.constant 0 : index
    %c2048 = arith.constant 2048 : index
    %223 = vector.load %arg18[%c0_142, %c2048] : memref<16x3072xf32, #tpu.memory_space<vmem>>, vector<8x128xf32>
    tpu.vector_store %arg18[%c0_142, %c2048], %222 {strides = array<i32>} : memref<16x3072xf32, #tpu.memory_space<vmem>>, vector<8x128xf32>,
    %224 = vector.extract_strided_slice %157 {offsets = [128, 0], sizes = [8, 128], strides = [1, 1]} : vector<192x128xf32> to vector<8x128xf32>
    %c8_143 = arith.constant 8 : index
    %c2048_144 = arith.constant 2048 : index
    %225 = vector.load %arg18[%c8_143, %c2048_144] : memref<16x3072xf32, #tpu.memory_space<vmem>>, vector<8x128xf32>
    tpu.vector_store %arg18[%c8_143, %c2048_144], %224 {strides = array<i32>} : memref<16x3072xf32, #tpu.memory_space<vmem>>, vector<8x128xf32>,
    %226 = vector.extract_strided_slice %156 {offsets = [136, 0], sizes = [8, 128], strides = [1, 1]} : vector<192x128xf32> to vector<8x128xf32>
    %c0_145 = arith.constant 0 : index
    %c2176 = arith.constant 2176 : index
    %227 = vector.load %arg18[%c0_145, %c2176] : memref<16x3072xf32, #tpu.memory_space<vmem>>, vector<8x128xf32>
    tpu.vector_store %arg18[%c0_145, %c2176], %226 {strides = array<i32>} : memref<16x3072xf32, #tpu.memory_space<vmem>>, vector<8x128xf32>,
    %228 = vector.extract_strided_slice %157 {offsets = [136, 0], sizes = [8, 128], strides = [1, 1]} : vector<192x128xf32> to vector<8x128xf32>
    %c8_146 = arith.constant 8 : index
    %c2176_147 = arith.constant 2176 : index
    %229 = vector.load %arg18[%c8_146, %c2176_147] : memref<16x3072xf32, #tpu.memory_space<vmem>>, vector<8x128xf32>
    tpu.vector_store %arg18[%c8_146, %c2176_147], %228 {strides = array<i32>} : memref<16x3072xf32, #tpu.memory_space<vmem>>, vector<8x128xf32>,
    %230 = vector.extract_strided_slice %156 {offsets = [144, 0], sizes = [8, 128], strides = [1, 1]} : vector<192x128xf32> to vector<8x128xf32>
    %c0_148 = arith.constant 0 : index
    %c2304 = arith.constant 2304 : index
    %231 = vector.load %arg18[%c0_148, %c2304] : memref<16x3072xf32, #tpu.memory_space<vmem>>, vector<8x128xf32>
    tpu.vector_store %arg18[%c0_148, %c2304], %230 {strides = array<i32>} : memref<16x3072xf32, #tpu.memory_space<vmem>>, vector<8x128xf32>,
    %232 = vector.extract_strided_slice %157 {offsets = [144, 0], sizes = [8, 128], strides = [1, 1]} : vector<192x128xf32> to vector<8x128xf32>
    %c8_149 = arith.constant 8 : index
    %c2304_150 = arith.constant 2304 : index
    %233 = vector.load %arg18[%c8_149, %c2304_150] : memref<16x3072xf32, #tpu.memory_space<vmem>>, vector<8x128xf32>
    tpu.vector_store %arg18[%c8_149, %c2304_150], %232 {strides = array<i32>} : memref<16x3072xf32, #tpu.memory_space<vmem>>, vector<8x128xf32>,
    %234 = vector.extract_strided_slice %156 {offsets = [152, 0], sizes = [8, 128], strides = [1, 1]} : vector<192x128xf32> to vector<8x128xf32>
    %c0_151 = arith.constant 0 : index
    %c2432 = arith.constant 2432 : index
    %235 = vector.load %arg18[%c0_151, %c2432] : memref<16x3072xf32, #tpu.memory_space<vmem>>, vector<8x128xf32>
    tpu.vector_store %arg18[%c0_151, %c2432], %234 {strides = array<i32>} : memref<16x3072xf32, #tpu.memory_space<vmem>>, vector<8x128xf32>,
    %236 = vector.extract_strided_slice %157 {offsets = [152, 0], sizes = [8, 128], strides = [1, 1]} : vector<192x128xf32> to vector<8x128xf32>
    %c8_152 = arith.constant 8 : index
    %c2432_153 = arith.constant 2432 : index
    %237 = vector.load %arg18[%c8_152, %c2432_153] : memref<16x3072xf32, #tpu.memory_space<vmem>>, vector<8x128xf32>
    tpu.vector_store %arg18[%c8_152, %c2432_153], %236 {strides = array<i32>} : memref<16x3072xf32, #tpu.memory_space<vmem>>, vector<8x128xf32>,
    %238 = vector.extract_strided_slice %156 {offsets = [160, 0], sizes = [8, 128], strides = [1, 1]} : vector<192x128xf32> to vector<8x128xf32>
    %c0_154 = arith.constant 0 : index
    %c2560 = arith.constant 2560 : index
    %239 = vector.load %arg18[%c0_154, %c2560] : memref<16x3072xf32, #tpu.memory_space<vmem>>, vector<8x128xf32>
    tpu.vector_store %arg18[%c0_154, %c2560], %238 {strides = array<i32>} : memref<16x3072xf32, #tpu.memory_space<vmem>>, vector<8x128xf32>,
    %240 = vector.extract_strided_slice %157 {offsets = [160, 0], sizes = [8, 128], strides = [1, 1]} : vector<192x128xf32> to vector<8x128xf32>
    %c8_155 = arith.constant 8 : index
    %c2560_156 = arith.constant 2560 : index
    %241 = vector.load %arg18[%c8_155, %c2560_156] : memref<16x3072xf32, #tpu.memory_space<vmem>>, vector<8x128xf32>
    tpu.vector_store %arg18[%c8_155, %c2560_156], %240 {strides = array<i32>} : memref<16x3072xf32, #tpu.memory_space<vmem>>, vector<8x128xf32>,
    %242 = vector.extract_strided_slice %156 {offsets = [168, 0], sizes = [8, 128], strides = [1, 1]} : vector<192x128xf32> to vector<8x128xf32>
    %c0_157 = arith.constant 0 : index
    %c2688 = arith.constant 2688 : index
    %243 = vector.load %arg18[%c0_157, %c2688] : memref<16x3072xf32, #tpu.memory_space<vmem>>, vector<8x128xf32>
    tpu.vector_store %arg18[%c0_157, %c2688], %242 {strides = array<i32>} : memref<16x3072xf32, #tpu.memory_space<vmem>>, vector<8x128xf32>,
    %244 = vector.extract_strided_slice %157 {offsets = [168, 0], sizes = [8, 128], strides = [1, 1]} : vector<192x128xf32> to vector<8x128xf32>
    %c8_158 = arith.constant 8 : index
    %c2688_159 = arith.constant 2688 : index
    %245 = vector.load %arg18[%c8_158, %c2688_159] : memref<16x3072xf32, #tpu.memory_space<vmem>>, vector<8x128xf32>
    tpu.vector_store %arg18[%c8_158, %c2688_159], %244 {strides = array<i32>} : memref<16x3072xf32, #tpu.memory_space<vmem>>, vector<8x128xf32>,
    %246 = vector.extract_strided_slice %156 {offsets = [176, 0], sizes = [8, 128], strides = [1, 1]} : vector<192x128xf32> to vector<8x128xf32>
    %c0_160 = arith.constant 0 : index
    %c2816 = arith.constant 2816 : index
    %247 = vector.load %arg18[%c0_160, %c2816] : memref<16x3072xf32, #tpu.memory_space<vmem>>, vector<8x128xf32>
    tpu.vector_store %arg18[%c0_160, %c2816], %246 {strides = array<i32>} : memref<16x3072xf32, #tpu.memory_space<vmem>>, vector<8x128xf32>,
    %248 = vector.extract_strided_slice %157 {offsets = [176, 0], sizes = [8, 128], strides = [1, 1]} : vector<192x128xf32> to vector<8x128xf32>
    %c8_161 = arith.constant 8 : index
    %c2816_162 = arith.constant 2816 : index
    %249 = vector.load %arg18[%c8_161, %c2816_162] : memref<16x3072xf32, #tpu.memory_space<vmem>>, vector<8x128xf32>
    tpu.vector_store %arg18[%c8_161, %c2816_162], %248 {strides = array<i32>} : memref<16x3072xf32, #tpu.memory_space<vmem>>, vector<8x128xf32>,
    %250 = vector.extract_strided_slice %156 {offsets = [184, 0], sizes = [8, 128], strides = [1, 1]} : vector<192x128xf32> to vector<8x128xf32>
    %c0_163 = arith.constant 0 : index
    %c2944 = arith.constant 2944 : index
    %251 = vector.load %arg18[%c0_163, %c2944] : memref<16x3072xf32, #tpu.memory_space<vmem>>, vector<8x128xf32>
    tpu.vector_store %arg18[%c0_163, %c2944], %250 {strides = array<i32>} : memref<16x3072xf32, #tpu.memory_space<vmem>>, vector<8x128xf32>,
    %252 = vector.extract_strided_slice %157 {offsets = [184, 0], sizes = [8, 128], strides = [1, 1]} : vector<192x128xf32> to vector<8x128xf32>
    %c8_164 = arith.constant 8 : index
    %c2944_165 = arith.constant 2944 : index
    %253 = vector.load %arg18[%c8_164, %c2944_165] : memref<16x3072xf32, #tpu.memory_space<vmem>>, vector<8x128xf32>
    tpu.vector_store %arg18[%c8_164, %c2944_165], %252 {strides = array<i32>} : memref<16x3072xf32, #tpu.memory_space<vmem>>, vector<8x128xf32>,
    %c0_166 = arith.constant 0 : index
    %c0_167 = arith.constant 0 : index
    %254 = vector.load %arg18[%c0_166, %c0_167] : memref<16x3072xf32, #tpu.memory_space<vmem>>, vector<16x3072xf32>
    %c0_168 = arith.constant 0 : index
    %c0_169 = arith.constant 0 : index
    %255 = vector.load %arg12[%c0_168, %c0_169] : memref<3072x12xf32, #tpu.memory_space<vmem>>, vector<3072x12xf32>
    %cst_170 = arith.constant dense<0.000000e+00> : vector<16x12xf32>
    %256 = tpu.matmul %254, %255, %cst_170 {dimension_numbers = #tpu.dot_dimension_numbers<[1], [0], [0], [1], [0, 0, 1, 1], [], []>} : vector<16x3072xf32>, vector<3072x12xf32>, vector<16x12xf32> -> vector<16x12xf32>
    %c0_171 = arith.constant 0 : index
    %c0_172 = arith.constant 0 : index
    %257 = vector.load %arg13[%c0_171, %c0_172] : memref<1x12xf32, #tpu.memory_space<vmem>>, vector<1x6xf32>
    %c0_173 = arith.constant 0 : index
    %c6 = arith.constant 6 : index
    %258 = vector.load %arg13[%c0_173, %c6] : memref<1x12xf32, #tpu.memory_space<vmem>>, vector<1x6xf32>
    %259 = vector.extract_strided_slice %256 {offsets = [0, 0], sizes = [8, 6], strides = [1, 1]} : vector<16x12xf32> to vector<8x6xf32>
    %260 = vector.broadcast %257 : vector<1x6xf32> to vector<8x6xf32>
    %261 = arith.addf %259, %260 : vector<8x6xf32>
    %c0_174 = arith.constant 0 : index
    %c0_175 = arith.constant 0 : index
    %262 = vector.load %arg14[%c0_174, %c0_175] : memref<8x6xf32, #tpu.memory_space<vmem>>, vector<8x6xf32>
    tpu.vector_store %arg14[%c0_174, %c0_175], %261 {strides = array<i32>} : memref<8x6xf32, #tpu.memory_space<vmem>>, vector<8x6xf32>,
    %263 = vector.extract_strided_slice %256 {offsets = [0, 6], sizes = [8, 6], strides = [1, 1]} : vector<16x12xf32> to vector<8x6xf32>
    %264 = vector.extract_strided_slice %256 {offsets = [8, 0], sizes = [8, 6], strides = [1, 1]} : vector<16x12xf32> to vector<8x6xf32>
    %265 = arith.addf %263, %264 : vector<8x6xf32>
    %266 = vector.broadcast %258 : vector<1x6xf32> to vector<8x6xf32>
    %267 = arith.addf %265, %266 : vector<8x6xf32>
    %c0_176 = arith.constant 0 : index
    %c0_177 = arith.constant 0 : index
    %268 = vector.load %arg15[%c0_176, %c0_177] : memref<8x6xf32, #tpu.memory_space<vmem>>, vector<8x6xf32>
    tpu.vector_store %arg15[%c0_176, %c0_177], %267 {strides = array<i32>} : memref<8x6xf32, #tpu.memory_space<vmem>>, vector<8x6xf32>,
    return
  }
  func.func @transform_0(%arg0: i32) -> (i32, i32) {
    %c0_i32 = arith.constant 0 : i32
    %c0_i32_0 = arith.constant 0 : i32
    return %arg0, %c0_i32 : i32, i32
  }
  func.func @transform_1(%arg0: i32) -> (i32, i32) {
    %c0_i32 = arith.constant 0 : i32
    %c0_i32_0 = arith.constant 0 : i32
    return %arg0, %c0_i32 : i32, i32
  }
  func.func @transform_2(%arg0: i32) -> (i32, i32) {
    %c0_i32 = arith.constant 0 : i32
    %c0_i32_0 = arith.constant 0 : i32
    %c0_i32_1 = arith.constant 0 : i32
    return %c0_i32, %c0_i32_0 : i32, i32
  }
  func.func @transform_3(%arg0: i32) -> (i32, i32) {
    %c0_i32 = arith.constant 0 : i32
    %c0_i32_0 = arith.constant 0 : i32
    %c0_i32_1 = arith.constant 0 : i32
    return %c0_i32, %c0_i32_0 : i32, i32
  }
  func.func @transform_4(%arg0: i32) -> (i32, i32) {
    %c0_i32 = arith.constant 0 : i32
    %c0_i32_0 = arith.constant 0 : i32
    %c0_i32_1 = arith.constant 0 : i32
    return %c0_i32, %c0_i32_0 : i32, i32
  }
  func.func @transform_5(%arg0: i32) -> (i32, i32) {
    %c0_i32 = arith.constant 0 : i32
    %c0_i32_0 = arith.constant 0 : i32
    %c0_i32_1 = arith.constant 0 : i32
    return %c0_i32, %c0_i32_0 : i32, i32
  }
  func.func @transform_6(%arg0: i32) -> (i32, i32) {
    %c0_i32 = arith.constant 0 : i32
    %c0_i32_0 = arith.constant 0 : i32
    %c0_i32_1 = arith.constant 0 : i32
    return %c0_i32, %c0_i32_0 : i32, i32
  }
  func.func @transform_7(%arg0: i32) -> (i32, i32) {
    %c0_i32 = arith.constant 0 : i32
    %c0_i32_0 = arith.constant 0 : i32
    %c0_i32_1 = arith.constant 0 : i32
    return %c0_i32, %c0_i32_0 : i32, i32
  }
  func.func @transform_8(%arg0: i32) -> (i32, i32) {
    %c0_i32 = arith.constant 0 : i32
    %c0_i32_0 = arith.constant 0 : i32
    %c0_i32_1 = arith.constant 0 : i32
    return %c0_i32, %c0_i32_0 : i32, i32
  }
  func.func @transform_9(%arg0: i32) -> (i32, i32) {
    %c0_i32 = arith.constant 0 : i32
    %c0_i32_0 = arith.constant 0 : i32
    %c0_i32_1 = arith.constant 0 : i32
    return %c0_i32, %c0_i32_0 : i32, i32
  }
  func.func @transform_10(%arg0: i32) -> (i32, i32) {
    %c0_i32 = arith.constant 0 : i32
    %c0_i32_0 = arith.constant 0 : i32
    %c0_i32_1 = arith.constant 0 : i32
    return %c0_i32, %c0_i32_0 : i32, i32
  }
  func.func @transform_11(%arg0: i32) -> (i32, i32) {
    %c0_i32 = arith.constant 0 : i32
    %c0_i32_0 = arith.constant 0 : i32
    %c0_i32_1 = arith.constant 0 : i32
    return %c0_i32, %c0_i32_0 : i32, i32
  }
  func.func @transform_12(%arg0: i32) -> (i32, i32) {
    %c0_i32 = arith.constant 0 : i32
    %c0_i32_0 = arith.constant 0 : i32
    %c0_i32_1 = arith.constant 0 : i32
    return %c0_i32, %c0_i32_0 : i32, i32
  }
  func.func @transform_13(%arg0: i32) -> (i32, i32) {
    %c0_i32 = arith.constant 0 : i32
    %c0_i32_0 = arith.constant 0 : i32
    return %arg0, %c0_i32 : i32, i32
  }
  func.func @transform_14(%arg0: i32) -> (i32, i32) {
    %c0_i32 = arith.constant 0 : i32
    %c0_i32_0 = arith.constant 0 : i32
    return %arg0, %c0_i32 : i32, i32
  }
}

</mosaic_0001>

<llo_original>
// kernel: net_wisdm_tmc_forward.1
$region0: #{net_wisdm_tmc_forward.1}
  #allocation0 [shape = 'u32[]', space=smem, size = 0x4, offset = 0x4, fixed_abs, tag = 'smem constant byte address 0x4 - core index']
  #allocation1 [shape = 'u32[144,128]{1,0:T(1,128)}', space=vmem, size = 0x12000, scoped, tag = 'internal scratch']
  #allocation2 [shape = 'f32[224,64]{1,0:T(8,128)}', space=vmem, size = 0x1c000, scoped, tag = 'scratch operand']
  #allocation3 [shape = 'f32[192,320]{1,0:T(8,128)}', space=vmem, size = 0x48000, scoped, tag = 'scratch operand']
  #allocation4 [shape = 'f32[16,3072]{1,0:T(8,128)}', space=vmem, size = 0x30000, scoped, tag = 'scratch operand']
  %s0 = inlined_call_operand.vmem [shape: f32[224,1], index: 0, kind: input, shape index: {}]
  %s1 = inlined_call_operand.vmem [shape: f32[224,1], index: 1, kind: input, shape index: {}]
  %s2 = inlined_call_operand.vmem [shape: f32[5,64], index: 2, kind: input, shape index: {}]
  %s3 = inlined_call_operand.vmem [shape: f32[4,64], index: 3, kind: input, shape index: {}]
  %s4 = inlined_call_operand.vmem [shape: f32[1,64], index: 4, kind: input, shape index: {}]
  %s5 = inlined_call_operand.vmem [shape: f32[1,64], index: 5, kind: input, shape index: {}]
  %s6 = inlined_call_operand.vmem [shape: f32[320,256], index: 6, kind: input, shape index: {}]
  %s7 = inlined_call_operand.vmem [shape: f32[1,128], index: 7, kind: input, shape index: {}]
  %s8 = inlined_call_operand.vmem [shape: f32[1,128], index: 8, kind: input, shape index: {}]
  %s9 = inlined_call_operand.vmem [shape: f32[1,128], index: 9, kind: input, shape index: {}]
  %s10 = inlined_call_operand.vmem [shape: f32[1,128], index: 10, kind: input, shape index: {}]
  %s11 = inlined_call_operand.vmem [shape: f32[3072,12], index: 11, kind: input, shape index: {}]
  %s12 = inlined_call_operand.vmem [shape: f32[1,12], index: 12, kind: input, shape index: {}]
  %s13 = inlined_call_operand.vmem [shape: f32[8,6], index: 13, kind: output, shape index: {0}]
  %s14 = inlined_call_operand.vmem [shape: f32[8,6], index: 14, kind: output, shape index: {1}]
  %15 = xla_tuple %s13, %s14
  %s16 = sld [smem:[#allocation0]]
  $region70: #{net_wisdm_tmc_forward.1} parent=0
    _
  %s18 = ssub.s32 1, %s16
  %s19 = scalar_select 0, %s18, %s16
  // Predicated region
  $region2: #{net_wisdm_tmc_forward.1} parent=0 // pred_check
    _
  $region3: #{net_wisdm_tmc_forward.1} parent=0 // pred_check_branch
    %21 = sbr.rel (0) target = $region5
  $region4: #{net_wisdm_tmc_forward.1} parent=0 // pred_region
    _
  $region5: #{net_wisdm_tmc_forward.1} parent=0 // pred_fallthru
    _
  // Predicated region
  $region6: #{net_wisdm_tmc_forward.1} parent=0 // pred_check
    _
  $region7: #{net_wisdm_tmc_forward.1} parent=0 // pred_check_branch
    %23 = sbr.rel (0) target = $region9
  $region8: #{net_wisdm_tmc_forward.1} parent=0 // pred_region
    _
  $region9: #{net_wisdm_tmc_forward.1} parent=0 // pred_fallthru
    _
  // Predicated region
  $region10: #{net_wisdm_tmc_forward.1} parent=0 // pred_check
    _
  $region11: #{net_wisdm_tmc_forward.1} parent=0 // pred_check_branch
    %25 = sbr.rel (0) target = $region13
  $region12: #{net_wisdm_tmc_forward.1} parent=0 // pred_region
    _
  $region13: #{net_wisdm_tmc_forward.1} parent=0 // pred_fallthru
    _
  // Predicated region
  $region14: #{net_wisdm_tmc_forward.1} parent=0 // pred_check
    _
  $region15: #{net_wisdm_tmc_forward.1} parent=0 // pred_check_branch
    %27 = sbr.rel (0) target = $region17
  $region16: #{net_wisdm_tmc_forward.1} parent=0 // pred_region
    _
  $region17: #{net_wisdm_tmc_forward.1} parent=0 // pred_fallthru
    _
  // Predicated region
  $region18: #{net_wisdm_tmc_forward.1} parent=0 // pred_check
    _
  $region19: #{net_wisdm_tmc_forward.1} parent=0 // pred_check_branch
    %29 = sbr.rel (0) target = $region21
  $region20: #{net_wisdm_tmc_forward.1} parent=0 // pred_region
    _
  $region21: #{net_wisdm_tmc_forward.1} parent=0 // pred_fallthru
    _
  // Predicated region
  $region22: #{net_wisdm_tmc_forward.1} parent=0 // pred_check
    _
  $region23: #{net_wisdm_tmc_forward.1} parent=0 // pred_check_branch
    %31 = sbr.rel (0) target = $region25
  $region24: #{net_wisdm_tmc_forward.1} parent=0 // pred_region
    _
  $region25: #{net_wisdm_tmc_forward.1} parent=0 // pred_fallthru
    _
  // Predicated region
  $region26: #{net_wisdm_tmc_forward.1} parent=0 // pred_check
    _
  $region27: #{net_wisdm_tmc_forward.1} parent=0 // pred_check_branch
    %33 = sbr.rel (0) target = $region29
  $region28: #{net_wisdm_tmc_forward.1} parent=0 // pred_region
    _
  $region29: #{net_wisdm_tmc_forward.1} parent=0 // pred_fallthru
    _
  // Predicated region
  $region30: #{net_wisdm_tmc_forward.1} parent=0 // pred_check
    _
  $region31: #{net_wisdm_tmc_forward.1} parent=0 // pred_check_branch
    %35 = sbr.rel (0) target = $region33
  $region32: #{net_wisdm_tmc_forward.1} parent=0 // pred_region
    _
  $region33: #{net_wisdm_tmc_forward.1} parent=0 // pred_fallthru
    _
  // Predicated region
  $region34: #{net_wisdm_tmc_forward.1} parent=0 // pred_check
    _
  $region35: #{net_wisdm_tmc_forward.1} parent=0 // pred_check_branch
    %37 = sbr.rel (0) target = $region37
  $region36: #{net_wisdm_tmc_forward.1} parent=0 // pred_region
    _
  $region37: #{net_wisdm_tmc_forward.1} parent=0 // pred_fallthru
    _
  // Predicated region
  $region38: #{net_wisdm_tmc_forward.1} parent=0 // pred_check
    _
  $region39: #{net_wisdm_tmc_forward.1} parent=0 // pred_check_branch
    %39 = sbr.rel (0) target = $region41
  $region40: #{net_wisdm_tmc_forward.1} parent=0 // pred_region
    _
  $region41: #{net_wisdm_tmc_forward.1} parent=0 // pred_fallthru
    _
  // Predicated region
  $region42: #{net_wisdm_tmc_forward.1} parent=0 // pred_check
    _
  $region43: #{net_wisdm_tmc_forward.1} parent=0 // pred_check_branch
    %41 = sbr.rel (0) target = $region45
  $region44: #{net_wisdm_tmc_forward.1} parent=0 // pred_region
    _
  $region45: #{net_wisdm_tmc_forward.1} parent=0 // pred_fallthru
    _
  // Predicated region
  $region46: #{net_wisdm_tmc_forward.1} parent=0 // pred_check
    _
  $region47: #{net_wisdm_tmc_forward.1} parent=0 // pred_check_branch
    %43 = sbr.rel (0) target = $region49
  $region48: #{net_wisdm_tmc_forward.1} parent=0 // pred_region
    _
  $region49: #{net_wisdm_tmc_forward.1} parent=0 // pred_fallthru
    _
  // Predicated region
  $region50: #{net_wisdm_tmc_forward.1} parent=0 // pred_check
    _
  $region51: #{net_wisdm_tmc_forward.1} parent=0 // pred_check_branch
    %45 = sbr.rel (0) target = $region53
  $region52: #{net_wisdm_tmc_forward.1} parent=0 // pred_region
    _
  $region53: #{net_wisdm_tmc_forward.1} parent=0 // pred_fallthru
    _
  %v46 = vld [vmem:[%s2] sm:$0x1]
  %v47 = vld [vmem:[%s0] sm:$0xff]
  %v48 = vld [vmem:[%s0 + $0x8] sm:$0xff]
  %v49 = vld [vmem:[%s0 + $0x10] sm:$0xff]
  %v50 = vld [vmem:[%s0 + $0x18] sm:$0xff]
  %v51 = vld [vmem:[%s0 + $0x20] sm:$0xff]
  %v52 = vld [vmem:[%s0 + $0x28] sm:$0xff]
  %v53 = vld [vmem:[%s0 + $0x30] sm:$0xff]
  %v54 = vld [vmem:[%s0 + $0x38] sm:$0xff]
  %v55 = vld [vmem:[%s0 + $0x40] sm:$0xff]
  %v56 = vld [vmem:[%s0 + $0x48] sm:$0xff]
  %v57 = vld [vmem:[%s0 + $0x50] sm:$0xff]
  %v58 = vld [vmem:[%s0 + $0x58] sm:$0xff]
  %v59 = vld [vmem:[%s0 + $0x60] sm:$0xff]
  %v60 = vld [vmem:[%s0 + $0x68] sm:$0xff]
  %v61 = vld [vmem:[%s0 + $0x70] sm:$0xff]
  %v62 = vld [vmem:[%s0 + $0x78] sm:$0xff]
  %v63 = vld [vmem:[%s0 + $0x80] sm:$0xff]
  %v64 = vld [vmem:[%s0 + $0x88] sm:$0xff]
  %v65 = vld [vmem:[%s0 + $0x90] sm:$0xff]
  %v66 = vld [vmem:[%s0 + $0x98] sm:$0xff]
  %v67 = vld [vmem:[%s0 + $0xa0] sm:$0xff]
  %v68 = vld [vmem:[%s0 + $0xa8] sm:$0xff]
  %v69 = vld [vmem:[%s0 + $0xb0] sm:$0xff]
  %v70 = vld [vmem:[%s0 + $0xb8] sm:$0xff]
  %72 = vset.pattern.permute.xlu0 0
  %73 = vperm.xlu0 %72, %v47
  %v74 = vpop.permute.xlu0 %73
  %77 = vset.pattern.permute.xlu0 0
  %78 = vperm.xlu0 %77, %v48
  %v79 = vpop.permute.xlu0 %78
  %82 = vset.pattern.permute.xlu0 0
  %83 = vperm.xlu0 %82, %v49
  %v84 = vpop.permute.xlu0 %83
  %87 = vset.pattern.permute.xlu0 0
  %88 = vperm.xlu0 %87, %v50
  %v89 = vpop.permute.xlu0 %88
  %92 = vset.pattern.permute.xlu0 0
  %93 = vperm.xlu0 %92, %v51
  %v94 = vpop.permute.xlu0 %93
  %97 = vset.pattern.permute.xlu0 0
  %98 = vperm.xlu0 %97, %v52
  %v99 = vpop.permute.xlu0 %98
  %102 = vset.pattern.permute.xlu0 0
  %103 = vperm.xlu0 %102, %v53
  %v104 = vpop.permute.xlu0 %103
  %107 = vset.pattern.permute.xlu0 0
  %108 = vperm.xlu0 %107, %v54
  %v109 = vpop.permute.xlu0 %108
  %112 = vset.pattern.permute.xlu0 0
  %113 = vperm.xlu0 %112, %v55
  %v114 = vpop.permute.xlu0 %113
  %117 = vset.pattern.permute.xlu0 0
  %118 = vperm.xlu0 %117, %v56
  %v119 = vpop.permute.xlu0 %118
  %122 = vset.pattern.permute.xlu0 0
  %123 = vperm.xlu0 %122, %v57
  %v124 = vpop.permute.xlu0 %123
  %127 = vset.pattern.permute.xlu0 0
  %128 = vperm.xlu0 %127, %v58
  %v129 = vpop.permute.xlu0 %128
  %132 = vset.pattern.permute.xlu0 0
  %133 = vperm.xlu0 %132, %v59
  %v134 = vpop.permute.xlu0 %133
  %137 = vset.pattern.permute.xlu0 0
  %138 = vperm.xlu0 %137, %v60
  %v139 = vpop.permute.xlu0 %138
  %142 = vset.pattern.permute.xlu0 0
  %143 = vperm.xlu0 %142, %v61
  %v144 = vpop.permute.xlu0 %143
  %147 = vset.pattern.permute.xlu0 0
  %148 = vperm.xlu0 %147, %v62
  %v149 = vpop.permute.xlu0 %148
  %152 = vset.pattern.permute.xlu0 0
  %153 = vperm.xlu0 %152, %v63
  %v154 = vpop.permute.xlu0 %153
  %157 = vset.pattern.permute.xlu0 0
  %158 = vperm.xlu0 %157, %v64
  %v159 = vpop.permute.xlu0 %158
  %162 = vset.pattern.permute.xlu0 0
  %163 = vperm.xlu0 %162, %v65
  %v164 = vpop.permute.xlu0 %163
  %167 = vset.pattern.permute.xlu0 0
  %168 = vperm.xlu0 %167, %v66
  %v169 = vpop.permute.xlu0 %168
  %172 = vset.pattern.permute.xlu0 0
  %173 = vperm.xlu0 %172, %v67
  %v174 = vpop.permute.xlu0 %173
  %177 = vset.pattern.permute.xlu0 0
  %178 = vperm.xlu0 %177, %v68
  %v179 = vpop.permute.xlu0 %178
  %182 = vset.pattern.permute.xlu0 0
  %183 = vperm.xlu0 %182, %v69
  %v184 = vpop.permute.xlu0 %183
  %187 = vset.pattern.permute.xlu0 0
  %188 = vperm.xlu0 %187, %v70
  %v189 = vpop.permute.xlu0 %188
  %v191 = vlaneseq
  %v192 = vshrl.u32 %v191, 7
  %v193 = vsub.s32 0, %v192
  %v194 = vrot.slane %v46, %v193
  %v195 = vmul.f32 %v74, %v194
  %v196 = vmul.f32 %v79, %v194
  %v197 = vmul.f32 %v84, %v194
  %v198 = vmul.f32 %v89, %v194
  %v199 = vmul.f32 %v94, %v194
  %v200 = vmul.f32 %v99, %v194
  %v201 = vmul.f32 %v104, %v194
  %v202 = vmul.f32 %v109, %v194
  %v203 = vmul.f32 %v114, %v194
  %v204 = vmul.f32 %v119, %v194
  %v205 = vmul.f32 %v124, %v194
  %v206 = vmul.f32 %v129, %v194
  %v207 = vmul.f32 %v134, %v194
  %v208 = vmul.f32 %v139, %v194
  %v209 = vmul.f32 %v144, %v194
  %v210 = vmul.f32 %v149, %v194
  %v211 = vmul.f32 %v154, %v194
  %v212 = vmul.f32 %v159, %v194
  %v213 = vmul.f32 %v164, %v194
  %v214 = vmul.f32 %v169, %v194
  %v215 = vmul.f32 %v174, %v194
  %v216 = vmul.f32 %v179, %v194
  %v217 = vmul.f32 %v184, %v194
  %v218 = vmul.f32 %v189, %v194
  %v219 = vadd.f32 %v195, 0.0
  %v220 = vadd.f32 %v196, 0.0
  %v221 = vadd.f32 %v197, 0.0
  %v222 = vadd.f32 %v198, 0.0
  %v223 = vadd.f32 %v199, 0.0
  %v224 = vadd.f32 %v200, 0.0
  %v225 = vadd.f32 %v201, 0.0
  %v226 = vadd.f32 %v202, 0.0
  %v227 = vadd.f32 %v203, 0.0
  %v228 = vadd.f32 %v204, 0.0
  %v229 = vadd.f32 %v205, 0.0
  %v230 = vadd.f32 %v206, 0.0
  %v231 = vadd.f32 %v207, 0.0
  %v232 = vadd.f32 %v208, 0.0
  %v233 = vadd.f32 %v209, 0.0
  %v234 = vadd.f32 %v210, 0.0
  %v235 = vadd.f32 %v211, 0.0
  %v236 = vadd.f32 %v212, 0.0
  %v237 = vadd.f32 %v213, 0.0
  %v238 = vadd.f32 %v214, 0.0
  %v239 = vadd.f32 %v215, 0.0
  %v240 = vadd.f32 %v216, 0.0
  %v241 = vadd.f32 %v217, 0.0
  %v242 = vadd.f32 %v218, 0.0
  %v243 = vld [vmem:[%s1] sm:$0xff]
  %v244 = vld [vmem:[%s1 + $0x8] sm:$0xff]
  %v245 = vld [vmem:[%s1 + $0x10] sm:$0xff]
  %v246 = vld [vmem:[%s1 + $0x18] sm:$0xff]
  %v247 = vld [vmem:[%s1 + $0x20] sm:$0xff]
  %v248 = vld [vmem:[%s1 + $0x28] sm:$0xff]
  %v249 = vld [vmem:[%s1 + $0x30] sm:$0xff]
  %v250 = vld [vmem:[%s1 + $0x38] sm:$0xff]
  %v251 = vld [vmem:[%s1 + $0x40] sm:$0xff]
  %v252 = vld [vmem:[%s1 + $0x48] sm:$0xff]
  %v253 = vld [vmem:[%s1 + $0x50] sm:$0xff]
  %v254 = vld [vmem:[%s1 + $0x58] sm:$0xff]
  %v255 = vld [vmem:[%s1 + $0x60] sm:$0xff]
  %v256 = vld [vmem:[%s1 + $0x68] sm:$0xff]
  %v257 = vld [vmem:[%s1 + $0x70] sm:$0xff]
  %v258 = vld [vmem:[%s1 + $0x78] sm:$0xff]
  %v259 = vld [vmem:[%s1 + $0x80] sm:$0xff]
  %v260 = vld [vmem:[%s1 + $0x88] sm:$0xff]
  %v261 = vld [vmem:[%s1 + $0x90] sm:$0xff]
  %v262 = vld [vmem:[%s1 + $0x98] sm:$0xff]
  %v263 = vld [vmem:[%s1 + $0xa0] sm:$0xff]
  %v264 = vld [vmem:[%s1 + $0xa8] sm:$0xff]
  %v265 = vld [vmem:[%s1 + $0xb0] sm:$0xff]
  %v266 = vld [vmem:[%s1 + $0xb8] sm:$0xff]
  %268 = vset.pattern.permute.xlu0 0
  %269 = vperm.xlu0 %268, %v243
  %v270 = vpop.permute.xlu0 %269
  %273 = vset.pattern.permute.xlu0 0
  %274 = vperm.xlu0 %273, %v244
  %v275 = vpop.permute.xlu0 %274
  %278 = vset.pattern.permute.xlu0 0
  %279 = vperm.xlu0 %278, %v245
  %v280 = vpop.permute.xlu0 %279
  %283 = vset.pattern.permute.xlu0 0
  %284 = vperm.xlu0 %283, %v246
  %v285 = vpop.permute.xlu0 %284
  %288 = vset.pattern.permute.xlu0 0
  %289 = vperm.xlu0 %288, %v247
  %v290 = vpop.permute.xlu0 %289
  %293 = vset.pattern.permute.xlu0 0
  %294 = vperm.xlu0 %293, %v248
  %v295 = vpop.permute.xlu0 %294
  %298 = vset.pattern.permute.xlu0 0
  %299 = vperm.xlu0 %298, %v249
  %v300 = vpop.permute.xlu0 %299
  %303 = vset.pattern.permute.xlu0 0
  %304 = vperm.xlu0 %303, %v250
  %v305 = vpop.permute.xlu0 %304
  %308 = vset.pattern.permute.xlu0 0
  %309 = vperm.xlu0 %308, %v251
  %v310 = vpop.permute.xlu0 %309
  %313 = vset.pattern.permute.xlu0 0
  %314 = vperm.xlu0 %313, %v252
  %v315 = vpop.permute.xlu0 %314
  %318 = vset.pattern.permute.xlu0 0
  %319 = vperm.xlu0 %318, %v253
  %v320 = vpop.permute.xlu0 %319
  %323 = vset.pattern.permute.xlu0 0
  %324 = vperm.xlu0 %323, %v254
  %v325 = vpop.permute.xlu0 %324
  %328 = vset.pattern.permute.xlu0 0
  %329 = vperm.xlu0 %328, %v255
  %v330 = vpop.permute.xlu0 %329
  %333 = vset.pattern.permute.xlu0 0
  %334 = vperm.xlu0 %333, %v256
  %v335 = vpop.permute.xlu0 %334
  %338 = vset.pattern.permute.xlu0 0
  %339 = vperm.xlu0 %338, %v257
  %v340 = vpop.permute.xlu0 %339
  %343 = vset.pattern.permute.xlu0 0
  %344 = vperm.xlu0 %343, %v258
  %v345 = vpop.permute.xlu0 %344
  %348 = vset.pattern.permute.xlu0 0
  %349 = vperm.xlu0 %348, %v259
  %v350 = vpop.permute.xlu0 %349
  %353 = vset.pattern.permute.xlu0 0
  %354 = vperm.xlu0 %353, %v260
  %v355 = vpop.permute.xlu0 %354
  %358 = vset.pattern.permute.xlu0 0
  %359 = vperm.xlu0 %358, %v261
  %v360 = vpop.permute.xlu0 %359
  %363 = vset.pattern.permute.xlu0 0
  %364 = vperm.xlu0 %363, %v262
  %v365 = vpop.permute.xlu0 %364
  %368 = vset.pattern.permute.xlu0 0
  %369 = vperm.xlu0 %368, %v263
  %v370 = vpop.permute.xlu0 %369
  %373 = vset.pattern.permute.xlu0 0
  %374 = vperm.xlu0 %373, %v264
  %v375 = vpop.permute.xlu0 %374
  %378 = vset.pattern.permute.xlu0 0
  %379 = vperm.xlu0 %378, %v265
  %v380 = vpop.permute.xlu0 %379
  %383 = vset.pattern.permute.xlu0 0
  %384 = vperm.xlu0 %383, %v266
  %v385 = vpop.permute.xlu0 %384
  %v387 = vmul.f32 %v270, %v194
  %v388 = vmul.f32 %v275, %v194
  %v389 = vmul.f32 %v280, %v194
  %v390 = vmul.f32 %v285, %v194
  %v391 = vmul.f32 %v290, %v194
  %v392 = vmul.f32 %v295, %v194
  %v393 = vmul.f32 %v300, %v194
  %v394 = vmul.f32 %v305, %v194
  %v395 = vmul.f32 %v310, %v194
  %v396 = vmul.f32 %v315, %v194
  %v397 = vmul.f32 %v320, %v194
  %v398 = vmul.f32 %v325, %v194
  %v399 = vmul.f32 %v330, %v194
  %v400 = vmul.f32 %v335, %v194
  %v401 = vmul.f32 %v340, %v194
  %v402 = vmul.f32 %v345, %v194
  %v403 = vmul.f32 %v350, %v194
  %v404 = vmul.f32 %v355, %v194
  %v405 = vmul.f32 %v360, %v194
  %v406 = vmul.f32 %v365, %v194
  %v407 = vmul.f32 %v370, %v194
  %v408 = vmul.f32 %v375, %v194
  %v409 = vmul.f32 %v380, %v194
  %v410 = vmul.f32 %v385, %v194
  %v411 = vadd.f32 %v387, 0.0
  %v412 = vadd.f32 %v388, 0.0
  %v413 = vadd.f32 %v389, 0.0
  %v414 = vadd.f32 %v390, 0.0
  %v415 = vadd.f32 %v391, 0.0
  %v416 = vadd.f32 %v392, 0.0
  %v417 = vadd.f32 %v393, 0.0
  %v418 = vadd.f32 %v394, 0.0
  %v419 = vadd.f32 %v395, 0.0
  %v420 = vadd.f32 %v396, 0.0
  %v421 = vadd.f32 %v397, 0.0
  %v422 = vadd.f32 %v398, 0.0
  %v423 = vadd.f32 %v399, 0.0
  %v424 = vadd.f32 %v400, 0.0
  %v425 = vadd.f32 %v401, 0.0
  %v426 = vadd.f32 %v402, 0.0
  %v427 = vadd.f32 %v403, 0.0
  %v428 = vadd.f32 %v404, 0.0
  %v429 = vadd.f32 %v405, 0.0
  %v430 = vadd.f32 %v406, 0.0
  %v431 = vadd.f32 %v407, 0.0
  %v432 = vadd.f32 %v408, 0.0
  %v433 = vadd.f32 %v409, 0.0
  %v434 = vadd.f32 %v410, 0.0
  %v435 = vld [vmem:[%s2 + $0x1] sm:$0x1]
  %v436 = vld [vmem:[%s0 + $0x8] sm:$0xff]
  %v437 = vld [vmem:[%s0 + $0x10] sm:$0xff]
  %v438 = vld [vmem:[%s0 + $0x18] sm:$0xff]
  %v439 = vld [vmem:[%s0 + $0x20] sm:$0xff]
  %v440 = vld [vmem:[%s0 + $0x28] sm:$0xff]
  %v441 = vld [vmem:[%s0 + $0x30] sm:$0xff]
  %v442 = vld [vmem:[%s0 + $0x38] sm:$0xff]
  %v443 = vld [vmem:[%s0 + $0x40] sm:$0xff]
  %v444 = vld [vmem:[%s0 + $0x48] sm:$0xff]
  %v445 = vld [vmem:[%s0 + $0x50] sm:$0xff]
  %v446 = vld [vmem:[%s0 + $0x58] sm:$0xff]
  %v447 = vld [vmem:[%s0 + $0x60] sm:$0xff]
  %v448 = vld [vmem:[%s0 + $0x68] sm:$0xff]
  %v449 = vld [vmem:[%s0 + $0x70] sm:$0xff]
  %v450 = vld [vmem:[%s0 + $0x78] sm:$0xff]
  %v451 = vld [vmem:[%s0 + $0x80] sm:$0xff]
  %v452 = vld [vmem:[%s0 + $0x88] sm:$0xff]
  %v453 = vld [vmem:[%s0 + $0x90] sm:$0xff]
  %v454 = vld [vmem:[%s0 + $0x98] sm:$0xff]
  %v455 = vld [vmem:[%s0 + $0xa0] sm:$0xff]
  %v456 = vld [vmem:[%s0 + $0xa8] sm:$0xff]
  %v457 = vld [vmem:[%s0 + $0xb0] sm:$0xff]
  %v458 = vld [vmem:[%s0 + $0xb8] sm:$0xff]
  %v459 = vld [vmem:[%s0 + $0xc0] sm:$0xff]
  %461 = vset.pattern.permute.xlu0 0
  %462 = vperm.xlu0 %461, %v436
  %v463 = vpop.permute.xlu0 %462
  %466 = vset.pattern.permute.xlu0 0
  %467 = vperm.xlu0 %466, %v437
  %v468 = vpop.permute.xlu0 %467
  %471 = vset.pattern.permute.xlu0 0
  %472 = vperm.xlu0 %471, %v438
  %v473 = vpop.permute.xlu0 %472
  %476 = vset.pattern.permute.xlu0 0
  %477 = vperm.xlu0 %476, %v439
  %v478 = vpop.permute.xlu0 %477
  %481 = vset.pattern.permute.xlu0 0
  %482 = vperm.xlu0 %481, %v440
  %v483 = vpop.permute.xlu0 %482
  %486 = vset.pattern.permute.xlu0 0
  %487 = vperm.xlu0 %486, %v441
  %v488 = vpop.permute.xlu0 %487
  %491 = vset.pattern.permute.xlu0 0
  %492 = vperm.xlu0 %491, %v442
  %v493 = vpop.permute.xlu0 %492
  %496 = vset.pattern.permute.xlu0 0
  %497 = vperm.xlu0 %496, %v443
  %v498 = vpop.permute.xlu0 %497
  %501 = vset.pattern.permute.xlu0 0
  %502 = vperm.xlu0 %501, %v444
  %v503 = vpop.permute.xlu0 %502
  %506 = vset.pattern.permute.xlu0 0
  %507 = vperm.xlu0 %506, %v445
  %v508 = vpop.permute.xlu0 %507
  %511 = vset.pattern.permute.xlu0 0
  %512 = vperm.xlu0 %511, %v446
  %v513 = vpop.permute.xlu0 %512
  %516 = vset.pattern.permute.xlu0 0
  %517 = vperm.xlu0 %516, %v447
  %v518 = vpop.permute.xlu0 %517
  %521 = vset.pattern.permute.xlu0 0
  %522 = vperm.xlu0 %521, %v448
  %v523 = vpop.permute.xlu0 %522
  %526 = vset.pattern.permute.xlu0 0
  %527 = vperm.xlu0 %526, %v449
  %v528 = vpop.permute.xlu0 %527
  %531 = vset.pattern.permute.xlu0 0
  %532 = vperm.xlu0 %531, %v450
  %v533 = vpop.permute.xlu0 %532
  %536 = vset.pattern.permute.xlu0 0
  %537 = vperm.xlu0 %536, %v451
  %v538 = vpop.permute.xlu0 %537
  %541 = vset.pattern.permute.xlu0 0
  %542 = vperm.xlu0 %541, %v452
  %v543 = vpop.permute.xlu0 %542
  %546 = vset.pattern.permute.xlu0 0
  %547 = vperm.xlu0 %546, %v453
  %v548 = vpop.permute.xlu0 %547
  %551 = vset.pattern.permute.xlu0 0
  %552 = vperm.xlu0 %551, %v454
  %v553 = vpop.permute.xlu0 %552
  %556 = vset.pattern.permute.xlu0 0
  %557 = vperm.xlu0 %556, %v455
  %v558 = vpop.permute.xlu0 %557
  %561 = vset.pattern.permute.xlu0 0
  %562 = vperm.xlu0 %561, %v456
  %v563 = vpop.permute.xlu0 %562
  %566 = vset.pattern.permute.xlu0 0
  %567 = vperm.xlu0 %566, %v457
  %v568 = vpop.permute.xlu0 %567
  %571 = vset.pattern.permute.xlu0 0
  %572 = vperm.xlu0 %571, %v458
  %v573 = vpop.permute.xlu0 %572
  %576 = vset.pattern.permute.xlu0 0
  %577 = vperm.xlu0 %576, %v459
  %v578 = vpop.permute.xlu0 %577
  %v580 = vlaneseq
  %v581 = vshrl.u32 %v580, 7
  %v582 = vsub.s32 0, %v581
  %v583 = vrot.slane %v435, %v582
  %v584 = vmul.f32 %v463, %v583
  %v585 = vmul.f32 %v468, %v583
  %v586 = vmul.f32 %v473, %v583
  %v587 = vmul.f32 %v478, %v583
  %v588 = vmul.f32 %v483, %v583
  %v589 = vmul.f32 %v488, %v583
  %v590 = vmul.f32 %v493, %v583
  %v591 = vmul.f32 %v498, %v583
  %v592 = vmul.f32 %v503, %v583
  %v593 = vmul.f32 %v508, %v583
  %v594 = vmul.f32 %v513, %v583
  %v595 = vmul.f32 %v518, %v583
  %v596 = vmul.f32 %v523, %v583
  %v597 = vmul.f32 %v528, %v583
  %v598 = vmul.f32 %v533, %v583
  %v599 = vmul.f32 %v538, %v583
  %v600 = vmul.f32 %v543, %v583
  %v601 = vmul.f32 %v548, %v583
  %v602 = vmul.f32 %v553, %v583
  %v603 = vmul.f32 %v558, %v583
  %v604 = vmul.f32 %v563, %v583
  %v605 = vmul.f32 %v568, %v583
  %v606 = vmul.f32 %v573, %v583
  %v607 = vmul.f32 %v578, %v583
  %v608 = vadd.f32 %v219, %v584
  %v609 = vadd.f32 %v220, %v585
  %v610 = vadd.f32 %v221, %v586
  %v611 = vadd.f32 %v222, %v587
  %v612 = vadd.f32 %v223, %v588
  %v613 = vadd.f32 %v224, %v589
  %v614 = vadd.f32 %v225, %v590
  %v615 = vadd.f32 %v226, %v591
  %v616 = vadd.f32 %v227, %v592
  %v617 = vadd.f32 %v228, %v593
  %v618 = vadd.f32 %v229, %v594
  %v619 = vadd.f32 %v230, %v595
  %v620 = vadd.f32 %v231, %v596
  %v621 = vadd.f32 %v232, %v597
  %v622 = vadd.f32 %v233, %v598
  %v623 = vadd.f32 %v234, %v599
  %v624 = vadd.f32 %v235, %v600
  %v625 = vadd.f32 %v236, %v601
  %v626 = vadd.f32 %v237, %v602
  %v627 = vadd.f32 %v238, %v603
  %v628 = vadd.f32 %v239, %v604
  %v629 = vadd.f32 %v240, %v605
  %v630 = vadd.f32 %v241, %v606
  %v631 = vadd.f32 %v242, %v607
  %v632 = vld [vmem:[%s1 + $0x8] sm:$0xff]
  %v633 = vld [vmem:[%s1 + $0x10] sm:$0xff]
  %v634 = vld [vmem:[%s1 + $0x18] sm:$0xff]
  %v635 = vld [vmem:[%s1 + $0x20] sm:$0xff]
  %v636 = vld [vmem:[%s1 + $0x28] sm:$0xff]
  %v637 = vld [vmem:[%s1 + $0x30] sm:$0xff]
  %v638 = vld [vmem:[%s1 + $0x38] sm:$0xff]
  %v639 = vld [vmem:[%s1 + $0x40] sm:$0xff]
  %v640 = vld [vmem:[%s1 + $0x48] sm:$0xff]
  %v641 = vld [vmem:[%s1 + $0x50] sm:$0xff]
  %v642 = vld [vmem:[%s1 + $0x58] sm:$0xff]
  %v643 = vld [vmem:[%s1 + $0x60] sm:$0xff]
  %v644 = vld [vmem:[%s1 + $0x68] sm:$0xff]
  %v645 = vld [vmem:[%s1 + $0x70] sm:$0xff]
  %v646 = vld [vmem:[%s1 + $0x78] sm:$0xff]
  %v647 = vld [vmem:[%s1 + $0x80] sm:$0xff]
  %v648 = vld [vmem:[%s1 + $0x88] sm:$0xff]
  %v649 = vld [vmem:[%s1 + $0x90] sm:$0xff]
  %v650 = vld [vmem:[%s1 + $0x98] sm:$0xff]
  %v651 = vld [vmem:[%s1 + $0xa0] sm:$0xff]
  %v652 = vld [vmem:[%s1 + $0xa8] sm:$0xff]
  %v653 = vld [vmem:[%s1 + $0xb0] sm:$0xff]
  %v654 = vld [vmem:[%s1 + $0xb8] sm:$0xff]
  %v655 = vld [vmem:[%s1 + $0xc0] sm:$0xff]
  %657 = vset.pattern.permute.xlu0 0
  %658 = vperm.xlu0 %657, %v632
  %v659 = vpop.permute.xlu0 %658
  %662 = vset.pattern.permute.xlu0 0
  %663 = vperm.xlu0 %662, %v633
  %v664 = vpop.permute.xlu0 %663
  %667 = vset.pattern.permute.xlu0 0
  %668 = vperm.xlu0 %667, %v634
  %v669 = vpop.permute.xlu0 %668
  %672 = vset.pattern.permute.xlu0 0
  %673 = vperm.xlu0 %672, %v635
  %v674 = vpop.permute.xlu0 %673
  %677 = vset.pattern.permute.xlu0 0
  %678 = vperm.xlu0 %677, %v636
  %v679 = vpop.permute.xlu0 %678
  %682 = vset.pattern.permute.xlu0 0
  %683 = vperm.xlu0 %682, %v637
  %v684 = vpop.permute.xlu0 %683
  %687 = vset.pattern.permute.xlu0 0
  %688 = vperm.xlu0 %687, %v638
  %v689 = vpop.permute.xlu0 %688
  %692 = vset.pattern.permute.xlu0 0
  %693 = vperm.xlu0 %692, %v639
  %v694 = vpop.permute.xlu0 %693
  %697 = vset.pattern.permute.xlu0 0
  %698 = vperm.xlu0 %697, %v640
  %v699 = vpop.permute.xlu0 %698
  %702 = vset.pattern.permute.xlu0 0
  %703 = vperm.xlu0 %702, %v641
  %v704 = vpop.permute.xlu0 %703
  %707 = vset.pattern.permute.xlu0 0
  %708 = vperm.xlu0 %707, %v642
  %v709 = vpop.permute.xlu0 %708
  %712 = vset.pattern.permute.xlu0 0
  %713 = vperm.xlu0 %712, %v643
  %v714 = vpop.permute.xlu0 %713
  %717 = vset.pattern.permute.xlu0 0
  %718 = vperm.xlu0 %717, %v644
  %v719 = vpop.permute.xlu0 %718
  %722 = vset.pattern.permute.xlu0 0
  %723 = vperm.xlu0 %722, %v645
  %v724 = vpop.permute.xlu0 %723
  %727 = vset.pattern.permute.xlu0 0
  %728 = vperm.xlu0 %727, %v646
  %v729 = vpop.permute.xlu0 %728
  %732 = vset.pattern.permute.xlu0 0
  %733 = vperm.xlu0 %732, %v647
  %v734 = vpop.permute.xlu0 %733
  %737 = vset.pattern.permute.xlu0 0
  %738 = vperm.xlu0 %737, %v648
  %v739 = vpop.permute.xlu0 %738
  %742 = vset.pattern.permute.xlu0 0
  %743 = vperm.xlu0 %742, %v649
  %v744 = vpop.permute.xlu0 %743
  %747 = vset.pattern.permute.xlu0 0
  %748 = vperm.xlu0 %747, %v650
  %v749 = vpop.permute.xlu0 %748
  %752 = vset.pattern.permute.xlu0 0
  %753 = vperm.xlu0 %752, %v651
  %v754 = vpop.permute.xlu0 %753
  %757 = vset.pattern.permute.xlu0 0
  %758 = vperm.xlu0 %757, %v652
  %v759 = vpop.permute.xlu0 %758
  %762 = vset.pattern.permute.xlu0 0
  %763 = vperm.xlu0 %762, %v653
  %v764 = vpop.permute.xlu0 %763
  %767 = vset.pattern.permute.xlu0 0
  %768 = vperm.xlu0 %767, %v654
  %v769 = vpop.permute.xlu0 %768
  %772 = vset.pattern.permute.xlu0 0
  %773 = vperm.xlu0 %772, %v655
  %v774 = vpop.permute.xlu0 %773
  %v776 = vmul.f32 %v659, %v583
  %v777 = vmul.f32 %v664, %v583
  %v778 = vmul.f32 %v669, %v583
  %v779 = vmul.f32 %v674, %v583
  %v780 = vmul.f32 %v679, %v583
  %v781 = vmul.f32 %v684, %v583
  %v782 = vmul.f32 %v689, %v583
  %v783 = vmul.f32 %v694, %v583
  %v784 = vmul.f32 %v699, %v583
  %v785 = vmul.f32 %v704, %v583
  %v786 = vmul.f32 %v709, %v583
  %v787 = vmul.f32 %v714, %v583
  %v788 = vmul.f32 %v719, %v583
  %v789 = vmul.f32 %v724, %v583
  %v790 = vmul.f32 %v729, %v583
  %v791 = vmul.f32 %v734, %v583
  %v792 = vmul.f32 %v739, %v583
  %v793 = vmul.f32 %v744, %v583
  %v794 = vmul.f32 %v749, %v583
  %v795 = vmul.f32 %v754, %v583
  %v796 = vmul.f32 %v759, %v583
  %v797 = vmul.f32 %v764, %v583
  %v798 = vmul.f32 %v769, %v583
  %v799 = vmul.f32 %v774, %v583
  %v800 = vadd.f32 %v411, %v776
  %v801 = vadd.f32 %v412, %v777
  %v802 = vadd.f32 %v413, %v778
  %v803 = vadd.f32 %v414, %v779
  %v804 = vadd.f32 %v415, %v780
  %v805 = vadd.f32 %v416, %v781
  %v806 = vadd.f32 %v417, %v782
  %v807 = vadd.f32 %v418, %v783
  %v808 = vadd.f32 %v419, %v784
  %v809 = vadd.f32 %v420, %v785
  %v810 = vadd.f32 %v421, %v786
  %v811 = vadd.f32 %v422, %v787
  %v812 = vadd.f32 %v423, %v788
  %v813 = vadd.f32 %v424, %v789
  %v814 = vadd.f32 %v425, %v790
  %v815 = vadd.f32 %v426, %v791
  %v816 = vadd.f32 %v427, %v792
  %v817 = vadd.f32 %v428, %v793
  %v818 = vadd.f32 %v429, %v794
  %v819 = vadd.f32 %v430, %v795
  %v820 = vadd.f32 %v431, %v796
  %v821 = vadd.f32 %v432, %v797
  %v822 = vadd.f32 %v433, %v798
  %v823 = vadd.f32 %v434, %v799
  %v824 = vld [vmem:[%s2 + $0x2] sm:$0x1]
  %v825 = vld [vmem:[%s0 + $0x10] sm:$0xff]
  %v826 = vld [vmem:[%s0 + $0x18] sm:$0xff]
  %v827 = vld [vmem:[%s0 + $0x20] sm:$0xff]
  %v828 = vld [vmem:[%s0 + $0x28] sm:$0xff]
  %v829 = vld [vmem:[%s0 + $0x30] sm:$0xff]
  %v830 = vld [vmem:[%s0 + $0x38] sm:$0xff]
  %v831 = vld [vmem:[%s0 + $0x40] sm:$0xff]
  %v832 = vld [vmem:[%s0 + $0x48] sm:$0xff]
  %v833 = vld [vmem:[%s0 + $0x50] sm:$0xff]
  %v834 = vld [vmem:[%s0 + $0x58] sm:$0xff]
  %v835 = vld [vmem:[%s0 + $0x60] sm:$0xff]
  %v836 = vld [vmem:[%s0 + $0x68] sm:$0xff]
  %v837 = vld [vmem:[%s0 + $0x70] sm:$0xff]
  %v838 = vld [vmem:[%s0 + $0x78] sm:$0xff]
  %v839 = vld [vmem:[%s0 + $0x80] sm:$0xff]
  %v840 = vld [vmem:[%s0 + $0x88] sm:$0xff]
  %v841 = vld [vmem:[%s0 + $0x90] sm:$0xff]
  %v842 = vld [vmem:[%s0 + $0x98] sm:$0xff]
  %v843 = vld [vmem:[%s0 + $0xa0] sm:$0xff]
  %v844 = vld [vmem:[%s0 + $0xa8] sm:$0xff]
  %v845 = vld [vmem:[%s0 + $0xb0] sm:$0xff]
  %v846 = vld [vmem:[%s0 + $0xb8] sm:$0xff]
  %v847 = vld [vmem:[%s0 + $0xc0] sm:$0xff]
  %v848 = vld [vmem:[%s0 + $0xc8] sm:$0xff]
  %850 = vset.pattern.permute.xlu0 0
  %851 = vperm.xlu0 %850, %v825
  %v852 = vpop.permute.xlu0 %851
  %855 = vset.pattern.permute.xlu0 0
  %856 = vperm.xlu0 %855, %v826
  %v857 = vpop.permute.xlu0 %856
  %860 = vset.pattern.permute.xlu0 0
  %861 = vperm.xlu0 %860, %v827
  %v862 = vpop.permute.xlu0 %861
  %865 = vset.pattern.permute.xlu0 0
  %866 = vperm.xlu0 %865, %v828
  %v867 = vpop.permute.xlu0 %866
  %870 = vset.pattern.permute.xlu0 0
  %871 = vperm.xlu0 %870, %v829
  %v872 = vpop.permute.xlu0 %871
  %875 = vset.pattern.permute.xlu0 0
  %876 = vperm.xlu0 %875, %v830
  %v877 = vpop.permute.xlu0 %876
  %880 = vset.pattern.permute.xlu0 0
  %881 = vperm.xlu0 %880, %v831
  %v882 = vpop.permute.xlu0 %881
  %885 = vset.pattern.permute.xlu0 0
  %886 = vperm.xlu0 %885, %v832
  %v887 = vpop.permute.xlu0 %886
  %890 = vset.pattern.permute.xlu0 0
  %891 = vperm.xlu0 %890, %v833
  %v892 = vpop.permute.xlu0 %891
  %895 = vset.pattern.permute.xlu0 0
  %896 = vperm.xlu0 %895, %v834
  %v897 = vpop.permute.xlu0 %896
  %900 = vset.pattern.permute.xlu0 0
  %901 = vperm.xlu0 %900, %v835
  %v902 = vpop.permute.xlu0 %901
  %905 = vset.pattern.permute.xlu0 0
  %906 = vperm.xlu0 %905, %v836
  %v907 = vpop.permute.xlu0 %906
  %910 = vset.pattern.permute.xlu0 0
  %911 = vperm.xlu0 %910, %v837
  %v912 = vpop.permute.xlu0 %911
  %915 = vset.pattern.permute.xlu0 0
  %916 = vperm.xlu0 %915, %v838
  %v917 = vpop.permute.xlu0 %916
  %920 = vset.pattern.permute.xlu0 0
  %921 = vperm.xlu0 %920, %v839
  %v922 = vpop.permute.xlu0 %921
  %925 = vset.pattern.permute.xlu0 0
  %926 = vperm.xlu0 %925, %v840
  %v927 = vpop.permute.xlu0 %926
  %930 = vset.pattern.permute.xlu0 0
  %931 = vperm.xlu0 %930, %v841
  %v932 = vpop.permute.xlu0 %931
  %935 = vset.pattern.permute.xlu0 0
  %936 = vperm.xlu0 %935, %v842
  %v937 = vpop.permute.xlu0 %936
  %940 = vset.pattern.permute.xlu0 0
  %941 = vperm.xlu0 %940, %v843
  %v942 = vpop.permute.xlu0 %941
  %945 = vset.pattern.permute.xlu0 0
  %946 = vperm.xlu0 %945, %v844
  %v947 = vpop.permute.xlu0 %946
  %950 = vset.pattern.permute.xlu0 0
  %951 = vperm.xlu0 %950, %v845
  %v952 = vpop.permute.xlu0 %951
  %955 = vset.pattern.permute.xlu0 0
  %956 = vperm.xlu0 %955, %v846
  %v957 = vpop.permute.xlu0 %956
  %960 = vset.pattern.permute.xlu0 0
  %961 = vperm.xlu0 %960, %v847
  %v962 = vpop.permute.xlu0 %961
  %965 = vset.pattern.permute.xlu0 0
  %966 = vperm.xlu0 %965, %v848
  %v967 = vpop.permute.xlu0 %966
  %v969 = vlaneseq
  %v970 = vshrl.u32 %v969, 7
  %v971 = vsub.s32 0, %v970
  %v972 = vrot.slane %v824, %v971
  %v973 = vmul.f32 %v852, %v972
  %v974 = vmul.f32 %v857, %v972
  %v975 = vmul.f32 %v862, %v972
  %v976 = vmul.f32 %v867, %v972
  %v977 = vmul.f32 %v872, %v972
  %v978 = vmul.f32 %v877, %v972
  %v979 = vmul.f32 %v882, %v972
  %v980 = vmul.f32 %v887, %v972
  %v981 = vmul.f32 %v892, %v972
  %v982 = vmul.f32 %v897, %v972
  %v983 = vmul.f32 %v902, %v972
  %v984 = vmul.f32 %v907, %v972
  %v985 = vmul.f32 %v912, %v972
  %v986 = vmul.f32 %v917, %v972
  %v987 = vmul.f32 %v922, %v972
  %v988 = vmul.f32 %v927, %v972
  %v989 = vmul.f32 %v932, %v972
  %v990 = vmul.f32 %v937, %v972
  %v991 = vmul.f32 %v942, %v972
  %v992 = vmul.f32 %v947, %v972
  %v993 = vmul.f32 %v952, %v972
  %v994 = vmul.f32 %v957, %v972
  %v995 = vmul.f32 %v962, %v972
  %v996 = vmul.f32 %v967, %v972
  %v997 = vadd.f32 %v608, %v973
  %v998 = vadd.f32 %v609, %v974
  %v999 = vadd.f32 %v610, %v975
  %v1000 = vadd.f32 %v611, %v976
  %v1001 = vadd.f32 %v612, %v977
  %v1002 = vadd.f32 %v613, %v978
  %v1003 = vadd.f32 %v614, %v979
  %v1004 = vadd.f32 %v615, %v980
  %v1005 = vadd.f32 %v616, %v981
  %v1006 = vadd.f32 %v617, %v982
  %v1007 = vadd.f32 %v618, %v983
  %v1008 = vadd.f32 %v619, %v984
  %v1009 = vadd.f32 %v620, %v985
  %v1010 = vadd.f32 %v621, %v986
  %v1011 = vadd.f32 %v622, %v987
  %v1012 = vadd.f32 %v623, %v988
  %v1013 = vadd.f32 %v624, %v989
  %v1014 = vadd.f32 %v625, %v990
  %v1015 = vadd.f32 %v626, %v991
  %v1016 = vadd.f32 %v627, %v992
  %v1017 = vadd.f32 %v628, %v993
  %v1018 = vadd.f32 %v629, %v994
  %v1019 = vadd.f32 %v630, %v995
  %v1020 = vadd.f32 %v631, %v996
  %v1021 = vld [vmem:[%s1 + $0x10] sm:$0xff]
  %v1022 = vld [vmem:[%s1 + $0x18] sm:$0xff]
  %v1023 = vld [vmem:[%s1 + $0x20] sm:$0xff]
  %v1024 = vld [vmem:[%s1 + $0x28] sm:$0xff]
  %v1025 = vld [vmem:[%s1 + $0x30] sm:$0xff]
  %v1026 = vld [vmem:[%s1 + $0x38] sm:$0xff]
  %v1027 = vld [vmem:[%s1 + $0x40] sm:$0xff]
  %v1028 = vld [vmem:[%s1 + $0x48] sm:$0xff]
  %v1029 = vld [vmem:[%s1 + $0x50] sm:$0xff]
  %v1030 = vld [vmem:[%s1 + $0x58] sm:$0xff]
  %v1031 = vld [vmem:[%s1 + $0x60] sm:$0xff]
  %v1032 = vld [vmem:[%s1 + $0x68] sm:$0xff]
  %v1033 = vld [vmem:[%s1 + $0x70] sm:$0xff]
  %v1034 = vld [vmem:[%s1 + $0x78] sm:$0xff]
  %v1035 = vld [vmem:[%s1 + $0x80] sm:$0xff]
  %v1036 = vld [vmem:[%s1 + $0x88] sm:$0xff]
  %v1037 = vld [vmem:[%s1 + $0x90] sm:$0xff]
  %v1038 = vld [vmem:[%s1 + $0x98] sm:$0xff]
  %v1039 = vld [vmem:[%s1 + $0xa0] sm:$0xff]
  %v1040 = vld [vmem:[%s1 + $0xa8] sm:$0xff]
  %v1041 = vld [vmem:[%s1 + $0xb0] sm:$0xff]
  %v1042 = vld [vmem:[%s1 + $0xb8] sm:$0xff]
  %v1043 = vld [vmem:[%s1 + $0xc0] sm:$0xff]
  %v1044 = vld [vmem:[%s1 + $0xc8] sm:$0xff]
  %1046 = vset.pattern.permute.xlu0 0
  %1047 = vperm.xlu0 %1046, %v1021
  %v1048 = vpop.permute.xlu0 %1047
  %1051 = vset.pattern.permute.xlu0 0
  %1052 = vperm.xlu0 %1051, %v1022
  %v1053 = vpop.permute.xlu0 %1052
  %1056 = vset.pattern.permute.xlu0 0
  %1057 = vperm.xlu0 %1056, %v1023
  %v1058 = vpop.permute.xlu0 %1057
  %1061 = vset.pattern.permute.xlu0 0
  %1062 = vperm.xlu0 %1061, %v1024
  %v1063 = vpop.permute.xlu0 %1062
  %1066 = vset.pattern.permute.xlu0 0
  %1067 = vperm.xlu0 %1066, %v1025
  %v1068 = vpop.permute.xlu0 %1067
  %1071 = vset.pattern.permute.xlu0 0
  %1072 = vperm.xlu0 %1071, %v1026
  %v1073 = vpop.permute.xlu0 %1072
  %1076 = vset.pattern.permute.xlu0 0
  %1077 = vperm.xlu0 %1076, %v1027
  %v1078 = vpop.permute.xlu0 %1077
  %1081 = vset.pattern.permute.xlu0 0
  %1082 = vperm.xlu0 %1081, %v1028
  %v1083 = vpop.permute.xlu0 %1082
  %1086 = vset.pattern.permute.xlu0 0
  %1087 = vperm.xlu0 %1086, %v1029
  %v1088 = vpop.permute.xlu0 %1087
  %1091 = vset.pattern.permute.xlu0 0
  %1092 = vperm.xlu0 %1091, %v1030
  %v1093 = vpop.permute.xlu0 %1092
  %1096 = vset.pattern.permute.xlu0 0
  %1097 = vperm.xlu0 %1096, %v1031
  %v1098 = vpop.permute.xlu0 %1097
  %1101 = vset.pattern.permute.xlu0 0
  %1102 = vperm.xlu0 %1101, %v1032
  %v1103 = vpop.permute.xlu0 %1102
  %1106 = vset.pattern.permute.xlu0 0
  %1107 = vperm.xlu0 %1106, %v1033
  %v1108 = vpop.permute.xlu0 %1107
  %1111 = vset.pattern.permute.xlu0 0
  %1112 = vperm.xlu0 %1111, %v1034
  %v1113 = vpop.permute.xlu0 %1112
  %1116 = vset.pattern.permute.xlu0 0
  %1117 = vperm.xlu0 %1116, %v1035
  %v1118 = vpop.permute.xlu0 %1117
  %1121 = vset.pattern.permute.xlu0 0
  %1122 = vperm.xlu0 %1121, %v1036
  %v1123 = vpop.permute.xlu0 %1122
  %1126 = vset.pattern.permute.xlu0 0
  %1127 = vperm.xlu0 %1126, %v1037
  %v1128 = vpop.permute.xlu0 %1127
  %1131 = vset.pattern.permute.xlu0 0
  %1132 = vperm.xlu0 %1131, %v1038
  %v1133 = vpop.permute.xlu0 %1132
  %1136 = vset.pattern.permute.xlu0 0
  %1137 = vperm.xlu0 %1136, %v1039
  %v1138 = vpop.permute.xlu0 %1137
  %1141 = vset.pattern.permute.xlu0 0
  %1142 = vperm.xlu0 %1141, %v1040
  %v1143 = vpop.permute.xlu0 %1142
  %1146 = vset.pattern.permute.xlu0 0
  %1147 = vperm.xlu0 %1146, %v1041
  %v1148 = vpop.permute.xlu0 %1147
  %1151 = vset.pattern.permute.xlu0 0
  %1152 = vperm.xlu0 %1151, %v1042
  %v1153 = vpop.permute.xlu0 %1152
  %1156 = vset.pattern.permute.xlu0 0
  %1157 = vperm.xlu0 %1156, %v1043
  %v1158 = vpop.permute.xlu0 %1157
  %1161 = vset.pattern.permute.xlu0 0
  %1162 = vperm.xlu0 %1161, %v1044
  %v1163 = vpop.permute.xlu0 %1162
  %v1165 = vmul.f32 %v1048, %v972
  %v1166 = vmul.f32 %v1053, %v972
  %v1167 = vmul.f32 %v1058, %v972
  %v1168 = vmul.f32 %v1063, %v972
  %v1169 = vmul.f32 %v1068, %v972
  %v1170 = vmul.f32 %v1073, %v972
  %v1171 = vmul.f32 %v1078, %v972
  %v1172 = vmul.f32 %v1083, %v972
  %v1173 = vmul.f32 %v1088, %v972
  %v1174 = vmul.f32 %v1093, %v972
  %v1175 = vmul.f32 %v1098, %v972
  %v1176 = vmul.f32 %v1103, %v972
  %v1177 = vmul.f32 %v1108, %v972
  %v1178 = vmul.f32 %v1113, %v972
  %v1179 = vmul.f32 %v1118, %v972
  %v1180 = vmul.f32 %v1123, %v972
  %v1181 = vmul.f32 %v1128, %v972
  %v1182 = vmul.f32 %v1133, %v972
  %v1183 = vmul.f32 %v1138, %v972
  %v1184 = vmul.f32 %v1143, %v972
  %v1185 = vmul.f32 %v1148, %v972
  %v1186 = vmul.f32 %v1153, %v972
  %v1187 = vmul.f32 %v1158, %v972
  %v1188 = vmul.f32 %v1163, %v972
  %v1189 = vadd.f32 %v800, %v1165
  %v1190 = vadd.f32 %v801, %v1166
  %v1191 = vadd.f32 %v802, %v1167
  %v1192 = vadd.f32 %v803, %v1168
  %v1193 = vadd.f32 %v804, %v1169
  %v1194 = vadd.f32 %v805, %v1170
  %v1195 = vadd.f32 %v806, %v1171
  %v1196 = vadd.f32 %v807, %v1172
  %v1197 = vadd.f32 %v808, %v1173
  %v1198 = vadd.f32 %v809, %v1174
  %v1199 = vadd.f32 %v810, %v1175
  %v1200 = vadd.f32 %v811, %v1176
  %v1201 = vadd.f32 %v812, %v1177
  %v1202 = vadd.f32 %v813, %v1178
  %v1203 = vadd.f32 %v814, %v1179
  %v1204 = vadd.f32 %v815, %v1180
  %v1205 = vadd.f32 %v816, %v1181
  %v1206 = vadd.f32 %v817, %v1182
  %v1207 = vadd.f32 %v818, %v1183
  %v1208 = vadd.f32 %v819, %v1184
  %v1209 = vadd.f32 %v820, %v1185
  %v1210 = vadd.f32 %v821, %v1186
  %v1211 = vadd.f32 %v822, %v1187
  %v1212 = vadd.f32 %v823, %v1188
  %v1213 = vld [vmem:[%s2 + $0x3] sm:$0x1]
  %v1214 = vld [vmem:[%s0 + $0x18] sm:$0xff]
  %v1215 = vld [vmem:[%s0 + $0x20] sm:$0xff]
  %v1216 = vld [vmem:[%s0 + $0x28] sm:$0xff]
  %v1217 = vld [vmem:[%s0 + $0x30] sm:$0xff]
  %v1218 = vld [vmem:[%s0 + $0x38] sm:$0xff]
  %v1219 = vld [vmem:[%s0 + $0x40] sm:$0xff]
  %v1220 = vld [vmem:[%s0 + $0x48] sm:$0xff]
  %v1221 = vld [vmem:[%s0 + $0x50] sm:$0xff]
  %v1222 = vld [vmem:[%s0 + $0x58] sm:$0xff]
  %v1223 = vld [vmem:[%s0 + $0x60] sm:$0xff]
  %v1224 = vld [vmem:[%s0 + $0x68] sm:$0xff]
  %v1225 = vld [vmem:[%s0 + $0x70] sm:$0xff]
  %v1226 = vld [vmem:[%s0 + $0x78] sm:$0xff]
  %v1227 = vld [vmem:[%s0 + $0x80] sm:$0xff]
  %v1228 = vld [vmem:[%s0 + $0x88] sm:$0xff]
  %v1229 = vld [vmem:[%s0 + $0x90] sm:$0xff]
  %v1230 = vld [vmem:[%s0 + $0x98] sm:$0xff]
  %v1231 = vld [vmem:[%s0 + $0xa0] sm:$0xff]
  %v1232 = vld [vmem:[%s0 + $0xa8] sm:$0xff]
  %v1233 = vld [vmem:[%s0 + $0xb0] sm:$0xff]
  %v1234 = vld [vmem:[%s0 + $0xb8] sm:$0xff]
  %v1235 = vld [vmem:[%s0 + $0xc0] sm:$0xff]
  %v1236 = vld [vmem:[%s0 + $0xc8] sm:$0xff]
  %v1237 = vld [vmem:[%s0 + $0xd0] sm:$0xff]
  %1239 = vset.pattern.permute.xlu0 0
  %1240 = vperm.xlu0 %1239, %v1214
  %v1241 = vpop.permute.xlu0 %1240
  %1244 = vset.pattern.permute.xlu0 0
  %1245 = vperm.xlu0 %1244, %v1215
  %v1246 = vpop.permute.xlu0 %1245
  %1249 = vset.pattern.permute.xlu0 0
  %1250 = vperm.xlu0 %1249, %v1216
  %v1251 = vpop.permute.xlu0 %1250
  %1254 = vset.pattern.permute.xlu0 0
  %1255 = vperm.xlu0 %1254, %v1217
  %v1256 = vpop.permute.xlu0 %1255
  %1259 = vset.pattern.permute.xlu0 0
  %1260 = vperm.xlu0 %1259, %v1218
  %v1261 = vpop.permute.xlu0 %1260
  %1264 = vset.pattern.permute.xlu0 0
  %1265 = vperm.xlu0 %1264, %v1219
  %v1266 = vpop.permute.xlu0 %1265
  %1269 = vset.pattern.permute.xlu0 0
  %1270 = vperm.xlu0 %1269, %v1220
  %v1271 = vpop.permute.xlu0 %1270
  %1274 = vset.pattern.permute.xlu0 0
  %1275 = vperm.xlu0 %1274, %v1221
  %v1276 = vpop.permute.xlu0 %1275
  %1279 = vset.pattern.permute.xlu0 0
  %1280 = vperm.xlu0 %1279, %v1222
  %v1281 = vpop.permute.xlu0 %1280
  %1284 = vset.pattern.permute.xlu0 0
  %1285 = vperm.xlu0 %1284, %v1223
  %v1286 = vpop.permute.xlu0 %1285
  %1289 = vset.pattern.permute.xlu0 0
  %1290 = vperm.xlu0 %1289, %v1224
  %v1291 = vpop.permute.xlu0 %1290
  %1294 = vset.pattern.permute.xlu0 0
  %1295 = vperm.xlu0 %1294, %v1225
  %v1296 = vpop.permute.xlu0 %1295
  %1299 = vset.pattern.permute.xlu0 0
  %1300 = vperm.xlu0 %1299, %v1226
  %v1301 = vpop.permute.xlu0 %1300
  %1304 = vset.pattern.permute.xlu0 0
  %1305 = vperm.xlu0 %1304, %v1227
  %v1306 = vpop.permute.xlu0 %1305
  %1309 = vset.pattern.permute.xlu0 0
  %1310 = vperm.xlu0 %1309, %v1228
  %v1311 = vpop.permute.xlu0 %1310
  %1314 = vset.pattern.permute.xlu0 0
  %1315 = vperm.xlu0 %1314, %v1229
  %v1316 = vpop.permute.xlu0 %1315
  %1319 = vset.pattern.permute.xlu0 0
  %1320 = vperm.xlu0 %1319, %v1230
  %v1321 = vpop.permute.xlu0 %1320
  %1324 = vset.pattern.permute.xlu0 0
  %1325 = vperm.xlu0 %1324, %v1231
  %v1326 = vpop.permute.xlu0 %1325
  %1329 = vset.pattern.permute.xlu0 0
  %1330 = vperm.xlu0 %1329, %v1232
  %v1331 = vpop.permute.xlu0 %1330
  %1334 = vset.pattern.permute.xlu0 0
  %1335 = vperm.xlu0 %1334, %v1233
  %v1336 = vpop.permute.xlu0 %1335
  %1339 = vset.pattern.permute.xlu0 0
  %1340 = vperm.xlu0 %1339, %v1234
  %v1341 = vpop.permute.xlu0 %1340
  %1344 = vset.pattern.permute.xlu0 0
  %1345 = vperm.xlu0 %1344, %v1235
  %v1346 = vpop.permute.xlu0 %1345
  %1349 = vset.pattern.permute.xlu0 0
  %1350 = vperm.xlu0 %1349, %v1236
  %v1351 = vpop.permute.xlu0 %1350
  %1354 = vset.pattern.permute.xlu0 0
  %1355 = vperm.xlu0 %1354, %v1237
  %v1356 = vpop.permute.xlu0 %1355
  %v1358 = vlaneseq
  %v1359 = vshrl.u32 %v1358, 7
  %v1360 = vsub.s32 0, %v1359
  %v1361 = vrot.slane %v1213, %v1360
  %v1362 = vmul.f32 %v1241, %v1361
  %v1363 = vmul.f32 %v1246, %v1361
  %v1364 = vmul.f32 %v1251, %v1361
  %v1365 = vmul.f32 %v1256, %v1361
  %v1366 = vmul.f32 %v1261, %v1361
  %v1367 = vmul.f32 %v1266, %v1361
  %v1368 = vmul.f32 %v1271, %v1361
  %v1369 = vmul.f32 %v1276, %v1361
  %v1370 = vmul.f32 %v1281, %v1361
  %v1371 = vmul.f32 %v1286, %v1361
  %v1372 = vmul.f32 %v1291, %v1361
  %v1373 = vmul.f32 %v1296, %v1361
  %v1374 = vmul.f32 %v1301, %v1361
  %v1375 = vmul.f32 %v1306, %v1361
  %v1376 = vmul.f32 %v1311, %v1361
  %v1377 = vmul.f32 %v1316, %v1361
  %v1378 = vmul.f32 %v1321, %v1361
  %v1379 = vmul.f32 %v1326, %v1361
  %v1380 = vmul.f32 %v1331, %v1361
  %v1381 = vmul.f32 %v1336, %v1361
  %v1382 = vmul.f32 %v1341, %v1361
  %v1383 = vmul.f32 %v1346, %v1361
  %v1384 = vmul.f32 %v1351, %v1361
  %v1385 = vmul.f32 %v1356, %v1361
  %v1386 = vadd.f32 %v997, %v1362
  %v1387 = vadd.f32 %v998, %v1363
  %v1388 = vadd.f32 %v999, %v1364
  %v1389 = vadd.f32 %v1000, %v1365
  %v1390 = vadd.f32 %v1001, %v1366
  %v1391 = vadd.f32 %v1002, %v1367
  %v1392 = vadd.f32 %v1003, %v1368
  %v1393 = vadd.f32 %v1004, %v1369
  %v1394 = vadd.f32 %v1005, %v1370
  %v1395 = vadd.f32 %v1006, %v1371
  %v1396 = vadd.f32 %v1007, %v1372
  %v1397 = vadd.f32 %v1008, %v1373
  %v1398 = vadd.f32 %v1009, %v1374
  %v1399 = vadd.f32 %v1010, %v1375
  %v1400 = vadd.f32 %v1011, %v1376
  %v1401 = vadd.f32 %v1012, %v1377
  %v1402 = vadd.f32 %v1013, %v1378
  %v1403 = vadd.f32 %v1014, %v1379
  %v1404 = vadd.f32 %v1015, %v1380
  %v1405 = vadd.f32 %v1016, %v1381
  %v1406 = vadd.f32 %v1017, %v1382
  %v1407 = vadd.f32 %v1018, %v1383
  %v1408 = vadd.f32 %v1019, %v1384
  %v1409 = vadd.f32 %v1020, %v1385
  %v1410 = vld [vmem:[%s1 + $0x18] sm:$0xff]
  %v1411 = vld [vmem:[%s1 + $0x20] sm:$0xff]
  %v1412 = vld [vmem:[%s1 + $0x28] sm:$0xff]
  %v1413 = vld [vmem:[%s1 + $0x30] sm:$0xff]
  %v1414 = vld [vmem:[%s1 + $0x38] sm:$0xff]
  %v1415 = vld [vmem:[%s1 + $0x40] sm:$0xff]
  %v1416 = vld [vmem:[%s1 + $0x48] sm:$0xff]
  %v1417 = vld [vmem:[%s1 + $0x50] sm:$0xff]
  %v1418 = vld [vmem:[%s1 + $0x58] sm:$0xff]
  %v1419 = vld [vmem:[%s1 + $0x60] sm:$0xff]
  %v1420 = vld [vmem:[%s1 + $0x68] sm:$0xff]
  %v1421 = vld [vmem:[%s1 + $0x70] sm:$0xff]
  %v1422 = vld [vmem:[%s1 + $0x78] sm:$0xff]
  %v1423 = vld [vmem:[%s1 + $0x80] sm:$0xff]
  %v1424 = vld [vmem:[%s1 + $0x88] sm:$0xff]
  %v1425 = vld [vmem:[%s1 + $0x90] sm:$0xff]
  %v1426 = vld [vmem:[%s1 + $0x98] sm:$0xff]
  %v1427 = vld [vmem:[%s1 + $0xa0] sm:$0xff]
  %v1428 = vld [vmem:[%s1 + $0xa8] sm:$0xff]
  %v1429 = vld [vmem:[%s1 + $0xb0] sm:$0xff]
  %v1430 = vld [vmem:[%s1 + $0xb8] sm:$0xff]
  %v1431 = vld [vmem:[%s1 + $0xc0] sm:$0xff]
  %v1432 = vld [vmem:[%s1 + $0xc8] sm:$0xff]
  %v1433 = vld [vmem:[%s1 + $0xd0] sm:$0xff]
  %1435 = vset.pattern.permute.xlu0 0
  %1436 = vperm.xlu0 %1435, %v1410
  %v1437 = vpop.permute.xlu0 %1436
  %1440 = vset.pattern.permute.xlu0 0
  %1441 = vperm.xlu0 %1440, %v1411
  %v1442 = vpop.permute.xlu0 %1441
  %1445 = vset.pattern.permute.xlu0 0
  %1446 = vperm.xlu0 %1445, %v1412
  %v1447 = vpop.permute.xlu0 %1446
  %1450 = vset.pattern.permute.xlu0 0
  %1451 = vperm.xlu0 %1450, %v1413
  %v1452 = vpop.permute.xlu0 %1451
  %1455 = vset.pattern.permute.xlu0 0
  %1456 = vperm.xlu0 %1455, %v1414
  %v1457 = vpop.permute.xlu0 %1456
  %1460 = vset.pattern.permute.xlu0 0
  %1461 = vperm.xlu0 %1460, %v1415
  %v1462 = vpop.permute.xlu0 %1461
  %1465 = vset.pattern.permute.xlu0 0
  %1466 = vperm.xlu0 %1465, %v1416
  %v1467 = vpop.permute.xlu0 %1466
  %1470 = vset.pattern.permute.xlu0 0
  %1471 = vperm.xlu0 %1470, %v1417
  %v1472 = vpop.permute.xlu0 %1471
  %1475 = vset.pattern.permute.xlu0 0
  %1476 = vperm.xlu0 %1475, %v1418
  %v1477 = vpop.permute.xlu0 %1476
  %1480 = vset.pattern.permute.xlu0 0
  %1481 = vperm.xlu0 %1480, %v1419
  %v1482 = vpop.permute.xlu0 %1481
  %1485 = vset.pattern.permute.xlu0 0
  %1486 = vperm.xlu0 %1485, %v1420
  %v1487 = vpop.permute.xlu0 %1486
  %1490 = vset.pattern.permute.xlu0 0
  %1491 = vperm.xlu0 %1490, %v1421
  %v1492 = vpop.permute.xlu0 %1491
  %1495 = vset.pattern.permute.xlu0 0
  %1496 = vperm.xlu0 %1495, %v1422
  %v1497 = vpop.permute.xlu0 %1496
  %1500 = vset.pattern.permute.xlu0 0
  %1501 = vperm.xlu0 %1500, %v1423
  %v1502 = vpop.permute.xlu0 %1501
  %1505 = vset.pattern.permute.xlu0 0
  %1506 = vperm.xlu0 %1505, %v1424
  %v1507 = vpop.permute.xlu0 %1506
  %1510 = vset.pattern.permute.xlu0 0
  %1511 = vperm.xlu0 %1510, %v1425
  %v1512 = vpop.permute.xlu0 %1511
  %1515 = vset.pattern.permute.xlu0 0
  %1516 = vperm.xlu0 %1515, %v1426
  %v1517 = vpop.permute.xlu0 %1516
  %1520 = vset.pattern.permute.xlu0 0
  %1521 = vperm.xlu0 %1520, %v1427
  %v1522 = vpop.permute.xlu0 %1521
  %1525 = vset.pattern.permute.xlu0 0
  %1526 = vperm.xlu0 %1525, %v1428
  %v1527 = vpop.permute.xlu0 %1526
  %1530 = vset.pattern.permute.xlu0 0
  %1531 = vperm.xlu0 %1530, %v1429
  %v1532 = vpop.permute.xlu0 %1531
  %1535 = vset.pattern.permute.xlu0 0
  %1536 = vperm.xlu0 %1535, %v1430
  %v1537 = vpop.permute.xlu0 %1536
  %1540 = vset.pattern.permute.xlu0 0
  %1541 = vperm.xlu0 %1540, %v1431
  %v1542 = vpop.permute.xlu0 %1541
  %1545 = vset.pattern.permute.xlu0 0
  %1546 = vperm.xlu0 %1545, %v1432
  %v1547 = vpop.permute.xlu0 %1546
  %1550 = vset.pattern.permute.xlu0 0
  %1551 = vperm.xlu0 %1550, %v1433
  %v1552 = vpop.permute.xlu0 %1551
  %v1554 = vmul.f32 %v1437, %v1361
  %v1555 = vmul.f32 %v1442, %v1361
  %v1556 = vmul.f32 %v1447, %v1361
  %v1557 = vmul.f32 %v1452, %v1361
  %v1558 = vmul.f32 %v1457, %v1361
  %v1559 = vmul.f32 %v1462, %v1361
  %v1560 = vmul.f32 %v1467, %v1361
  %v1561 = vmul.f32 %v1472, %v1361
  %v1562 = vmul.f32 %v1477, %v1361
  %v1563 = vmul.f32 %v1482, %v1361
  %v1564 = vmul.f32 %v1487, %v1361
  %v1565 = vmul.f32 %v1492, %v1361
  %v1566 = vmul.f32 %v1497, %v1361
  %v1567 = vmul.f32 %v1502, %v1361
  %v1568 = vmul.f32 %v1507, %v1361
  %v1569 = vmul.f32 %v1512, %v1361
  %v1570 = vmul.f32 %v1517, %v1361
  %v1571 = vmul.f32 %v1522, %v1361
  %v1572 = vmul.f32 %v1527, %v1361
  %v1573 = vmul.f32 %v1532, %v1361
  %v1574 = vmul.f32 %v1537, %v1361
  %v1575 = vmul.f32 %v1542, %v1361
  %v1576 = vmul.f32 %v1547, %v1361
  %v1577 = vmul.f32 %v1552, %v1361
  %v1578 = vadd.f32 %v1189, %v1554
  %v1579 = vadd.f32 %v1190, %v1555
  %v1580 = vadd.f32 %v1191, %v1556
  %v1581 = vadd.f32 %v1192, %v1557
  %v1582 = vadd.f32 %v1193, %v1558
  %v1583 = vadd.f32 %v1194, %v1559
  %v1584 = vadd.f32 %v1195, %v1560
  %v1585 = vadd.f32 %v1196, %v1561
  %v1586 = vadd.f32 %v1197, %v1562
  %v1587 = vadd.f32 %v1198, %v1563
  %v1588 = vadd.f32 %v1199, %v1564
  %v1589 = vadd.f32 %v1200, %v1565
  %v1590 = vadd.f32 %v1201, %v1566
  %v1591 = vadd.f32 %v1202, %v1567
  %v1592 = vadd.f32 %v1203, %v1568
  %v1593 = vadd.f32 %v1204, %v1569
  %v1594 = vadd.f32 %v1205, %v1570
  %v1595 = vadd.f32 %v1206, %v1571
  %v1596 = vadd.f32 %v1207, %v1572
  %v1597 = vadd.f32 %v1208, %v1573
  %v1598 = vadd.f32 %v1209, %v1574
  %v1599 = vadd.f32 %v1210, %v1575
  %v1600 = vadd.f32 %v1211, %v1576
  %v1601 = vadd.f32 %v1212, %v1577
  %v1602 = vld [vmem:[%s2 + $0x4] sm:$0x1]
  %v1603 = vld [vmem:[%s0 + $0x20] sm:$0xff]
  %v1604 = vld [vmem:[%s0 + $0x28] sm:$0xff]
  %v1605 = vld [vmem:[%s0 + $0x30] sm:$0xff]
  %v1606 = vld [vmem:[%s0 + $0x38] sm:$0xff]
  %v1607 = vld [vmem:[%s0 + $0x40] sm:$0xff]
  %v1608 = vld [vmem:[%s0 + $0x48] sm:$0xff]
  %v1609 = vld [vmem:[%s0 + $0x50] sm:$0xff]
  %v1610 = vld [vmem:[%s0 + $0x58] sm:$0xff]
  %v1611 = vld [vmem:[%s0 + $0x60] sm:$0xff]
  %v1612 = vld [vmem:[%s0 + $0x68] sm:$0xff]
  %v1613 = vld [vmem:[%s0 + $0x70] sm:$0xff]
  %v1614 = vld [vmem:[%s0 + $0x78] sm:$0xff]
  %v1615 = vld [vmem:[%s0 + $0x80] sm:$0xff]
  %v1616 = vld [vmem:[%s0 + $0x88] sm:$0xff]
  %v1617 = vld [vmem:[%s0 + $0x90] sm:$0xff]
  %v1618 = vld [vmem:[%s0 + $0x98] sm:$0xff]
  %v1619 = vld [vmem:[%s0 + $0xa0] sm:$0xff]
  %v1620 = vld [vmem:[%s0 + $0xa8] sm:$0xff]
  %v1621 = vld [vmem:[%s0 + $0xb0] sm:$0xff]
  %v1622 = vld [vmem:[%s0 + $0xb8] sm:$0xff]
  %v1623 = vld [vmem:[%s0 + $0xc0] sm:$0xff]
  %v1624 = vld [vmem:[%s0 + $0xc8] sm:$0xff]
  %v1625 = vld [vmem:[%s0 + $0xd0] sm:$0xff]
  %v1626 = vld [vmem:[%s0 + $0xd8] sm:$0xff]
  %1628 = vset.pattern.permute.xlu0 0
  %1629 = vperm.xlu0 %1628, %v1603
  %v1630 = vpop.permute.xlu0 %1629
  %1633 = vset.pattern.permute.xlu0 0
  %1634 = vperm.xlu0 %1633, %v1604
  %v1635 = vpop.permute.xlu0 %1634
  %1638 = vset.pattern.permute.xlu0 0
  %1639 = vperm.xlu0 %1638, %v1605
  %v1640 = vpop.permute.xlu0 %1639
  %1643 = vset.pattern.permute.xlu0 0
  %1644 = vperm.xlu0 %1643, %v1606
  %v1645 = vpop.permute.xlu0 %1644
  %1648 = vset.pattern.permute.xlu0 0
  %1649 = vperm.xlu0 %1648, %v1607
  %v1650 = vpop.permute.xlu0 %1649
  %1653 = vset.pattern.permute.xlu0 0
  %1654 = vperm.xlu0 %1653, %v1608
  %v1655 = vpop.permute.xlu0 %1654
  %1658 = vset.pattern.permute.xlu0 0
  %1659 = vperm.xlu0 %1658, %v1609
  %v1660 = vpop.permute.xlu0 %1659
  %1663 = vset.pattern.permute.xlu0 0
  %1664 = vperm.xlu0 %1663, %v1610
  %v1665 = vpop.permute.xlu0 %1664
  %1668 = vset.pattern.permute.xlu0 0
  %1669 = vperm.xlu0 %1668, %v1611
  %v1670 = vpop.permute.xlu0 %1669
  %1673 = vset.pattern.permute.xlu0 0
  %1674 = vperm.xlu0 %1673, %v1612
  %v1675 = vpop.permute.xlu0 %1674
  %1678 = vset.pattern.permute.xlu0 0
  %1679 = vperm.xlu0 %1678, %v1613
  %v1680 = vpop.permute.xlu0 %1679
  %1683 = vset.pattern.permute.xlu0 0
  %1684 = vperm.xlu0 %1683, %v1614
  %v1685 = vpop.permute.xlu0 %1684
  %1688 = vset.pattern.permute.xlu0 0
  %1689 = vperm.xlu0 %1688, %v1615
  %v1690 = vpop.permute.xlu0 %1689
  %1693 = vset.pattern.permute.xlu0 0
  %1694 = vperm.xlu0 %1693, %v1616
  %v1695 = vpop.permute.xlu0 %1694
  %1698 = vset.pattern.permute.xlu0 0
  %1699 = vperm.xlu0 %1698, %v1617
  %v1700 = vpop.permute.xlu0 %1699
  %1703 = vset.pattern.permute.xlu0 0
  %1704 = vperm.xlu0 %1703, %v1618
  %v1705 = vpop.permute.xlu0 %1704
  %1708 = vset.pattern.permute.xlu0 0
  %1709 = vperm.xlu0 %1708, %v1619
  %v1710 = vpop.permute.xlu0 %1709
  %1713 = vset.pattern.permute.xlu0 0
  %1714 = vperm.xlu0 %1713, %v1620
  %v1715 = vpop.permute.xlu0 %1714
  %1718 = vset.pattern.permute.xlu0 0
  %1719 = vperm.xlu0 %1718, %v1621
  %v1720 = vpop.permute.xlu0 %1719
  %1723 = vset.pattern.permute.xlu0 0
  %1724 = vperm.xlu0 %1723, %v1622
  %v1725 = vpop.permute.xlu0 %1724
  %1728 = vset.pattern.permute.xlu0 0
  %1729 = vperm.xlu0 %1728, %v1623
  %v1730 = vpop.permute.xlu0 %1729
  %1733 = vset.pattern.permute.xlu0 0
  %1734 = vperm.xlu0 %1733, %v1624
  %v1735 = vpop.permute.xlu0 %1734
  %1738 = vset.pattern.permute.xlu0 0
  %1739 = vperm.xlu0 %1738, %v1625
  %v1740 = vpop.permute.xlu0 %1739
  %1743 = vset.pattern.permute.xlu0 0
  %1744 = vperm.xlu0 %1743, %v1626
  %v1745 = vpop.permute.xlu0 %1744
  %v1747 = vlaneseq
  %v1748 = vshrl.u32 %v1747, 7
  %v1749 = vsub.s32 0, %v1748
  %v1750 = vrot.slane %v1602, %v1749
  %v1751 = vmul.f32 %v1630, %v1750
  %v1752 = vmul.f32 %v1635, %v1750
  %v1753 = vmul.f32 %v1640, %v1750
  %v1754 = vmul.f32 %v1645, %v1750
  %v1755 = vmul.f32 %v1650, %v1750
  %v1756 = vmul.f32 %v1655, %v1750
  %v1757 = vmul.f32 %v1660, %v1750
  %v1758 = vmul.f32 %v1665, %v1750
  %v1759 = vmul.f32 %v1670, %v1750
  %v1760 = vmul.f32 %v1675, %v1750
  %v1761 = vmul.f32 %v1680, %v1750
  %v1762 = vmul.f32 %v1685, %v1750
  %v1763 = vmul.f32 %v1690, %v1750
  %v1764 = vmul.f32 %v1695, %v1750
  %v1765 = vmul.f32 %v1700, %v1750
  %v1766 = vmul.f32 %v1705, %v1750
  %v1767 = vmul.f32 %v1710, %v1750
  %v1768 = vmul.f32 %v1715, %v1750
  %v1769 = vmul.f32 %v1720, %v1750
  %v1770 = vmul.f32 %v1725, %v1750
  %v1771 = vmul.f32 %v1730, %v1750
  %v1772 = vmul.f32 %v1735, %v1750
  %v1773 = vmul.f32 %v1740, %v1750
  %v1774 = vmul.f32 %v1745, %v1750
  %v1775 = vadd.f32 %v1386, %v1751
  %v1776 = vadd.f32 %v1387, %v1752
  %v1777 = vadd.f32 %v1388, %v1753
  %v1778 = vadd.f32 %v1389, %v1754
  %v1779 = vadd.f32 %v1390, %v1755
  %v1780 = vadd.f32 %v1391, %v1756
  %v1781 = vadd.f32 %v1392, %v1757
  %v1782 = vadd.f32 %v1393, %v1758
  %v1783 = vadd.f32 %v1394, %v1759
  %v1784 = vadd.f32 %v1395, %v1760
  %v1785 = vadd.f32 %v1396, %v1761
  %v1786 = vadd.f32 %v1397, %v1762
  %v1787 = vadd.f32 %v1398, %v1763
  %v1788 = vadd.f32 %v1399, %v1764
  %v1789 = vadd.f32 %v1400, %v1765
  %v1790 = vadd.f32 %v1401, %v1766
  %v1791 = vadd.f32 %v1402, %v1767
  %v1792 = vadd.f32 %v1403, %v1768
  %v1793 = vadd.f32 %v1404, %v1769
  %v1794 = vadd.f32 %v1405, %v1770
  %v1795 = vadd.f32 %v1406, %v1771
  %v1796 = vadd.f32 %v1407, %v1772
  %v1797 = vadd.f32 %v1408, %v1773
  %v1798 = vadd.f32 %v1409, %v1774
  %v1799 = vld [vmem:[%s1 + $0x20] sm:$0xff]
  %v1800 = vld [vmem:[%s1 + $0x28] sm:$0xff]
  %v1801 = vld [vmem:[%s1 + $0x30] sm:$0xff]
  %v1802 = vld [vmem:[%s1 + $0x38] sm:$0xff]
  %v1803 = vld [vmem:[%s1 + $0x40] sm:$0xff]
  %v1804 = vld [vmem:[%s1 + $0x48] sm:$0xff]
  %v1805 = vld [vmem:[%s1 + $0x50] sm:$0xff]
  %v1806 = vld [vmem:[%s1 + $0x58] sm:$0xff]
  %v1807 = vld [vmem:[%s1 + $0x60] sm:$0xff]
  %v1808 = vld [vmem:[%s1 + $0x68] sm:$0xff]
  %v1809 = vld [vmem:[%s1 + $0x70] sm:$0xff]
  %v1810 = vld [vmem:[%s1 + $0x78] sm:$0xff]
  %v1811 = vld [vmem:[%s1 + $0x80] sm:$0xff]
  %v1812 = vld [vmem:[%s1 + $0x88] sm:$0xff]
  %v1813 = vld [vmem:[%s1 + $0x90] sm:$0xff]
  %v1814 = vld [vmem:[%s1 + $0x98] sm:$0xff]
  %v1815 = vld [vmem:[%s1 + $0xa0] sm:$0xff]
  %v1816 = vld [vmem:[%s1 + $0xa8] sm:$0xff]
  %v1817 = vld [vmem:[%s1 + $0xb0] sm:$0xff]
  %v1818 = vld [vmem:[%s1 + $0xb8] sm:$0xff]
  %v1819 = vld [vmem:[%s1 + $0xc0] sm:$0xff]
  %v1820 = vld [vmem:[%s1 + $0xc8] sm:$0xff]
  %v1821 = vld [vmem:[%s1 + $0xd0] sm:$0xff]
  %v1822 = vld [vmem:[%s1 + $0xd8] sm:$0xff]
  %1824 = vset.pattern.permute.xlu0 0
  %1825 = vperm.xlu0 %1824, %v1799
  %v1826 = vpop.permute.xlu0 %1825
  %1829 = vset.pattern.permute.xlu0 0
  %1830 = vperm.xlu0 %1829, %v1800
  %v1831 = vpop.permute.xlu0 %1830
  %1834 = vset.pattern.permute.xlu0 0
  %1835 = vperm.xlu0 %1834, %v1801
  %v1836 = vpop.permute.xlu0 %1835
  %1839 = vset.pattern.permute.xlu0 0
  %1840 = vperm.xlu0 %1839, %v1802
  %v1841 = vpop.permute.xlu0 %1840
  %1844 = vset.pattern.permute.xlu0 0
  %1845 = vperm.xlu0 %1844, %v1803
  %v1846 = vpop.permute.xlu0 %1845
  %1849 = vset.pattern.permute.xlu0 0
  %1850 = vperm.xlu0 %1849, %v1804
  %v1851 = vpop.permute.xlu0 %1850
  %1854 = vset.pattern.permute.xlu0 0
  %1855 = vperm.xlu0 %1854, %v1805
  %v1856 = vpop.permute.xlu0 %1855
  %1859 = vset.pattern.permute.xlu0 0
  %1860 = vperm.xlu0 %1859, %v1806
  %v1861 = vpop.permute.xlu0 %1860
  %1864 = vset.pattern.permute.xlu0 0
  %1865 = vperm.xlu0 %1864, %v1807
  %v1866 = vpop.permute.xlu0 %1865
  %1869 = vset.pattern.permute.xlu0 0
  %1870 = vperm.xlu0 %1869, %v1808
  %v1871 = vpop.permute.xlu0 %1870
  %1874 = vset.pattern.permute.xlu0 0
  %1875 = vperm.xlu0 %1874, %v1809
  %v1876 = vpop.permute.xlu0 %1875
  %1879 = vset.pattern.permute.xlu0 0
  %1880 = vperm.xlu0 %1879, %v1810
  %v1881 = vpop.permute.xlu0 %1880
  %1884 = vset.pattern.permute.xlu0 0
  %1885 = vperm.xlu0 %1884, %v1811
  %v1886 = vpop.permute.xlu0 %1885
  %1889 = vset.pattern.permute.xlu0 0
  %1890 = vperm.xlu0 %1889, %v1812
  %v1891 = vpop.permute.xlu0 %1890
  %1894 = vset.pattern.permute.xlu0 0
  %1895 = vperm.xlu0 %1894, %v1813
  %v1896 = vpop.permute.xlu0 %1895
  %1899 = vset.pattern.permute.xlu0 0
  %1900 = vperm.xlu0 %1899, %v1814
  %v1901 = vpop.permute.xlu0 %1900
  %1904 = vset.pattern.permute.xlu0 0
  %1905 = vperm.xlu0 %1904, %v1815
  %v1906 = vpop.permute.xlu0 %1905
  %1909 = vset.pattern.permute.xlu0 0
  %1910 = vperm.xlu0 %1909, %v1816
  %v1911 = vpop.permute.xlu0 %1910
  %1914 = vset.pattern.permute.xlu0 0
  %1915 = vperm.xlu0 %1914, %v1817
  %v1916 = vpop.permute.xlu0 %1915
  %1919 = vset.pattern.permute.xlu0 0
  %1920 = vperm.xlu0 %1919, %v1818
  %v1921 = vpop.permute.xlu0 %1920
  %1924 = vset.pattern.permute.xlu0 0
  %1925 = vperm.xlu0 %1924, %v1819
  %v1926 = vpop.permute.xlu0 %1925
  %1929 = vset.pattern.permute.xlu0 0
  %1930 = vperm.xlu0 %1929, %v1820
  %v1931 = vpop.permute.xlu0 %1930
  %1934 = vset.pattern.permute.xlu0 0
  %1935 = vperm.xlu0 %1934, %v1821
  %v1936 = vpop.permute.xlu0 %1935
  %1939 = vset.pattern.permute.xlu0 0
  %1940 = vperm.xlu0 %1939, %v1822
  %v1941 = vpop.permute.xlu0 %1940
  %v1943 = vmul.f32 %v1826, %v1750
  %v1944 = vmul.f32 %v1831, %v1750
  %v1945 = vmul.f32 %v1836, %v1750
  %v1946 = vmul.f32 %v1841, %v1750
  %v1947 = vmul.f32 %v1846, %v1750
  %v1948 = vmul.f32 %v1851, %v1750
  %v1949 = vmul.f32 %v1856, %v1750
  %v1950 = vmul.f32 %v1861, %v1750
  %v1951 = vmul.f32 %v1866, %v1750
  %v1952 = vmul.f32 %v1871, %v1750
  %v1953 = vmul.f32 %v1876, %v1750
  %v1954 = vmul.f32 %v1881, %v1750
  %v1955 = vmul.f32 %v1886, %v1750
  %v1956 = vmul.f32 %v1891, %v1750
  %v1957 = vmul.f32 %v1896, %v1750
  %v1958 = vmul.f32 %v1901, %v1750
  %v1959 = vmul.f32 %v1906, %v1750
  %v1960 = vmul.f32 %v1911, %v1750
  %v1961 = vmul.f32 %v1916, %v1750
  %v1962 = vmul.f32 %v1921, %v1750
  %v1963 = vmul.f32 %v1926, %v1750
  %v1964 = vmul.f32 %v1931, %v1750
  %v1965 = vmul.f32 %v1936, %v1750
  %v1966 = vmul.f32 %v1941, %v1750
  %v1967 = vadd.f32 %v1578, %v1943
  %v1968 = vadd.f32 %v1579, %v1944
  %v1969 = vadd.f32 %v1580, %v1945
  %v1970 = vadd.f32 %v1581, %v1946
  %v1971 = vadd.f32 %v1582, %v1947
  %v1972 = vadd.f32 %v1583, %v1948
  %v1973 = vadd.f32 %v1584, %v1949
  %v1974 = vadd.f32 %v1585, %v1950
  %v1975 = vadd.f32 %v1586, %v1951
  %v1976 = vadd.f32 %v1587, %v1952
  %v1977 = vadd.f32 %v1588, %v1953
  %v1978 = vadd.f32 %v1589, %v1954
  %v1979 = vadd.f32 %v1590, %v1955
  %v1980 = vadd.f32 %v1591, %v1956
  %v1981 = vadd.f32 %v1592, %v1957
  %v1982 = vadd.f32 %v1593, %v1958
  %v1983 = vadd.f32 %v1594, %v1959
  %v1984 = vadd.f32 %v1595, %v1960
  %v1985 = vadd.f32 %v1596, %v1961
  %v1986 = vadd.f32 %v1597, %v1962
  %v1987 = vadd.f32 %v1598, %v1963
  %v1988 = vadd.f32 %v1599, %v1964
  %v1989 = vadd.f32 %v1600, %v1965
  %v1990 = vadd.f32 %v1601, %v1966
  %v1991 = vld [vmem:[%s3] sm:$0x1]
  %v1992 = vlaneseq
  %v1993 = vshrl.u32 %v1992, 7
  %v1994 = vsub.s32 0, %v1993
  %v1995 = vrot.slane %v1991, %v1994
  %v1996 = vmul.f32 %v270, %v1995
  %v1997 = vmul.f32 %v275, %v1995
  %v1998 = vmul.f32 %v280, %v1995
  %v1999 = vmul.f32 %v285, %v1995
  %v2000 = vmul.f32 %v290, %v1995
  %v2001 = vmul.f32 %v295, %v1995
  %v2002 = vmul.f32 %v300, %v1995
  %v2003 = vmul.f32 %v305, %v1995
  %v2004 = vmul.f32 %v310, %v1995
  %v2005 = vmul.f32 %v315, %v1995
  %v2006 = vmul.f32 %v320, %v1995
  %v2007 = vmul.f32 %v325, %v1995
  %v2008 = vmul.f32 %v330, %v1995
  %v2009 = vmul.f32 %v335, %v1995
  %v2010 = vmul.f32 %v340, %v1995
  %v2011 = vmul.f32 %v345, %v1995
  %v2012 = vmul.f32 %v350, %v1995
  %v2013 = vmul.f32 %v355, %v1995
  %v2014 = vmul.f32 %v360, %v1995
  %v2015 = vmul.f32 %v365, %v1995
  %v2016 = vmul.f32 %v370, %v1995
  %v2017 = vmul.f32 %v375, %v1995
  %v2018 = vmul.f32 %v380, %v1995
  %v2019 = vmul.f32 %v385, %v1995
  %v2020 = vadd.f32 %v1775, %v1996
  %v2021 = vadd.f32 %v1776, %v1997
  %v2022 = vadd.f32 %v1777, %v1998
  %v2023 = vadd.f32 %v1778, %v1999
  %v2024 = vadd.f32 %v1779, %v2000
  %v2025 = vadd.f32 %v1780, %v2001
  %v2026 = vadd.f32 %v1781, %v2002
  %v2027 = vadd.f32 %v1782, %v2003
  %v2028 = vadd.f32 %v1783, %v2004
  %v2029 = vadd.f32 %v1784, %v2005
  %v2030 = vadd.f32 %v1785, %v2006
  %v2031 = vadd.f32 %v1786, %v2007
  %v2032 = vadd.f32 %v1787, %v2008
  %v2033 = vadd.f32 %v1788, %v2009
  %v2034 = vadd.f32 %v1789, %v2010
  %v2035 = vadd.f32 %v1790, %v2011
  %v2036 = vadd.f32 %v1791, %v2012
  %v2037 = vadd.f32 %v1792, %v2013
  %v2038 = vadd.f32 %v1793, %v2014
  %v2039 = vadd.f32 %v1794, %v2015
  %v2040 = vadd.f32 %v1795, %v2016
  %v2041 = vadd.f32 %v1796, %v2017
  %v2042 = vadd.f32 %v1797, %v2018
  %v2043 = vadd.f32 %v1798, %v2019
  %v2044 = vmul.f32 %v463, %v1995
  %v2045 = vmul.f32 %v468, %v1995
  %v2046 = vmul.f32 %v473, %v1995
  %v2047 = vmul.f32 %v478, %v1995
  %v2048 = vmul.f32 %v483, %v1995
  %v2049 = vmul.f32 %v488, %v1995
  %v2050 = vmul.f32 %v493, %v1995
  %v2051 = vmul.f32 %v498, %v1995
  %v2052 = vmul.f32 %v503, %v1995
  %v2053 = vmul.f32 %v508, %v1995
  %v2054 = vmul.f32 %v513, %v1995
  %v2055 = vmul.f32 %v518, %v1995
  %v2056 = vmul.f32 %v523, %v1995
  %v2057 = vmul.f32 %v528, %v1995
  %v2058 = vmul.f32 %v533, %v1995
  %v2059 = vmul.f32 %v538, %v1995
  %v2060 = vmul.f32 %v543, %v1995
  %v2061 = vmul.f32 %v548, %v1995
  %v2062 = vmul.f32 %v553, %v1995
  %v2063 = vmul.f32 %v558, %v1995
  %v2064 = vmul.f32 %v563, %v1995
  %v2065 = vmul.f32 %v568, %v1995
  %v2066 = vmul.f32 %v573, %v1995
  %v2067 = vmul.f32 %v578, %v1995
  %v2068 = vadd.f32 %v1967, %v2044
  %v2069 = vadd.f32 %v1968, %v2045
  %v2070 = vadd.f32 %v1969, %v2046
  %v2071 = vadd.f32 %v1970, %v2047
  %v2072 = vadd.f32 %v1971, %v2048
  %v2073 = vadd.f32 %v1972, %v2049
  %v2074 = vadd.f32 %v1973, %v2050
  %v2075 = vadd.f32 %v1974, %v2051
  %v2076 = vadd.f32 %v1975, %v2052
  %v2077 = vadd.f32 %v1976, %v2053
  %v2078 = vadd.f32 %v1977, %v2054
  %v2079 = vadd.f32 %v1978, %v2055
  %v2080 = vadd.f32 %v1979, %v2056
  %v2081 = vadd.f32 %v1980, %v2057
  %v2082 = vadd.f32 %v1981, %v2058
  %v2083 = vadd.f32 %v1982, %v2059
  %v2084 = vadd.f32 %v1983, %v2060
  %v2085 = vadd.f32 %v1984, %v2061
  %v2086 = vadd.f32 %v1985, %v2062
  %v2087 = vadd.f32 %v1986, %v2063
  %v2088 = vadd.f32 %v1987, %v2064
  %v2089 = vadd.f32 %v1988, %v2065
  %v2090 = vadd.f32 %v1989, %v2066
  %v2091 = vadd.f32 %v1990, %v2067
  %v2092 = vld [vmem:[%s3 + $0x1] sm:$0x1]
  %v2093 = vlaneseq
  %v2094 = vshrl.u32 %v2093, 7
  %v2095 = vsub.s32 0, %v2094
  %v2096 = vrot.slane %v2092, %v2095
  %v2097 = vmul.f32 %v659, %v2096
  %v2098 = vmul.f32 %v664, %v2096
  %v2099 = vmul.f32 %v669, %v2096
  %v2100 = vmul.f32 %v674, %v2096
  %v2101 = vmul.f32 %v679, %v2096
  %v2102 = vmul.f32 %v684, %v2096
  %v2103 = vmul.f32 %v689, %v2096
  %v2104 = vmul.f32 %v694, %v2096
  %v2105 = vmul.f32 %v699, %v2096
  %v2106 = vmul.f32 %v704, %v2096
  %v2107 = vmul.f32 %v709, %v2096
  %v2108 = vmul.f32 %v714, %v2096
  %v2109 = vmul.f32 %v719, %v2096
  %v2110 = vmul.f32 %v724, %v2096
  %v2111 = vmul.f32 %v729, %v2096
  %v2112 = vmul.f32 %v734, %v2096
  %v2113 = vmul.f32 %v739, %v2096
  %v2114 = vmul.f32 %v744, %v2096
  %v2115 = vmul.f32 %v749, %v2096
  %v2116 = vmul.f32 %v754, %v2096
  %v2117 = vmul.f32 %v759, %v2096
  %v2118 = vmul.f32 %v764, %v2096
  %v2119 = vmul.f32 %v769, %v2096
  %v2120 = vmul.f32 %v774, %v2096
  %v2121 = vadd.f32 %v2020, %v2097
  %v2122 = vadd.f32 %v2021, %v2098
  %v2123 = vadd.f32 %v2022, %v2099
  %v2124 = vadd.f32 %v2023, %v2100
  %v2125 = vadd.f32 %v2024, %v2101
  %v2126 = vadd.f32 %v2025, %v2102
  %v2127 = vadd.f32 %v2026, %v2103
  %v2128 = vadd.f32 %v2027, %v2104
  %v2129 = vadd.f32 %v2028, %v2105
  %v2130 = vadd.f32 %v2029, %v2106
  %v2131 = vadd.f32 %v2030, %v2107
  %v2132 = vadd.f32 %v2031, %v2108
  %v2133 = vadd.f32 %v2032, %v2109
  %v2134 = vadd.f32 %v2033, %v2110
  %v2135 = vadd.f32 %v2034, %v2111
  %v2136 = vadd.f32 %v2035, %v2112
  %v2137 = vadd.f32 %v2036, %v2113
  %v2138 = vadd.f32 %v2037, %v2114
  %v2139 = vadd.f32 %v2038, %v2115
  %v2140 = vadd.f32 %v2039, %v2116
  %v2141 = vadd.f32 %v2040, %v2117
  %v2142 = vadd.f32 %v2041, %v2118
  %v2143 = vadd.f32 %v2042, %v2119
  %v2144 = vadd.f32 %v2043, %v2120
  %v2145 = vmul.f32 %v852, %v2096
  %v2146 = vmul.f32 %v857, %v2096
  %v2147 = vmul.f32 %v862, %v2096
  %v2148 = vmul.f32 %v867, %v2096
  %v2149 = vmul.f32 %v872, %v2096
  %v2150 = vmul.f32 %v877, %v2096
  %v2151 = vmul.f32 %v882, %v2096
  %v2152 = vmul.f32 %v887, %v2096
  %v2153 = vmul.f32 %v892, %v2096
  %v2154 = vmul.f32 %v897, %v2096
  %v2155 = vmul.f32 %v902, %v2096
  %v2156 = vmul.f32 %v907, %v2096
  %v2157 = vmul.f32 %v912, %v2096
  %v2158 = vmul.f32 %v917, %v2096
  %v2159 = vmul.f32 %v922, %v2096
  %v2160 = vmul.f32 %v927, %v2096
  %v2161 = vmul.f32 %v932, %v2096
  %v2162 = vmul.f32 %v937, %v2096
  %v2163 = vmul.f32 %v942, %v2096
  %v2164 = vmul.f32 %v947, %v2096
  %v2165 = vmul.f32 %v952, %v2096
  %v2166 = vmul.f32 %v957, %v2096
  %v2167 = vmul.f32 %v962, %v2096
  %v2168 = vmul.f32 %v967, %v2096
  %v2169 = vadd.f32 %v2068, %v2145
  %v2170 = vadd.f32 %v2069, %v2146
  %v2171 = vadd.f32 %v2070, %v2147
  %v2172 = vadd.f32 %v2071, %v2148
  %v2173 = vadd.f32 %v2072, %v2149
  %v2174 = vadd.f32 %v2073, %v2150
  %v2175 = vadd.f32 %v2074, %v2151
  %v2176 = vadd.f32 %v2075, %v2152
  %v2177 = vadd.f32 %v2076, %v2153
  %v2178 = vadd.f32 %v2077, %v2154
  %v2179 = vadd.f32 %v2078, %v2155
  %v2180 = vadd.f32 %v2079, %v2156
  %v2181 = vadd.f32 %v2080, %v2157
  %v2182 = vadd.f32 %v2081, %v2158
  %v2183 = vadd.f32 %v2082, %v2159
  %v2184 = vadd.f32 %v2083, %v2160
  %v2185 = vadd.f32 %v2084, %v2161
  %v2186 = vadd.f32 %v2085, %v2162
  %v2187 = vadd.f32 %v2086, %v2163
  %v2188 = vadd.f32 %v2087, %v2164
  %v2189 = vadd.f32 %v2088, %v2165
  %v2190 = vadd.f32 %v2089, %v2166
  %v2191 = vadd.f32 %v2090, %v2167
  %v2192 = vadd.f32 %v2091, %v2168
  %v2193 = vld [vmem:[%s3 + $0x2] sm:$0x1]
  %v2194 = vlaneseq
  %v2195 = vshrl.u32 %v2194, 7
  %v2196 = vsub.s32 0, %v2195
  %v2197 = vrot.slane %v2193, %v2196
  %v2198 = vmul.f32 %v1048, %v2197
  %v2199 = vmul.f32 %v1053, %v2197
  %v2200 = vmul.f32 %v1058, %v2197
  %v2201 = vmul.f32 %v1063, %v2197
  %v2202 = vmul.f32 %v1068, %v2197
  %v2203 = vmul.f32 %v1073, %v2197
  %v2204 = vmul.f32 %v1078, %v2197
  %v2205 = vmul.f32 %v1083, %v2197
  %v2206 = vmul.f32 %v1088, %v2197
  %v2207 = vmul.f32 %v1093, %v2197
  %v2208 = vmul.f32 %v1098, %v2197
  %v2209 = vmul.f32 %v1103, %v2197
  %v2210 = vmul.f32 %v1108, %v2197
  %v2211 = vmul.f32 %v1113, %v2197
  %v2212 = vmul.f32 %v1118, %v2197
  %v2213 = vmul.f32 %v1123, %v2197
  %v2214 = vmul.f32 %v1128, %v2197
  %v2215 = vmul.f32 %v1133, %v2197
  %v2216 = vmul.f32 %v1138, %v2197
  %v2217 = vmul.f32 %v1143, %v2197
  %v2218 = vmul.f32 %v1148, %v2197
  %v2219 = vmul.f32 %v1153, %v2197
  %v2220 = vmul.f32 %v1158, %v2197
  %v2221 = vmul.f32 %v1163, %v2197
  %v2222 = vadd.f32 %v2121, %v2198
  %v2223 = vadd.f32 %v2122, %v2199
  %v2224 = vadd.f32 %v2123, %v2200
  %v2225 = vadd.f32 %v2124, %v2201
  %v2226 = vadd.f32 %v2125, %v2202
  %v2227 = vadd.f32 %v2126, %v2203
  %v2228 = vadd.f32 %v2127, %v2204
  %v2229 = vadd.f32 %v2128, %v2205
  %v2230 = vadd.f32 %v2129, %v2206
  %v2231 = vadd.f32 %v2130, %v2207
  %v2232 = vadd.f32 %v2131, %v2208
  %v2233 = vadd.f32 %v2132, %v2209
  %v2234 = vadd.f32 %v2133, %v2210
  %v2235 = vadd.f32 %v2134, %v2211
  %v2236 = vadd.f32 %v2135, %v2212
  %v2237 = vadd.f32 %v2136, %v2213
  %v2238 = vadd.f32 %v2137, %v2214
  %v2239 = vadd.f32 %v2138, %v2215
  %v2240 = vadd.f32 %v2139, %v2216
  %v2241 = vadd.f32 %v2140, %v2217
  %v2242 = vadd.f32 %v2141, %v2218
  %v2243 = vadd.f32 %v2142, %v2219
  %v2244 = vadd.f32 %v2143, %v2220
  %v2245 = vadd.f32 %v2144, %v2221
  %v2246 = vmul.f32 %v1241, %v2197
  %v2247 = vmul.f32 %v1246, %v2197
  %v2248 = vmul.f32 %v1251, %v2197
  %v2249 = vmul.f32 %v1256, %v2197
  %v2250 = vmul.f32 %v1261, %v2197
  %v2251 = vmul.f32 %v1266, %v2197
  %v2252 = vmul.f32 %v1271, %v2197
  %v2253 = vmul.f32 %v1276, %v2197
  %v2254 = vmul.f32 %v1281, %v2197
  %v2255 = vmul.f32 %v1286, %v2197
  %v2256 = vmul.f32 %v1291, %v2197
  %v2257 = vmul.f32 %v1296, %v2197
  %v2258 = vmul.f32 %v1301, %v2197
  %v2259 = vmul.f32 %v1306, %v2197
  %v2260 = vmul.f32 %v1311, %v2197
  %v2261 = vmul.f32 %v1316, %v2197
  %v2262 = vmul.f32 %v1321, %v2197
  %v2263 = vmul.f32 %v1326, %v2197
  %v2264 = vmul.f32 %v1331, %v2197
  %v2265 = vmul.f32 %v1336, %v2197
  %v2266 = vmul.f32 %v1341, %v2197
  %v2267 = vmul.f32 %v1346, %v2197
  %v2268 = vmul.f32 %v1351, %v2197
  %v2269 = vmul.f32 %v1356, %v2197
  %v2270 = vadd.f32 %v2169, %v2246
  %v2271 = vadd.f32 %v2170, %v2247
  %v2272 = vadd.f32 %v2171, %v2248
  %v2273 = vadd.f32 %v2172, %v2249
  %v2274 = vadd.f32 %v2173, %v2250
  %v2275 = vadd.f32 %v2174, %v2251
  %v2276 = vadd.f32 %v2175, %v2252
  %v2277 = vadd.f32 %v2176, %v2253
  %v2278 = vadd.f32 %v2177, %v2254
  %v2279 = vadd.f32 %v2178, %v2255
  %v2280 = vadd.f32 %v2179, %v2256
  %v2281 = vadd.f32 %v2180, %v2257
  %v2282 = vadd.f32 %v2181, %v2258
  %v2283 = vadd.f32 %v2182, %v2259
  %v2284 = vadd.f32 %v2183, %v2260
  %v2285 = vadd.f32 %v2184, %v2261
  %v2286 = vadd.f32 %v2185, %v2262
  %v2287 = vadd.f32 %v2186, %v2263
  %v2288 = vadd.f32 %v2187, %v2264
  %v2289 = vadd.f32 %v2188, %v2265
  %v2290 = vadd.f32 %v2189, %v2266
  %v2291 = vadd.f32 %v2190, %v2267
  %v2292 = vadd.f32 %v2191, %v2268
  %v2293 = vadd.f32 %v2192, %v2269
  %v2294 = vld [vmem:[%s3 + $0x3] sm:$0x1]
  %v2295 = vlaneseq
  %v2296 = vshrl.u32 %v2295, 7
  %v2297 = vsub.s32 0, %v2296
  %v2298 = vrot.slane %v2294, %v2297
  %v2299 = vmul.f32 %v1437, %v2298
  %v2300 = vmul.f32 %v1442, %v2298
  %v2301 = vmul.f32 %v1447, %v2298
  %v2302 = vmul.f32 %v1452, %v2298
  %v2303 = vmul.f32 %v1457, %v2298
  %v2304 = vmul.f32 %v1462, %v2298
  %v2305 = vmul.f32 %v1467, %v2298
  %v2306 = vmul.f32 %v1472, %v2298
  %v2307 = vmul.f32 %v1477, %v2298
  %v2308 = vmul.f32 %v1482, %v2298
  %v2309 = vmul.f32 %v1487, %v2298
  %v2310 = vmul.f32 %v1492, %v2298
  %v2311 = vmul.f32 %v1497, %v2298
  %v2312 = vmul.f32 %v1502, %v2298
  %v2313 = vmul.f32 %v1507, %v2298
  %v2314 = vmul.f32 %v1512, %v2298
  %v2315 = vmul.f32 %v1517, %v2298
  %v2316 = vmul.f32 %v1522, %v2298
  %v2317 = vmul.f32 %v1527, %v2298
  %v2318 = vmul.f32 %v1532, %v2298
  %v2319 = vmul.f32 %v1537, %v2298
  %v2320 = vmul.f32 %v1542, %v2298
  %v2321 = vmul.f32 %v1547, %v2298
  %v2322 = vmul.f32 %v1552, %v2298
  %v2323 = vadd.f32 %v2222, %v2299
  %v2324 = vadd.f32 %v2223, %v2300
  %v2325 = vadd.f32 %v2224, %v2301
  %v2326 = vadd.f32 %v2225, %v2302
  %v2327 = vadd.f32 %v2226, %v2303
  %v2328 = vadd.f32 %v2227, %v2304
  %v2329 = vadd.f32 %v2228, %v2305
  %v2330 = vadd.f32 %v2229, %v2306
  %v2331 = vadd.f32 %v2230, %v2307
  %v2332 = vadd.f32 %v2231, %v2308
  %v2333 = vadd.f32 %v2232, %v2309
  %v2334 = vadd.f32 %v2233, %v2310
  %v2335 = vadd.f32 %v2234, %v2311
  %v2336 = vadd.f32 %v2235, %v2312
  %v2337 = vadd.f32 %v2236, %v2313
  %v2338 = vadd.f32 %v2237, %v2314
  %v2339 = vadd.f32 %v2238, %v2315
  %v2340 = vadd.f32 %v2239, %v2316
  %v2341 = vadd.f32 %v2240, %v2317
  %v2342 = vadd.f32 %v2241, %v2318
  %v2343 = vadd.f32 %v2242, %v2319
  %v2344 = vadd.f32 %v2243, %v2320
  %v2345 = vadd.f32 %v2244, %v2321
  %v2346 = vadd.f32 %v2245, %v2322
  %v2347 = vmul.f32 %v1630, %v2298
  %v2348 = vmul.f32 %v1635, %v2298
  %v2349 = vmul.f32 %v1640, %v2298
  %v2350 = vmul.f32 %v1645, %v2298
  %v2351 = vmul.f32 %v1650, %v2298
  %v2352 = vmul.f32 %v1655, %v2298
  %v2353 = vmul.f32 %v1660, %v2298
  %v2354 = vmul.f32 %v1665, %v2298
  %v2355 = vmul.f32 %v1670, %v2298
  %v2356 = vmul.f32 %v1675, %v2298
  %v2357 = vmul.f32 %v1680, %v2298
  %v2358 = vmul.f32 %v1685, %v2298
  %v2359 = vmul.f32 %v1690, %v2298
  %v2360 = vmul.f32 %v1695, %v2298
  %v2361 = vmul.f32 %v1700, %v2298
  %v2362 = vmul.f32 %v1705, %v2298
  %v2363 = vmul.f32 %v1710, %v2298
  %v2364 = vmul.f32 %v1715, %v2298
  %v2365 = vmul.f32 %v1720, %v2298
  %v2366 = vmul.f32 %v1725, %v2298
  %v2367 = vmul.f32 %v1730, %v2298
  %v2368 = vmul.f32 %v1735, %v2298
  %v2369 = vmul.f32 %v1740, %v2298
  %v2370 = vmul.f32 %v1745, %v2298
  %v2371 = vadd.f32 %v2270, %v2347
  %v2372 = vadd.f32 %v2271, %v2348
  %v2373 = vadd.f32 %v2272, %v2349
  %v2374 = vadd.f32 %v2273, %v2350
  %v2375 = vadd.f32 %v2274, %v2351
  %v2376 = vadd.f32 %v2275, %v2352
  %v2377 = vadd.f32 %v2276, %v2353
  %v2378 = vadd.f32 %v2277, %v2354
  %v2379 = vadd.f32 %v2278, %v2355
  %v2380 = vadd.f32 %v2279, %v2356
  %v2381 = vadd.f32 %v2280, %v2357
  %v2382 = vadd.f32 %v2281, %v2358
  %v2383 = vadd.f32 %v2282, %v2359
  %v2384 = vadd.f32 %v2283, %v2360
  %v2385 = vadd.f32 %v2284, %v2361
  %v2386 = vadd.f32 %v2285, %v2362
  %v2387 = vadd.f32 %v2286, %v2363
  %v2388 = vadd.f32 %v2287, %v2364
  %v2389 = vadd.f32 %v2288, %v2365
  %v2390 = vadd.f32 %v2289, %v2366
  %v2391 = vadd.f32 %v2290, %v2367
  %v2392 = vadd.f32 %v2291, %v2368
  %v2393 = vadd.f32 %v2292, %v2369
  %v2394 = vadd.f32 %v2293, %v2370
  %v2395 = vld [vmem:[%s4] sm:$0x1]
  %v2396 = vld [vmem:[%s5] sm:$0x1]
  %v2398 = vlaneseq
  %v2399 = vshrl.u32 %v2398, 7
  %v2400 = vsub.s32 0, %v2399
  %v2401 = vrot.slane %v2395, %v2400
  %v2403 = vmul.f32 %v2323, %v2401
  %v2404 = vmul.f32 %v2324, %v2401
  %v2405 = vmul.f32 %v2325, %v2401
  %v2406 = vmul.f32 %v2326, %v2401
  %v2407 = vmul.f32 %v2327, %v2401
  %v2408 = vmul.f32 %v2328, %v2401
  %v2409 = vmul.f32 %v2329, %v2401
  %v2410 = vmul.f32 %v2330, %v2401
  %v2411 = vmul.f32 %v2331, %v2401
  %v2412 = vmul.f32 %v2332, %v2401
  %v2413 = vmul.f32 %v2333, %v2401
  %v2414 = vmul.f32 %v2334, %v2401
  %v2415 = vmul.f32 %v2335, %v2401
  %v2416 = vmul.f32 %v2336, %v2401
  %v2417 = vmul.f32 %v2337, %v2401
  %v2418 = vmul.f32 %v2338, %v2401
  %v2419 = vmul.f32 %v2339, %v2401
  %v2420 = vmul.f32 %v2340, %v2401
  %v2421 = vmul.f32 %v2341, %v2401
  %v2422 = vmul.f32 %v2342, %v2401
  %v2423 = vmul.f32 %v2343, %v2401
  %v2424 = vmul.f32 %v2344, %v2401
  %v2425 = vmul.f32 %v2345, %v2401
  %v2426 = vmul.f32 %v2346, %v2401
  %v2428 = vlaneseq
  %v2429 = vshrl.u32 %v2428, 7
  %v2430 = vsub.s32 0, %v2429
  %v2431 = vrot.slane %v2396, %v2430
  %v2433 = vadd.f32 %v2403, %v2431
  %v2434 = vadd.f32 %v2404, %v2431
  %v2435 = vadd.f32 %v2405, %v2431
  %v2436 = vadd.f32 %v2406, %v2431
  %v2437 = vadd.f32 %v2407, %v2431
  %v2438 = vadd.f32 %v2408, %v2431
  %v2439 = vadd.f32 %v2409, %v2431
  %v2440 = vadd.f32 %v2410, %v2431
  %v2441 = vadd.f32 %v2411, %v2431
  %v2442 = vadd.f32 %v2412, %v2431
  %v2443 = vadd.f32 %v2413, %v2431
  %v2444 = vadd.f32 %v2414, %v2431
  %v2445 = vadd.f32 %v2415, %v2431
  %v2446 = vadd.f32 %v2416, %v2431
  %v2447 = vadd.f32 %v2417, %v2431
  %v2448 = vadd.f32 %v2418, %v2431
  %v2449 = vadd.f32 %v2419, %v2431
  %v2450 = vadd.f32 %v2420, %v2431
  %v2451 = vadd.f32 %v2421, %v2431
  %v2452 = vadd.f32 %v2422, %v2431
  %v2453 = vadd.f32 %v2423, %v2431
  %v2454 = vadd.f32 %v2424, %v2431
  %v2455 = vadd.f32 %v2425, %v2431
  %v2456 = vadd.f32 %v2426, %v2431
  %v2457 = vmax.f32 %v2433, 0.0
  %v2458 = vmax.f32 %v2434, 0.0
  %v2459 = vmax.f32 %v2435, 0.0
  %v2460 = vmax.f32 %v2436, 0.0
  %v2461 = vmax.f32 %v2437, 0.0
  %v2462 = vmax.f32 %v2438, 0.0
  %v2463 = vmax.f32 %v2439, 0.0
  %v2464 = vmax.f32 %v2440, 0.0
  %v2465 = vmax.f32 %v2441, 0.0
  %v2466 = vmax.f32 %v2442, 0.0
  %v2467 = vmax.f32 %v2443, 0.0
  %v2468 = vmax.f32 %v2444, 0.0
  %v2469 = vmax.f32 %v2445, 0.0
  %v2470 = vmax.f32 %v2446, 0.0
  %v2471 = vmax.f32 %v2447, 0.0
  %v2472 = vmax.f32 %v2448, 0.0
  %v2473 = vmax.f32 %v2449, 0.0
  %v2474 = vmax.f32 %v2450, 0.0
  %v2475 = vmax.f32 %v2451, 0.0
  %v2476 = vmax.f32 %v2452, 0.0
  %v2477 = vmax.f32 %v2453, 0.0
  %v2478 = vmax.f32 %v2454, 0.0
  %v2479 = vmax.f32 %v2455, 0.0
  %v2480 = vmax.f32 %v2456, 0.0
  %v2481 = vmul.f32 %v2371, %v2401
  %v2482 = vmul.f32 %v2372, %v2401
  %v2483 = vmul.f32 %v2373, %v2401
  %v2484 = vmul.f32 %v2374, %v2401
  %v2485 = vmul.f32 %v2375, %v2401
  %v2486 = vmul.f32 %v2376, %v2401
  %v2487 = vmul.f32 %v2377, %v2401
  %v2488 = vmul.f32 %v2378, %v2401
  %v2489 = vmul.f32 %v2379, %v2401
  %v2490 = vmul.f32 %v2380, %v2401
  %v2491 = vmul.f32 %v2381, %v2401
  %v2492 = vmul.f32 %v2382, %v2401
  %v2493 = vmul.f32 %v2383, %v2401
  %v2494 = vmul.f32 %v2384, %v2401
  %v2495 = vmul.f32 %v2385, %v2401
  %v2496 = vmul.f32 %v2386, %v2401
  %v2497 = vmul.f32 %v2387, %v2401
  %v2498 = vmul.f32 %v2388, %v2401
  %v2499 = vmul.f32 %v2389, %v2401
  %v2500 = vmul.f32 %v2390, %v2401
  %v2501 = vmul.f32 %v2391, %v2401
  %v2502 = vmul.f32 %v2392, %v2401
  %v2503 = vmul.f32 %v2393, %v2401
  %v2504 = vmul.f32 %v2394, %v2401
  %v2505 = vadd.f32 %v2481, %v2431
  %v2506 = vadd.f32 %v2482, %v2431
  %v2507 = vadd.f32 %v2483, %v2431
  %v2508 = vadd.f32 %v2484, %v2431
  %v2509 = vadd.f32 %v2485, %v2431
  %v2510 = vadd.f32 %v2486, %v2431
  %v2511 = vadd.f32 %v2487, %v2431
  %v2512 = vadd.f32 %v2488, %v2431
  %v2513 = vadd.f32 %v2489, %v2431
  %v2514 = vadd.f32 %v2490, %v2431
  %v2515 = vadd.f32 %v2491, %v2431
  %v2516 = vadd.f32 %v2492, %v2431
  %v2517 = vadd.f32 %v2493, %v2431
  %v2518 = vadd.f32 %v2494, %v2431
  %v2519 = vadd.f32 %v2495, %v2431
  %v2520 = vadd.f32 %v2496, %v2431
  %v2521 = vadd.f32 %v2497, %v2431
  %v2522 = vadd.f32 %v2498, %v2431
  %v2523 = vadd.f32 %v2499, %v2431
  %v2524 = vadd.f32 %v2500, %v2431
  %v2525 = vadd.f32 %v2501, %v2431
  %v2526 = vadd.f32 %v2502, %v2431
  %v2527 = vadd.f32 %v2503, %v2431
  %v2528 = vadd.f32 %v2504, %v2431
  %v2529 = vmax.f32 %v2505, 0.0
  %v2530 = vmax.f32 %v2506, 0.0
  %v2531 = vmax.f32 %v2507, 0.0
  %v2532 = vmax.f32 %v2508, 0.0
  %v2533 = vmax.f32 %v2509, 0.0
  %v2534 = vmax.f32 %v2510, 0.0
  %v2535 = vmax.f32 %v2511, 0.0
  %v2536 = vmax.f32 %v2512, 0.0
  %v2537 = vmax.f32 %v2513, 0.0
  %v2538 = vmax.f32 %v2514, 0.0
  %v2539 = vmax.f32 %v2515, 0.0
  %v2540 = vmax.f32 %v2516, 0.0
  %v2541 = vmax.f32 %v2517, 0.0
  %v2542 = vmax.f32 %v2518, 0.0
  %v2543 = vmax.f32 %v2519, 0.0
  %v2544 = vmax.f32 %v2520, 0.0
  %v2545 = vmax.f32 %v2521, 0.0
  %v2546 = vmax.f32 %v2522, 0.0
  %v2547 = vmax.f32 %v2523, 0.0
  %v2548 = vmax.f32 %v2524, 0.0
  %v2549 = vmax.f32 %v2525, 0.0
  %v2550 = vmax.f32 %v2526, 0.0
  %v2551 = vmax.f32 %v2527, 0.0
  %v2552 = vmax.f32 %v2528, 0.0
  %v2553 = vmax.f32 %v2457, %v2529
  %v2554 = vmax.f32 %v2458, %v2530
  %v2555 = vmax.f32 %v2459, %v2531
  %v2556 = vmax.f32 %v2460, %v2532
  %v2557 = vmax.f32 %v2461, %v2533
  %v2558 = vmax.f32 %v2462, %v2534
  %v2559 = vmax.f32 %v2463, %v2535
  %v2560 = vmax.f32 %v2464, %v2536
  %v2561 = vmax.f32 %v2465, %v2537
  %v2562 = vmax.f32 %v2466, %v2538
  %v2563 = vmax.f32 %v2467, %v2539
  %v2564 = vmax.f32 %v2468, %v2540
  %v2565 = vmax.f32 %v2469, %v2541
  %v2566 = vmax.f32 %v2470, %v2542
  %v2567 = vmax.f32 %v2471, %v2543
  %v2568 = vmax.f32 %v2472, %v2544
  %v2569 = vmax.f32 %v2473, %v2545
  %v2570 = vmax.f32 %v2474, %v2546
  %v2571 = vmax.f32 %v2475, %v2547
  %v2572 = vmax.f32 %v2476, %v2548
  %v2573 = vmax.f32 %v2477, %v2549
  %v2574 = vmax.f32 %v2478, %v2550
  %v2575 = vmax.f32 %v2479, %v2551
  %v2576 = vmax.f32 %v2480, %v2552
  %vm2577 = vcmask 523264
  %2578 = vst.msk [vmem:[#allocation2] sm:$0xff] %vm2577, 0.0
  %2579 = vst.msk [vmem:[#allocation2 + $0x8] sm:$0xff] %vm2577, 0.0
  %2580 = vst.msk [vmem:[#allocation2 + $0xd0] sm:$0xff] %vm2577, 0.0
  %2581 = vst.msk [vmem:[#allocation2 + $0xd8] sm:$0xff] %vm2577, 0.0
  %2582 = vst.msk [vmem:[#allocation2 + $0x10] sm:$0xff] %vm2577, %v2553
  %2583 = vst.msk [vmem:[#allocation2 + $0x18] sm:$0xff] %vm2577, %v2554
  %2584 = vst.msk [vmem:[#allocation2 + $0x20] sm:$0xff] %vm2577, %v2555
  %2585 = vst.msk [vmem:[#allocation2 + $0x28] sm:$0xff] %vm2577, %v2556
  %2586 = vst.msk [vmem:[#allocation2 + $0x30] sm:$0xff] %vm2577, %v2557
  %2587 = vst.msk [vmem:[#allocation2 + $0x38] sm:$0xff] %vm2577, %v2558
  %2588 = vst.msk [vmem:[#allocation2 + $0x40] sm:$0xff] %vm2577, %v2559
  %2589 = vst.msk [vmem:[#allocation2 + $0x48] sm:$0xff] %vm2577, %v2560
  %2590 = vst.msk [vmem:[#allocation2 + $0x50] sm:$0xff] %vm2577, %v2561
  %2591 = vst.msk [vmem:[#allocation2 + $0x58] sm:$0xff] %vm2577, %v2562
  %2592 = vst.msk [vmem:[#allocation2 + $0x60] sm:$0xff] %vm2577, %v2563
  %2593 = vst.msk [vmem:[#allocation2 + $0x68] sm:$0xff] %vm2577, %v2564
  %2594 = vst.msk [vmem:[#allocation2 + $0x70] sm:$0xff] %vm2577, %v2565
  %2595 = vst.msk [vmem:[#allocation2 + $0x78] sm:$0xff] %vm2577, %v2566
  %2596 = vst.msk [vmem:[#allocation2 + $0x80] sm:$0xff] %vm2577, %v2567
  %2597 = vst.msk [vmem:[#allocation2 + $0x88] sm:$0xff] %vm2577, %v2568
  %2598 = vst.msk [vmem:[#allocation2 + $0x90] sm:$0xff] %vm2577, %v2569
  %2599 = vst.msk [vmem:[#allocation2 + $0x98] sm:$0xff] %vm2577, %v2570
  %2600 = vst.msk [vmem:[#allocation2 + $0xa0] sm:$0xff] %vm2577, %v2571
  %2601 = vst.msk [vmem:[#allocation2 + $0xa8] sm:$0xff] %vm2577, %v2572
  %2602 = vst.msk [vmem:[#allocation2 + $0xb0] sm:$0xff] %vm2577, %v2573
  %2603 = vst.msk [vmem:[#allocation2 + $0xb8] sm:$0xff] %vm2577, %v2574
  %2604 = vst.msk [vmem:[#allocation2 + $0xc0] sm:$0xff] %vm2577, %v2575
  %2605 = vst.msk [vmem:[#allocation2 + $0xc8] sm:$0xff] %vm2577, %v2576
  %v2606 = vld [vmem:[#allocation2] sm:$0xff]
  %v2607 = vld [vmem:[#allocation2 + $0x8] sm:$0xff]
  %v2608 = vld [vmem:[#allocation2 + $0x10] sm:$0xff]
  %v2609 = vld [vmem:[#allocation2 + $0x18] sm:$0xff]
  %v2610 = vld [vmem:[#allocation2 + $0x20] sm:$0xff]
  %v2611 = vld [vmem:[#allocation2 + $0x28] sm:$0xff]
  %v2612 = vld [vmem:[#allocation2 + $0x30] sm:$0xff]
  %v2613 = vld [vmem:[#allocation2 + $0x38] sm:$0xff]
  %v2614 = vld [vmem:[#allocation2 + $0x40] sm:$0xff]
  %v2615 = vld [vmem:[#allocation2 + $0x48] sm:$0xff]
  %v2616 = vld [vmem:[#allocation2 + $0x50] sm:$0xff]
  %v2617 = vld [vmem:[#allocation2 + $0x58] sm:$0xff]
  %v2618 = vld [vmem:[#allocation2 + $0x60] sm:$0xff]
  %v2619 = vld [vmem:[#allocation2 + $0x68] sm:$0xff]
  %v2620 = vld [vmem:[#allocation2 + $0x70] sm:$0xff]
  %v2621 = vld [vmem:[#allocation2 + $0x78] sm:$0xff]
  %v2622 = vld [vmem:[#allocation2 + $0x80] sm:$0xff]
  %v2623 = vld [vmem:[#allocation2 + $0x88] sm:$0xff]
  %v2624 = vld [vmem:[#allocation2 + $0x90] sm:$0xff]
  %v2625 = vld [vmem:[#allocation2 + $0x98] sm:$0xff]
  %v2626 = vld [vmem:[#allocation2 + $0xa0] sm:$0xff]
  %v2627 = vld [vmem:[#allocation2 + $0xa8] sm:$0xff]
  %v2628 = vld [vmem:[#allocation2 + $0xb0] sm:$0xff]
  %v2629 = vld [vmem:[#allocation2 + $0xb8] sm:$0xff]
  %2630 = vst.msk [vmem:[#allocation3] sm:$0xff] %vm2577, %v2606
  %2631 = vst.msk [vmem:[#allocation3 + $0x18] sm:$0xff] %vm2577, %v2607
  %2632 = vst.msk [vmem:[#allocation3 + $0x30] sm:$0xff] %vm2577, %v2608
  %2633 = vst.msk [vmem:[#allocation3 + $0x48] sm:$0xff] %vm2577, %v2609
  %2634 = vst.msk [vmem:[#allocation3 + $0x60] sm:$0xff] %vm2577, %v2610
  %2635 = vst.msk [vmem:[#allocation3 + $0x78] sm:$0xff] %vm2577, %v2611
  %2636 = vst.msk [vmem:[#allocation3 + $0x90] sm:$0xff] %vm2577, %v2612
  %2637 = vst.msk [vmem:[#allocation3 + $0xa8] sm:$0xff] %vm2577, %v2613
  %2638 = vst.msk [vmem:[#allocation3 + $0xc0] sm:$0xff] %vm2577, %v2614
  %2639 = vst.msk [vmem:[#allocation3 + $0xd8] sm:$0xff] %vm2577, %v2615
  %2640 = vst.msk [vmem:[#allocation3 + $0xf0] sm:$0xff] %vm2577, %v2616
  %2641 = vst.msk [vmem:[#allocation3 + $0x108] sm:$0xff] %vm2577, %v2617
  %2642 = vst.msk [vmem:[#allocation3 + $0x120] sm:$0xff] %vm2577, %v2618
  %2643 = vst.msk [vmem:[#allocation3 + $0x138] sm:$0xff] %vm2577, %v2619
  %2644 = vst.msk [vmem:[#allocation3 + $0x150] sm:$0xff] %vm2577, %v2620
  %2645 = vst.msk [vmem:[#allocation3 + $0x168] sm:$0xff] %vm2577, %v2621
  %2646 = vst.msk [vmem:[#allocation3 + $0x180] sm:$0xff] %vm2577, %v2622
  %2647 = vst.msk [vmem:[#allocation3 + $0x198] sm:$0xff] %vm2577, %v2623
  %2648 = vst.msk [vmem:[#allocation3 + $0x1b0] sm:$0xff] %vm2577, %v2624
  %2649 = vst.msk [vmem:[#allocation3 + $0x1c8] sm:$0xff] %vm2577, %v2625
  %2650 = vst.msk [vmem:[#allocation3 + $0x1e0] sm:$0xff] %vm2577, %v2626
  %2651 = vst.msk [vmem:[#allocation3 + $0x1f8] sm:$0xff] %vm2577, %v2627
  %2652 = vst.msk [vmem:[#allocation3 + $0x210] sm:$0xff] %vm2577, %v2628
  %2653 = vst.msk [vmem:[#allocation3 + $0x228] sm:$0xff] %vm2577, %v2629
  %v2654 = vld [vmem:[#allocation2 + $0x8] sm:$0xff]
  %v2655 = vld [vmem:[#allocation2 + $0x10] sm:$0xff]
  %v2656 = vld [vmem:[#allocation2 + $0x18] sm:$0xff]
  %v2657 = vld [vmem:[#allocation2 + $0x20] sm:$0xff]
  %v2658 = vld [vmem:[#allocation2 + $0x28] sm:$0xff]
  %v2659 = vld [vmem:[#allocation2 + $0x30] sm:$0xff]
  %v2660 = vld [vmem:[#allocation2 + $0x38] sm:$0xff]
  %v2661 = vld [vmem:[#allocation2 + $0x40] sm:$0xff]
  %v2662 = vld [vmem:[#allocation2 + $0x48] sm:$0xff]
  %v2663 = vld [vmem:[#allocation2 + $0x50] sm:$0xff]
  %v2664 = vld [vmem:[#allocation2 + $0x58] sm:$0xff]
  %v2665 = vld [vmem:[#allocation2 + $0x60] sm:$0xff]
  %v2666 = vld [vmem:[#allocation2 + $0x68] sm:$0xff]
  %v2667 = vld [vmem:[#allocation2 + $0x70] sm:$0xff]
  %v2668 = vld [vmem:[#allocation2 + $0x78] sm:$0xff]
  %v2669 = vld [vmem:[#allocation2 + $0x80] sm:$0xff]
  %v2670 = vld [vmem:[#allocation2 + $0x88] sm:$0xff]
  %v2671 = vld [vmem:[#allocation2 + $0x90] sm:$0xff]
  %v2672 = vld [vmem:[#allocation2 + $0x98] sm:$0xff]
  %v2673 = vld [vmem:[#allocation2 + $0xa0] sm:$0xff]
  %v2674 = vld [vmem:[#allocation2 + $0xa8] sm:$0xff]
  %v2675 = vld [vmem:[#allocation2 + $0xb0] sm:$0xff]
  %v2676 = vld [vmem:[#allocation2 + $0xb8] sm:$0xff]
  %v2677 = vld [vmem:[#allocation2 + $0xc0] sm:$0xff]
  %2702 = vrot.lane.b32.xlu0 %v2654, 64
  %v2703 = vpop.permute.xlu0 %2702
  %2704 = vrot.lane.b32.xlu0 %v2655, 64
  %v2705 = vpop.permute.xlu0 %2704
  %2706 = vrot.lane.b32.xlu0 %v2656, 64
  %v2707 = vpop.permute.xlu0 %2706
  %2708 = vrot.lane.b32.xlu0 %v2657, 64
  %v2709 = vpop.permute.xlu0 %2708
  %2710 = vrot.lane.b32.xlu0 %v2658, 64
  %v2711 = vpop.permute.xlu0 %2710
  %2712 = vrot.lane.b32.xlu0 %v2659, 64
  %v2713 = vpop.permute.xlu0 %2712
  %2714 = vrot.lane.b32.xlu0 %v2660, 64
  %v2715 = vpop.permute.xlu0 %2714
  %2716 = vrot.lane.b32.xlu0 %v2661, 64
  %v2717 = vpop.permute.xlu0 %2716
  %2718 = vrot.lane.b32.xlu0 %v2662, 64
  %v2719 = vpop.permute.xlu0 %2718
  %2720 = vrot.lane.b32.xlu0 %v2663, 64
  %v2721 = vpop.permute.xlu0 %2720
  %2722 = vrot.lane.b32.xlu0 %v2664, 64
  %v2723 = vpop.permute.xlu0 %2722
  %2724 = vrot.lane.b32.xlu0 %v2665, 64
  %v2725 = vpop.permute.xlu0 %2724
  %2726 = vrot.lane.b32.xlu0 %v2666, 64
  %v2727 = vpop.permute.xlu0 %2726
  %2728 = vrot.lane.b32.xlu0 %v2667, 64
  %v2729 = vpop.permute.xlu0 %2728
  %2730 = vrot.lane.b32.xlu0 %v2668, 64
  %v2731 = vpop.permute.xlu0 %2730
  %2732 = vrot.lane.b32.xlu0 %v2669, 64
  %v2733 = vpop.permute.xlu0 %2732
  %2734 = vrot.lane.b32.xlu0 %v2670, 64
  %v2735 = vpop.permute.xlu0 %2734
  %2736 = vrot.lane.b32.xlu0 %v2671, 64
  %v2737 = vpop.permute.xlu0 %2736
  %2738 = vrot.lane.b32.xlu0 %v2672, 64
  %v2739 = vpop.permute.xlu0 %2738
  %2740 = vrot.lane.b32.xlu0 %v2673, 64
  %v2741 = vpop.permute.xlu0 %2740
  %2742 = vrot.lane.b32.xlu0 %v2674, 64
  %v2743 = vpop.permute.xlu0 %2742
  %2744 = vrot.lane.b32.xlu0 %v2675, 64
  %v2745 = vpop.permute.xlu0 %2744
  %2746 = vrot.lane.b32.xlu0 %v2676, 64
  %v2747 = vpop.permute.xlu0 %2746
  %2748 = vrot.lane.b32.xlu0 %v2677, 64
  %v2749 = vpop.permute.xlu0 %2748
  %vm2774 = vcmask 1048064
  %2775 = vst.msk [vmem:[#allocation3] sm:$0xff] %vm2774, %v2703
  %2776 = vst.msk [vmem:[#allocation3 + $0x18] sm:$0xff] %vm2774, %v2705
  %2777 = vst.msk [vmem:[#allocation3 + $0x30] sm:$0xff] %vm2774, %v2707
  %2778 = vst.msk [vmem:[#allocation3 + $0x48] sm:$0xff] %vm2774, %v2709
  %2779 = vst.msk [vmem:[#allocation3 + $0x60] sm:$0xff] %vm2774, %v2711
  %2780 = vst.msk [vmem:[#allocation3 + $0x78] sm:$0xff] %vm2774, %v2713
  %2781 = vst.msk [vmem:[#allocation3 + $0x90] sm:$0xff] %vm2774, %v2715
  %2782 = vst.msk [vmem:[#allocation3 + $0xa8] sm:$0xff] %vm2774, %v2717
  %2783 = vst.msk [vmem:[#allocation3 + $0xc0] sm:$0xff] %vm2774, %v2719
  %2784 = vst.msk [vmem:[#allocation3 + $0xd8] sm:$0xff] %vm2774, %v2721
  %2785 = vst.msk [vmem:[#allocation3 + $0xf0] sm:$0xff] %vm2774, %v2723
  %2786 = vst.msk [vmem:[#allocation3 + $0x108] sm:$0xff] %vm2774, %v2725
  %2787 = vst.msk [vmem:[#allocation3 + $0x120] sm:$0xff] %vm2774, %v2727
  %2788 = vst.msk [vmem:[#allocation3 + $0x138] sm:$0xff] %vm2774, %v2729
  %2789 = vst.msk [vmem:[#allocation3 + $0x150] sm:$0xff] %vm2774, %v2731
  %2790 = vst.msk [vmem:[#allocation3 + $0x168] sm:$0xff] %vm2774, %v2733
  %2791 = vst.msk [vmem:[#allocation3 + $0x180] sm:$0xff] %vm2774, %v2735
  %2792 = vst.msk [vmem:[#allocation3 + $0x198] sm:$0xff] %vm2774, %v2737
  %2793 = vst.msk [vmem:[#allocation3 + $0x1b0] sm:$0xff] %vm2774, %v2739
  %2794 = vst.msk [vmem:[#allocation3 + $0x1c8] sm:$0xff] %vm2774, %v2741
  %2795 = vst.msk [vmem:[#allocation3 + $0x1e0] sm:$0xff] %vm2774, %v2743
  %2796 = vst.msk [vmem:[#allocation3 + $0x1f8] sm:$0xff] %vm2774, %v2745
  %2797 = vst.msk [vmem:[#allocation3 + $0x210] sm:$0xff] %vm2774, %v2747
  %2798 = vst.msk [vmem:[#allocation3 + $0x228] sm:$0xff] %vm2774, %v2749
  %v2799 = vld [vmem:[#allocation2 + $0x10] sm:$0xff]
  %v2800 = vld [vmem:[#allocation2 + $0x18] sm:$0xff]
  %v2801 = vld [vmem:[#allocation2 + $0x20] sm:$0xff]
  %v2802 = vld [vmem:[#allocation2 + $0x28] sm:$0xff]
  %v2803 = vld [vmem:[#allocation2 + $0x30] sm:$0xff]
  %v2804 = vld [vmem:[#allocation2 + $0x38] sm:$0xff]
  %v2805 = vld [vmem:[#allocation2 + $0x40] sm:$0xff]
  %v2806 = vld [vmem:[#allocation2 + $0x48] sm:$0xff]
  %v2807 = vld [vmem:[#allocation2 + $0x50] sm:$0xff]
  %v2808 = vld [vmem:[#allocation2 + $0x58] sm:$0xff]
  %v2809 = vld [vmem:[#allocation2 + $0x60] sm:$0xff]
  %v2810 = vld [vmem:[#allocation2 + $0x68] sm:$0xff]
  %v2811 = vld [vmem:[#allocation2 + $0x70] sm:$0xff]
  %v2812 = vld [vmem:[#allocation2 + $0x78] sm:$0xff]
  %v2813 = vld [vmem:[#allocation2 + $0x80] sm:$0xff]
  %v2814 = vld [vmem:[#allocation2 + $0x88] sm:$0xff]
  %v2815 = vld [vmem:[#allocation2 + $0x90] sm:$0xff]
  %v2816 = vld [vmem:[#allocation2 + $0x98] sm:$0xff]
  %v2817 = vld [vmem:[#allocation2 + $0xa0] sm:$0xff]
  %v2818 = vld [vmem:[#allocation2 + $0xa8] sm:$0xff]
  %v2819 = vld [vmem:[#allocation2 + $0xb0] sm:$0xff]
  %v2820 = vld [vmem:[#allocation2 + $0xb8] sm:$0xff]
  %v2821 = vld [vmem:[#allocation2 + $0xc0] sm:$0xff]
  %v2822 = vld [vmem:[#allocation2 + $0xc8] sm:$0xff]
  %2823 = vst.msk [vmem:[#allocation3 + $0x8] sm:$0xff] %vm2577, %v2799
  %2824 = vst.msk [vmem:[#allocation3 + $0x20] sm:$0xff] %vm2577, %v2800
  %2825 = vst.msk [vmem:[#allocation3 + $0x38] sm:$0xff] %vm2577, %v2801
  %2826 = vst.msk [vmem:[#allocation3 + $0x50] sm:$0xff] %vm2577, %v2802
  %2827 = vst.msk [vmem:[#allocation3 + $0x68] sm:$0xff] %vm2577, %v2803
  %2828 = vst.msk [vmem:[#allocation3 + $0x80] sm:$0xff] %vm2577, %v2804
  %2829 = vst.msk [vmem:[#allocation3 + $0x98] sm:$0xff] %vm2577, %v2805
  %2830 = vst.msk [vmem:[#allocation3 + $0xb0] sm:$0xff] %vm2577, %v2806
  %2831 = vst.msk [vmem:[#allocation3 + $0xc8] sm:$0xff] %vm2577, %v2807
  %2832 = vst.msk [vmem:[#allocation3 + $0xe0] sm:$0xff] %vm2577, %v2808
  %2833 = vst.msk [vmem:[#allocation3 + $0xf8] sm:$0xff] %vm2577, %v2809
  %2834 = vst.msk [vmem:[#allocation3 + $0x110] sm:$0xff] %vm2577, %v2810
  %2835 = vst.msk [vmem:[#allocation3 + $0x128] sm:$0xff] %vm2577, %v2811
  %2836 = vst.msk [vmem:[#allocation3 + $0x140] sm:$0xff] %vm2577, %v2812
  %2837 = vst.msk [vmem:[#allocation3 + $0x158] sm:$0xff] %vm2577, %v2813
  %2838 = vst.msk [vmem:[#allocation3 + $0x170] sm:$0xff] %vm2577, %v2814
  %2839 = vst.msk [vmem:[#allocation3 + $0x188] sm:$0xff] %vm2577, %v2815
  %2840 = vst.msk [vmem:[#allocation3 + $0x1a0] sm:$0xff] %vm2577, %v2816
  %2841 = vst.msk [vmem:[#allocation3 + $0x1b8] sm:$0xff] %vm2577, %v2817
  %2842 = vst.msk [vmem:[#allocation3 + $0x1d0] sm:$0xff] %vm2577, %v2818
  %2843 = vst.msk [vmem:[#allocation3 + $0x1e8] sm:$0xff] %vm2577, %v2819
  %2844 = vst.msk [vmem:[#allocation3 + $0x200] sm:$0xff] %vm2577, %v2820
  %2845 = vst.msk [vmem:[#allocation3 + $0x218] sm:$0xff] %vm2577, %v2821
  %2846 = vst.msk [vmem:[#allocation3 + $0x230] sm:$0xff] %vm2577, %v2822
  %v2847 = vld [vmem:[#allocation2 + $0x18] sm:$0xff]
  %v2848 = vld [vmem:[#allocation2 + $0x20] sm:$0xff]
  %v2849 = vld [vmem:[#allocation2 + $0x28] sm:$0xff]
  %v2850 = vld [vmem:[#allocation2 + $0x30] sm:$0xff]
  %v2851 = vld [vmem:[#allocation2 + $0x38] sm:$0xff]
  %v2852 = vld [vmem:[#allocation2 + $0x40] sm:$0xff]
  %v2853 = vld [vmem:[#allocation2 + $0x48] sm:$0xff]
  %v2854 = vld [vmem:[#allocation2 + $0x50] sm:$0xff]
  %v2855 = vld [vmem:[#allocation2 + $0x58] sm:$0xff]
  %v2856 = vld [vmem:[#allocation2 + $0x60] sm:$0xff]
  %v2857 = vld [vmem:[#allocation2 + $0x68] sm:$0xff]
  %v2858 = vld [vmem:[#allocation2 + $0x70] sm:$0xff]
  %v2859 = vld [vmem:[#allocation2 + $0x78] sm:$0xff]
  %v2860 = vld [vmem:[#allocation2 + $0x80] sm:$0xff]
  %v2861 = vld [vmem:[#allocation2 + $0x88] sm:$0xff]
  %v2862 = vld [vmem:[#allocation2 + $0x90] sm:$0xff]
  %v2863 = vld [vmem:[#allocation2 + $0x98] sm:$0xff]
  %v2864 = vld [vmem:[#allocation2 + $0xa0] sm:$0xff]
  %v2865 = vld [vmem:[#allocation2 + $0xa8] sm:$0xff]
  %v2866 = vld [vmem:[#allocation2 + $0xb0] sm:$0xff]
  %v2867 = vld [vmem:[#allocation2 + $0xb8] sm:$0xff]
  %v2868 = vld [vmem:[#allocation2 + $0xc0] sm:$0xff]
  %v2869 = vld [vmem:[#allocation2 + $0xc8] sm:$0xff]
  %v2870 = vld [vmem:[#allocation2 + $0xd0] sm:$0xff]
  %2895 = vrot.lane.b32.xlu0 %v2847, 64
  %v2896 = vpop.permute.xlu0 %2895
  %2897 = vrot.lane.b32.xlu0 %v2848, 64
  %v2898 = vpop.permute.xlu0 %2897
  %2899 = vrot.lane.b32.xlu0 %v2849, 64
  %v2900 = vpop.permute.xlu0 %2899
  %2901 = vrot.lane.b32.xlu0 %v2850, 64
  %v2902 = vpop.permute.xlu0 %2901
  %2903 = vrot.lane.b32.xlu0 %v2851, 64
  %v2904 = vpop.permute.xlu0 %2903
  %2905 = vrot.lane.b32.xlu0 %v2852, 64
  %v2906 = vpop.permute.xlu0 %2905
  %2907 = vrot.lane.b32.xlu0 %v2853, 64
  %v2908 = vpop.permute.xlu0 %2907
  %2909 = vrot.lane.b32.xlu0 %v2854, 64
  %v2910 = vpop.permute.xlu0 %2909
  %2911 = vrot.lane.b32.xlu0 %v2855, 64
  %v2912 = vpop.permute.xlu0 %2911
  %2913 = vrot.lane.b32.xlu0 %v2856, 64
  %v2914 = vpop.permute.xlu0 %2913
  %2915 = vrot.lane.b32.xlu0 %v2857, 64
  %v2916 = vpop.permute.xlu0 %2915
  %2917 = vrot.lane.b32.xlu0 %v2858, 64
  %v2918 = vpop.permute.xlu0 %2917
  %2919 = vrot.lane.b32.xlu0 %v2859, 64
  %v2920 = vpop.permute.xlu0 %2919
  %2921 = vrot.lane.b32.xlu0 %v2860, 64
  %v2922 = vpop.permute.xlu0 %2921
  %2923 = vrot.lane.b32.xlu0 %v2861, 64
  %v2924 = vpop.permute.xlu0 %2923
  %2925 = vrot.lane.b32.xlu0 %v2862, 64
  %v2926 = vpop.permute.xlu0 %2925
  %2927 = vrot.lane.b32.xlu0 %v2863, 64
  %v2928 = vpop.permute.xlu0 %2927
  %2929 = vrot.lane.b32.xlu0 %v2864, 64
  %v2930 = vpop.permute.xlu0 %2929
  %2931 = vrot.lane.b32.xlu0 %v2865, 64
  %v2932 = vpop.permute.xlu0 %2931
  %2933 = vrot.lane.b32.xlu0 %v2866, 64
  %v2934 = vpop.permute.xlu0 %2933
  %2935 = vrot.lane.b32.xlu0 %v2867, 64
  %v2936 = vpop.permute.xlu0 %2935
  %2937 = vrot.lane.b32.xlu0 %v2868, 64
  %v2938 = vpop.permute.xlu0 %2937
  %2939 = vrot.lane.b32.xlu0 %v2869, 64
  %v2940 = vpop.permute.xlu0 %2939
  %2941 = vrot.lane.b32.xlu0 %v2870, 64
  %v2942 = vpop.permute.xlu0 %2941
  %2967 = vst.msk [vmem:[#allocation3 + $0x8] sm:$0xff] %vm2774, %v2896
  %2968 = vst.msk [vmem:[#allocation3 + $0x20] sm:$0xff] %vm2774, %v2898
  %2969 = vst.msk [vmem:[#allocation3 + $0x38] sm:$0xff] %vm2774, %v2900
  %2970 = vst.msk [vmem:[#allocation3 + $0x50] sm:$0xff] %vm2774, %v2902
  %2971 = vst.msk [vmem:[#allocation3 + $0x68] sm:$0xff] %vm2774, %v2904
  %2972 = vst.msk [vmem:[#allocation3 + $0x80] sm:$0xff] %vm2774, %v2906
  %2973 = vst.msk [vmem:[#allocation3 + $0x98] sm:$0xff] %vm2774, %v2908
  %2974 = vst.msk [vmem:[#allocation3 + $0xb0] sm:$0xff] %vm2774, %v2910
  %2975 = vst.msk [vmem:[#allocation3 + $0xc8] sm:$0xff] %vm2774, %v2912
  %2976 = vst.msk [vmem:[#allocation3 + $0xe0] sm:$0xff] %vm2774, %v2914
  %2977 = vst.msk [vmem:[#allocation3 + $0xf8] sm:$0xff] %vm2774, %v2916
  %2978 = vst.msk [vmem:[#allocation3 + $0x110] sm:$0xff] %vm2774, %v2918
  %2979 = vst.msk [vmem:[#allocation3 + $0x128] sm:$0xff] %vm2774, %v2920
  %2980 = vst.msk [vmem:[#allocation3 + $0x140] sm:$0xff] %vm2774, %v2922
  %2981 = vst.msk [vmem:[#allocation3 + $0x158] sm:$0xff] %vm2774, %v2924
  %2982 = vst.msk [vmem:[#allocation3 + $0x170] sm:$0xff] %vm2774, %v2926
  %2983 = vst.msk [vmem:[#allocation3 + $0x188] sm:$0xff] %vm2774, %v2928
  %2984 = vst.msk [vmem:[#allocation3 + $0x1a0] sm:$0xff] %vm2774, %v2930
  %2985 = vst.msk [vmem:[#allocation3 + $0x1b8] sm:$0xff] %vm2774, %v2932
  %2986 = vst.msk [vmem:[#allocation3 + $0x1d0] sm:$0xff] %vm2774, %v2934
  %2987 = vst.msk [vmem:[#allocation3 + $0x1e8] sm:$0xff] %vm2774, %v2936
  %2988 = vst.msk [vmem:[#allocation3 + $0x200] sm:$0xff] %vm2774, %v2938
  %2989 = vst.msk [vmem:[#allocation3 + $0x218] sm:$0xff] %vm2774, %v2940
  %2990 = vst.msk [vmem:[#allocation3 + $0x230] sm:$0xff] %vm2774, %v2942
  %v2991 = vld [vmem:[#allocation2 + $0x20] sm:$0xff]
  %v2992 = vld [vmem:[#allocation2 + $0x28] sm:$0xff]
  %v2993 = vld [vmem:[#allocation2 + $0x30] sm:$0xff]
  %v2994 = vld [vmem:[#allocation2 + $0x38] sm:$0xff]
  %v2995 = vld [vmem:[#allocation2 + $0x40] sm:$0xff]
  %v2996 = vld [vmem:[#allocation2 + $0x48] sm:$0xff]
  %v2997 = vld [vmem:[#allocation2 + $0x50] sm:$0xff]
  %v2998 = vld [vmem:[#allocation2 + $0x58] sm:$0xff]
  %v2999 = vld [vmem:[#allocation2 + $0x60] sm:$0xff]
  %v3000 = vld [vmem:[#allocation2 + $0x68] sm:$0xff]
  %v3001 = vld [vmem:[#allocation2 + $0x70] sm:$0xff]
  %v3002 = vld [vmem:[#allocation2 + $0x78] sm:$0xff]
  %v3003 = vld [vmem:[#allocation2 + $0x80] sm:$0xff]
  %v3004 = vld [vmem:[#allocation2 + $0x88] sm:$0xff]
  %v3005 = vld [vmem:[#allocation2 + $0x90] sm:$0xff]
  %v3006 = vld [vmem:[#allocation2 + $0x98] sm:$0xff]
  %v3007 = vld [vmem:[#allocation2 + $0xa0] sm:$0xff]
  %v3008 = vld [vmem:[#allocation2 + $0xa8] sm:$0xff]
  %v3009 = vld [vmem:[#allocation2 + $0xb0] sm:$0xff]
  %v3010 = vld [vmem:[#allocation2 + $0xb8] sm:$0xff]
  %v3011 = vld [vmem:[#allocation2 + $0xc0] sm:$0xff]
  %v3012 = vld [vmem:[#allocation2 + $0xc8] sm:$0xff]
  %v3013 = vld [vmem:[#allocation2 + $0xd0] sm:$0xff]
  %v3014 = vld [vmem:[#allocation2 + $0xd8] sm:$0xff]
  %3015 = vst.msk [vmem:[#allocation3 + $0x10] sm:$0xff] %vm2577, %v2991
  %3016 = vst.msk [vmem:[#allocation3 + $0x28] sm:$0xff] %vm2577, %v2992
  %3017 = vst.msk [vmem:[#allocation3 + $0x40] sm:$0xff] %vm2577, %v2993
  %3018 = vst.msk [vmem:[#allocation3 + $0x58] sm:$0xff] %vm2577, %v2994
  %3019 = vst.msk [vmem:[#allocation3 + $0x70] sm:$0xff] %vm2577, %v2995
  %3020 = vst.msk [vmem:[#allocation3 + $0x88] sm:$0xff] %vm2577, %v2996
  %3021 = vst.msk [vmem:[#allocation3 + $0xa0] sm:$0xff] %vm2577, %v2997
  %3022 = vst.msk [vmem:[#allocation3 + $0xb8] sm:$0xff] %vm2577, %v2998
  %3023 = vst.msk [vmem:[#allocation3 + $0xd0] sm:$0xff] %vm2577, %v2999
  %3024 = vst.msk [vmem:[#allocation3 + $0xe8] sm:$0xff] %vm2577, %v3000
  %3025 = vst.msk [vmem:[#allocation3 + $0x100] sm:$0xff] %vm2577, %v3001
  %3026 = vst.msk [vmem:[#allocation3 + $0x118] sm:$0xff] %vm2577, %v3002
  %3027 = vst.msk [vmem:[#allocation3 + $0x130] sm:$0xff] %vm2577, %v3003
  %3028 = vst.msk [vmem:[#allocation3 + $0x148] sm:$0xff] %vm2577, %v3004
  %3029 = vst.msk [vmem:[#allocation3 + $0x160] sm:$0xff] %vm2577, %v3005
  %3030 = vst.msk [vmem:[#allocation3 + $0x178] sm:$0xff] %vm2577, %v3006
  %3031 = vst.msk [vmem:[#allocation3 + $0x190] sm:$0xff] %vm2577, %v3007
  %3032 = vst.msk [vmem:[#allocation3 + $0x1a8] sm:$0xff] %vm2577, %v3008
  %3033 = vst.msk [vmem:[#allocation3 + $0x1c0] sm:$0xff] %vm2577, %v3009
  %3034 = vst.msk [vmem:[#allocation3 + $0x1d8] sm:$0xff] %vm2577, %v3010
  %3035 = vst.msk [vmem:[#allocation3 + $0x1f0] sm:$0xff] %vm2577, %v3011
  %3036 = vst.msk [vmem:[#allocation3 + $0x208] sm:$0xff] %vm2577, %v3012
  %3037 = vst.msk [vmem:[#allocation3 + $0x220] sm:$0xff] %vm2577, %v3013
  %3038 = vst.msk [vmem:[#allocation3 + $0x238] sm:$0xff] %vm2577, %v3014
  %v3039 = vld [vmem:[#allocation3] sm:$0xff]
  %v3040 = vld [vmem:[#allocation3 + $0x8] sm:$0xff]
  %v3041 = vld [vmem:[#allocation3 + $0x10] sm:$0xff]
  %v3042 = vld [vmem:[#allocation3 + $0x18] sm:$0xff]
  %v3043 = vld [vmem:[#allocation3 + $0x20] sm:$0xff]
  %v3044 = vld [vmem:[#allocation3 + $0x28] sm:$0xff]
  %v3045 = vld [vmem:[#allocation3 + $0x30] sm:$0xff]
  %v3046 = vld [vmem:[#allocation3 + $0x38] sm:$0xff]
  %v3047 = vld [vmem:[#allocation3 + $0x40] sm:$0xff]
  %v3048 = vld [vmem:[#allocation3 + $0x48] sm:$0xff]
  %v3049 = vld [vmem:[#allocation3 + $0x50] sm:$0xff]
  %v3050 = vld [vmem:[#allocation3 + $0x58] sm:$0xff]
  %v3051 = vld [vmem:[#allocation3 + $0x60] sm:$0xff]
  %v3052 = vld [vmem:[#allocation3 + $0x68] sm:$0xff]
  %v3053 = vld [vmem:[#allocation3 + $0x70] sm:$0xff]
  %v3054 = vld [vmem:[#allocation3 + $0x78] sm:$0xff]
  %v3055 = vld [vmem:[#allocation3 + $0x80] sm:$0xff]
  %v3056 = vld [vmem:[#allocation3 + $0x88] sm:$0xff]
  %v3057 = vld [vmem:[#allocation3 + $0x90] sm:$0xff]
  %v3058 = vld [vmem:[#allocation3 + $0x98] sm:$0xff]
  %v3059 = vld [vmem:[#allocation3 + $0xa0] sm:$0xff]
  %v3060 = vld [vmem:[#allocation3 + $0xa8] sm:$0xff]
  %v3061 = vld [vmem:[#allocation3 + $0xb0] sm:$0xff]
  %v3062 = vld [vmem:[#allocation3 + $0xb8] sm:$0xff]
  %v3063 = vld [vmem:[#allocation3 + $0xc0] sm:$0xff]
  %v3064 = vld [vmem:[#allocation3 + $0xc8] sm:$0xff]
  %v3065 = vld [vmem:[#allocation3 + $0xd0] sm:$0xff]
  %v3066 = vld [vmem:[#allocation3 + $0xd8] sm:$0xff]
  %v3067 = vld [vmem:[#allocation3 + $0xe0] sm:$0xff]
  %v3068 = vld [vmem:[#allocation3 + $0xe8] sm:$0xff]
  %v3069 = vld [vmem:[#allocation3 + $0xf0] sm:$0xff]
  %v3070 = vld [vmem:[#allocation3 + $0xf8] sm:$0xff]
  %v3071 = vld [vmem:[#allocation3 + $0x100] sm:$0xff]
  %v3072 = vld [vmem:[#allocation3 + $0x108] sm:$0xff]
  %v3073 = vld [vmem:[#allocation3 + $0x110] sm:$0xff]
  %v3074 = vld [vmem:[#allocation3 + $0x118] sm:$0xff]
  %v3075 = vld [vmem:[#allocation3 + $0x120] sm:$0xff]
  %v3076 = vld [vmem:[#allocation3 + $0x128] sm:$0xff]
  %v3077 = vld [vmem:[#allocation3 + $0x130] sm:$0xff]
  %v3078 = vld [vmem:[#allocation3 + $0x138] sm:$0xff]
  %v3079 = vld [vmem:[#allocation3 + $0x140] sm:$0xff]
  %v3080 = vld [vmem:[#allocation3 + $0x148] sm:$0xff]
  %v3081 = vld [vmem:[#allocation3 + $0x150] sm:$0xff]
  %v3082 = vld [vmem:[#allocation3 + $0x158] sm:$0xff]
  %v3083 = vld [vmem:[#allocation3 + $0x160] sm:$0xff]
  %v3084 = vld [vmem:[#allocation3 + $0x168] sm:$0xff]
  %v3085 = vld [vmem:[#allocation3 + $0x170] sm:$0xff]
  %v3086 = vld [vmem:[#allocation3 + $0x178] sm:$0xff]
  %v3087 = vld [vmem:[#allocation3 + $0x180] sm:$0xff]
  %v3088 = vld [vmem:[#allocation3 + $0x188] sm:$0xff]
  %v3089 = vld [vmem:[#allocation3 + $0x190] sm:$0xff]
  %v3090 = vld [vmem:[#allocation3 + $0x198] sm:$0xff]
  %v3091 = vld [vmem:[#allocation3 + $0x1a0] sm:$0xff]
  %v3092 = vld [vmem:[#allocation3 + $0x1a8] sm:$0xff]
  %v3093 = vld [vmem:[#allocation3 + $0x1b0] sm:$0xff]
  %v3094 = vld [vmem:[#allocation3 + $0x1b8] sm:$0xff]
  %v3095 = vld [vmem:[#allocation3 + $0x1c0] sm:$0xff]
  %v3096 = vld [vmem:[#allocation3 + $0x1c8] sm:$0xff]
  %v3097 = vld [vmem:[#allocation3 + $0x1d0] sm:$0xff]
  %v3098 = vld [vmem:[#allocation3 + $0x1d8] sm:$0xff]
  %v3099 = vld [vmem:[#allocation3 + $0x1e0] sm:$0xff]
  %v3100 = vld [vmem:[#allocation3 + $0x1e8] sm:$0xff]
  %v3101 = vld [vmem:[#allocation3 + $0x1f0] sm:$0xff]
  %v3102 = vld [vmem:[#allocation3 + $0x1f8] sm:$0xff]
  %v3103 = vld [vmem:[#allocation3 + $0x200] sm:$0xff]
  %v3104 = vld [vmem:[#allocation3 + $0x208] sm:$0xff]
  %v3105 = vld [vmem:[#allocation3 + $0x210] sm:$0xff]
  %v3106 = vld [vmem:[#allocation3 + $0x218] sm:$0xff]
  %v3107 = vld [vmem:[#allocation3 + $0x220] sm:$0xff]
  %v3108 = vld [vmem:[#allocation3 + $0x228] sm:$0xff]
  %v3109 = vld [vmem:[#allocation3 + $0x230] sm:$0xff]
  %v3110 = vld [vmem:[#allocation3 + $0x238] sm:$0xff]
  %v3111 = vld [vmem:[%s6] sm:$0xff]
  %v3112 = vld [vmem:[%s6 + $0x8] sm:$0xff]
  %v3113 = vld [vmem:[%s6 + $0x10] sm:$0xff]
  %v3114 = vld [vmem:[%s6 + $0x18] sm:$0xff]
  %v3115 = vld [vmem:[%s6 + $0x20] sm:$0xff]
  %v3116 = vld [vmem:[%s6 + $0x28] sm:$0xff]
  %v3117 = vld [vmem:[%s6 + $0x30] sm:$0xff]
  %v3118 = vld [vmem:[%s6 + $0x38] sm:$0xff]
  %v3119 = vld [vmem:[%s6 + $0x40] sm:$0xff]
  %v3120 = vld [vmem:[%s6 + $0x48] sm:$0xff]
  %v3121 = vld [vmem:[%s6 + $0x50] sm:$0xff]
  %v3122 = vld [vmem:[%s6 + $0x58] sm:$0xff]
  %v3123 = vld [vmem:[%s6 + $0x60] sm:$0xff]
  %v3124 = vld [vmem:[%s6 + $0x68] sm:$0xff]
  %v3125 = vld [vmem:[%s6 + $0x70] sm:$0xff]
  %v3126 = vld [vmem:[%s6 + $0x78] sm:$0xff]
  %v3127 = vld [vmem:[%s6 + $0x80] sm:$0xff]
  %v3128 = vld [vmem:[%s6 + $0x88] sm:$0xff]
  %v3129 = vld [vmem:[%s6 + $0x90] sm:$0xff]
  %v3130 = vld [vmem:[%s6 + $0x98] sm:$0xff]
  %v3131 = vld [vmem:[%s6 + $0xa0] sm:$0xff]
  %v3132 = vld [vmem:[%s6 + $0xa8] sm:$0xff]
  %v3133 = vld [vmem:[%s6 + $0xb0] sm:$0xff]
  %v3134 = vld [vmem:[%s6 + $0xb8] sm:$0xff]
  %v3135 = vld [vmem:[%s6 + $0xc0] sm:$0xff]
  %v3136 = vld [vmem:[%s6 + $0xc8] sm:$0xff]
  %v3137 = vld [vmem:[%s6 + $0xd0] sm:$0xff]
  %v3138 = vld [vmem:[%s6 + $0xd8] sm:$0xff]
  %v3139 = vld [vmem:[%s6 + $0xe0] sm:$0xff]
  %v3140 = vld [vmem:[%s6 + $0xe8] sm:$0xff]
  %v3141 = vld [vmem:[%s6 + $0xf0] sm:$0xff]
  %v3142 = vld [vmem:[%s6 + $0xf8] sm:$0xff]
  %v3143 = vld [vmem:[%s6 + $0x100] sm:$0xff]
  %v3144 = vld [vmem:[%s6 + $0x108] sm:$0xff]
  %v3145 = vld [vmem:[%s6 + $0x110] sm:$0xff]
  %v3146 = vld [vmem:[%s6 + $0x118] sm:$0xff]
  %v3147 = vld [vmem:[%s6 + $0x120] sm:$0xff]
  %v3148 = vld [vmem:[%s6 + $0x128] sm:$0xff]
  %v3149 = vld [vmem:[%s6 + $0x130] sm:$0xff]
  %v3150 = vld [vmem:[%s6 + $0x138] sm:$0xff]
  %v3151 = vld [vmem:[%s6 + $0x140] sm:$0xff]
  %v3152 = vld [vmem:[%s6 + $0x148] sm:$0xff]
  %v3153 = vld [vmem:[%s6 + $0x150] sm:$0xff]
  %v3154 = vld [vmem:[%s6 + $0x158] sm:$0xff]
  %v3155 = vld [vmem:[%s6 + $0x160] sm:$0xff]
  %v3156 = vld [vmem:[%s6 + $0x168] sm:$0xff]
  %v3157 = vld [vmem:[%s6 + $0x170] sm:$0xff]
  %v3158 = vld [vmem:[%s6 + $0x178] sm:$0xff]
  %v3159 = vld [vmem:[%s6 + $0x180] sm:$0xff]
  %v3160 = vld [vmem:[%s6 + $0x188] sm:$0xff]
  %v3161 = vld [vmem:[%s6 + $0x190] sm:$0xff]
  %v3162 = vld [vmem:[%s6 + $0x198] sm:$0xff]
  %v3163 = vld [vmem:[%s6 + $0x1a0] sm:$0xff]
  %v3164 = vld [vmem:[%s6 + $0x1a8] sm:$0xff]
  %v3165 = vld [vmem:[%s6 + $0x1b0] sm:$0xff]
  %v3166 = vld [vmem:[%s6 + $0x1b8] sm:$0xff]
  %v3167 = vld [vmem:[%s6 + $0x1c0] sm:$0xff]
  %v3168 = vld [vmem:[%s6 + $0x1c8] sm:$0xff]
  %v3169 = vld [vmem:[%s6 + $0x1d0] sm:$0xff]
  %v3170 = vld [vmem:[%s6 + $0x1d8] sm:$0xff]
  %v3171 = vld [vmem:[%s6 + $0x1e0] sm:$0xff]
  %v3172 = vld [vmem:[%s6 + $0x1e8] sm:$0xff]
  %v3173 = vld [vmem:[%s6 + $0x1f0] sm:$0xff]
  %v3174 = vld [vmem:[%s6 + $0x1f8] sm:$0xff]
  %v3175 = vld [vmem:[%s6 + $0x200] sm:$0xff]
  %v3176 = vld [vmem:[%s6 + $0x208] sm:$0xff]
  %v3177 = vld [vmem:[%s6 + $0x210] sm:$0xff]
  %v3178 = vld [vmem:[%s6 + $0x218] sm:$0xff]
  %v3179 = vld [vmem:[%s6 + $0x220] sm:$0xff]
  %v3180 = vld [vmem:[%s6 + $0x228] sm:$0xff]
  %v3181 = vld [vmem:[%s6 + $0x230] sm:$0xff]
  %v3182 = vld [vmem:[%s6 + $0x238] sm:$0xff]
  %v3183 = vld [vmem:[%s6 + $0x240] sm:$0xff]
  %v3184 = vld [vmem:[%s6 + $0x248] sm:$0xff]
  %v3185 = vld [vmem:[%s6 + $0x250] sm:$0xff]
  %v3186 = vld [vmem:[%s6 + $0x258] sm:$0xff]
  %v3187 = vld [vmem:[%s6 + $0x260] sm:$0xff]
  %v3188 = vld [vmem:[%s6 + $0x268] sm:$0xff]
  %v3189 = vld [vmem:[%s6 + $0x270] sm:$0xff]
  %v3190 = vld [vmem:[%s6 + $0x278] sm:$0xff]
  %v3192 = vsel %vm2577, %v3041, 0
  %v3195 = vsel %vm2577, %v3044, 0
  %v3198 = vsel %vm2577, %v3047, 0
  %v3201 = vsel %vm2577, %v3050, 0
  %v3204 = vsel %vm2577, %v3053, 0
  %v3207 = vsel %vm2577, %v3056, 0
  %v3210 = vsel %vm2577, %v3059, 0
  %v3213 = vsel %vm2577, %v3062, 0
  %v3216 = vsel %vm2577, %v3065, 0
  %v3219 = vsel %vm2577, %v3068, 0
  %v3222 = vsel %vm2577, %v3071, 0
  %v3225 = vsel %vm2577, %v3074, 0
  %v3228 = vsel %vm2577, %v3077, 0
  %v3231 = vsel %vm2577, %v3080, 0
  %v3234 = vsel %vm2577, %v3083, 0
  %v3237 = vsel %vm2577, %v3086, 0
  %v3240 = vsel %vm2577, %v3089, 0
  %v3243 = vsel %vm2577, %v3092, 0
  %v3246 = vsel %vm2577, %v3095, 0
  %v3249 = vsel %vm2577, %v3098, 0
  %v3252 = vsel %vm2577, %v3101, 0
  %v3255 = vsel %vm2577, %v3104, 0
  %v3258 = vsel %vm2577, %v3107, 0
  %v3261 = vsel %vm2577, %v3110, 0
  %3263 = vmatprep.subr.mxu0 %v3142
  %3264 = vmatpush1.msra.mxu0 %v3141
  %3265 = vmatprep.subr.mxu0 %v3140
  %3266 = vmatpush1.msra.mxu0 %v3139
  %3267 = vmatprep.subr.mxu0 %v3138
  %3268 = vmatpush1.msra.mxu0 %v3137
  %3269 = vmatprep.subr.mxu0 %v3136
  %3270 = vmatpush1.msra.mxu0 %v3135
  %3271 = vmatprep.subr.mxu0 %v3134
  %3272 = vmatpush1.msra.mxu0 %v3133
  %3273 = vmatprep.subr.mxu0 %v3132
  %3274 = vmatpush1.msra.mxu0 %v3131
  %3275 = vmatprep.subr.mxu0 %v3130
  %3276 = vmatpush1.msra.mxu0 %v3129
  %3277 = vmatprep.subr.mxu0 %v3128
  %3278 = vmatpush1.msra.mxu0 %v3127
  %3279 = vmatprep.subr.mxu0 %v3126
  %3280 = vmatpush1.msra.mxu0 %v3125
  %3281 = vmatprep.subr.mxu0 %v3124
  %3282 = vmatpush1.msra.mxu0 %v3123
  %3283 = vmatprep.subr.mxu0 %v3122
  %3284 = vmatpush1.msra.mxu0 %v3121
  %3285 = vmatprep.subr.mxu0 %v3120
  %3286 = vmatpush1.msra.mxu0 %v3119
  %3287 = vmatprep.subr.mxu0 %v3118
  %3288 = vmatpush1.msra.mxu0 %v3117
  %3289 = vmatprep.subr.mxu0 %v3116
  %3290 = vmatpush1.msra.mxu0 %v3115
  %3291 = vmatprep.subr.mxu0 %v3114
  %3292 = vmatpush1.msra.mxu0 %v3113
  %3293 = vmatprep.subr.mxu0 %v3112
  %3294 = vmatpush1.msra.mxu0 %v3111
  %3295 = vmatprep.subr.mxu0 %v3174
  %3296 = vmatpush2.msra.mxu0 %v3173
  %3297 = vmatprep.subr.mxu0 %v3172
  %3298 = vmatpush2.msra.mxu0 %v3171
  %3299 = vmatprep.subr.mxu0 %v3170
  %3300 = vmatpush2.msra.mxu0 %v3169
  %3301 = vmatprep.subr.mxu0 %v3168
  %3302 = vmatpush2.msra.mxu0 %v3167
  %3303 = vmatprep.subr.mxu0 %v3166
  %3304 = vmatpush2.msra.mxu0 %v3165
  %3305 = vmatprep.subr.mxu0 %v3164
  %3306 = vmatpush2.msra.mxu0 %v3163
  %3307 = vmatprep.subr.mxu0 %v3162
  %3308 = vmatpush2.msra.mxu0 %v3161
  %3309 = vmatprep.subr.mxu0 %v3160
  %3310 = vmatpush2.msra.mxu0 %v3159
  %3311 = vmatprep.subr.mxu0 %v3158
  %3312 = vmatpush2.msra.mxu0 %v3157
  %3313 = vmatprep.subr.mxu0 %v3156
  %3314 = vmatpush2.msra.mxu0 %v3155
  %3315 = vmatprep.subr.mxu0 %v3154
  %3316 = vmatpush2.msra.mxu0 %v3153
  %3317 = vmatprep.subr.mxu0 %v3152
  %3318 = vmatpush2.msra.mxu0 %v3151
  %3319 = vmatprep.subr.mxu0 %v3150
  %3320 = vmatpush2.msra.mxu0 %v3149
  %3321 = vmatprep.subr.mxu0 %v3148
  %3322 = vmatpush2.msra.mxu0 %v3147
  %3323 = vmatprep.subr.mxu0 %v3146
  %3324 = vmatpush2.msra.mxu0 %v3145
  %3325 = vmatprep.subr.mxu0 %v3144
  %3326 = vmatpush2.msra.mxu0 %v3143
  %3327 = vmatprep.mubr.f32.mxu0 %v3040
  %3328 = vmatmul.mubr.f32.gmra.mxu0 %v3039
  %v3329 = vpop.f32.mrf.mxu0
  %v3330 = vadd.f32 0.0, %v3329
  %v3331 = vpop.f32.mrf.mxu0
  %v3332 = vadd.f32 0.0, %v3331
  %3333 = vmatprep.mubr.f32.mxu0 %v3043
  %3334 = vmatmul.mubr.f32.gmra.mxu0 %v3042
  %v3335 = vpop.f32.mrf.mxu0
  %v3336 = vadd.f32 0.0, %v3335
  %v3337 = vpop.f32.mrf.mxu0
  %v3338 = vadd.f32 0.0, %v3337
  %3339 = vmatprep.mubr.f32.mxu0 %v3046
  %3340 = vmatmul.mubr.f32.gmra.mxu0 %v3045
  %v3341 = vpop.f32.mrf.mxu0
  %v3342 = vadd.f32 0.0, %v3341
  %v3343 = vpop.f32.mrf.mxu0
  %v3344 = vadd.f32 0.0, %v3343
  %3345 = vmatprep.mubr.f32.mxu0 %v3049
  %3346 = vmatmul.mubr.f32.gmra.mxu0 %v3048
  %v3347 = vpop.f32.mrf.mxu0
  %v3348 = vadd.f32 0.0, %v3347
  %v3349 = vpop.f32.mrf.mxu0
  %v3350 = vadd.f32 0.0, %v3349
  %3351 = vmatprep.mubr.f32.mxu0 %v3052
  %3352 = vmatmul.mubr.f32.gmra.mxu0 %v3051
  %v3353 = vpop.f32.mrf.mxu0
  %v3354 = vadd.f32 0.0, %v3353
  %v3355 = vpop.f32.mrf.mxu0
  %v3356 = vadd.f32 0.0, %v3355
  %3357 = vmatprep.mubr.f32.mxu0 %v3055
  %3358 = vmatmul.mubr.f32.gmra.mxu0 %v3054
  %v3359 = vpop.f32.mrf.mxu0
  %v3360 = vadd.f32 0.0, %v3359
  %v3361 = vpop.f32.mrf.mxu0
  %v3362 = vadd.f32 0.0, %v3361
  %3363 = vmatprep.mubr.f32.mxu0 %v3058
  %3364 = vmatmul.mubr.f32.gmra.mxu0 %v3057
  %v3365 = vpop.f32.mrf.mxu0
  %v3366 = vadd.f32 0.0, %v3365
  %v3367 = vpop.f32.mrf.mxu0
  %v3368 = vadd.f32 0.0, %v3367
  %3369 = vmatprep.mubr.f32.mxu0 %v3061
  %3370 = vmatmul.mubr.f32.gmra.mxu0 %v3060
  %v3371 = vpop.f32.mrf.mxu0
  %v3372 = vadd.f32 0.0, %v3371
  %v3373 = vpop.f32.mrf.mxu0
  %v3374 = vadd.f32 0.0, %v3373
  %3375 = vmatprep.mubr.f32.mxu0 %v3064
  %3376 = vmatmul.mubr.f32.gmra.mxu0 %v3063
  %v3377 = vpop.f32.mrf.mxu0
  %v3378 = vadd.f32 0.0, %v3377
  %v3379 = vpop.f32.mrf.mxu0
  %v3380 = vadd.f32 0.0, %v3379
  %3381 = vmatprep.mubr.f32.mxu0 %v3067
  %3382 = vmatmul.mubr.f32.gmra.mxu0 %v3066
  %v3383 = vpop.f32.mrf.mxu0
  %v3384 = vadd.f32 0.0, %v3383
  %v3385 = vpop.f32.mrf.mxu0
  %v3386 = vadd.f32 0.0, %v3385
  %3387 = vmatprep.mubr.f32.mxu0 %v3070
  %3388 = vmatmul.mubr.f32.gmra.mxu0 %v3069
  %v3389 = vpop.f32.mrf.mxu0
  %v3390 = vadd.f32 0.0, %v3389
  %v3391 = vpop.f32.mrf.mxu0
  %v3392 = vadd.f32 0.0, %v3391
  %3393 = vmatprep.mubr.f32.mxu0 %v3073
  %3394 = vmatmul.mubr.f32.gmra.mxu0 %v3072
  %v3395 = vpop.f32.mrf.mxu0
  %v3396 = vadd.f32 0.0, %v3395
  %v3397 = vpop.f32.mrf.mxu0
  %v3398 = vadd.f32 0.0, %v3397
  %3399 = vmatprep.mubr.f32.mxu0 %v3076
  %3400 = vmatmul.mubr.f32.gmra.mxu0 %v3075
  %v3401 = vpop.f32.mrf.mxu0
  %v3402 = vadd.f32 0.0, %v3401
  %v3403 = vpop.f32.mrf.mxu0
  %v3404 = vadd.f32 0.0, %v3403
  %3405 = vmatprep.mubr.f32.mxu0 %v3079
  %3406 = vmatmul.mubr.f32.gmra.mxu0 %v3078
  %v3407 = vpop.f32.mrf.mxu0
  %v3408 = vadd.f32 0.0, %v3407
  %v3409 = vpop.f32.mrf.mxu0
  %v3410 = vadd.f32 0.0, %v3409
  %3411 = vmatprep.mubr.f32.mxu0 %v3082
  %3412 = vmatmul.mubr.f32.gmra.mxu0 %v3081
  %v3413 = vpop.f32.mrf.mxu0
  %v3414 = vadd.f32 0.0, %v3413
  %v3415 = vpop.f32.mrf.mxu0
  %v3416 = vadd.f32 0.0, %v3415
  %3417 = vmatprep.mubr.f32.mxu0 %v3085
  %3418 = vmatmul.mubr.f32.gmra.mxu0 %v3084
  %v3419 = vpop.f32.mrf.mxu0
  %v3420 = vadd.f32 0.0, %v3419
  %v3421 = vpop.f32.mrf.mxu0
  %v3422 = vadd.f32 0.0, %v3421
  %3423 = vmatprep.mubr.f32.mxu0 %v3088
  %3424 = vmatmul.mubr.f32.gmra.mxu0 %v3087
  %v3425 = vpop.f32.mrf.mxu0
  %v3426 = vadd.f32 0.0, %v3425
  %v3427 = vpop.f32.mrf.mxu0
  %v3428 = vadd.f32 0.0, %v3427
  %3429 = vmatprep.mubr.f32.mxu0 %v3091
  %3430 = vmatmul.mubr.f32.gmra.mxu0 %v3090
  %v3431 = vpop.f32.mrf.mxu0
  %v3432 = vadd.f32 0.0, %v3431
  %v3433 = vpop.f32.mrf.mxu0
  %v3434 = vadd.f32 0.0, %v3433
  %3435 = vmatprep.mubr.f32.mxu0 %v3094
  %3436 = vmatmul.mubr.f32.gmra.mxu0 %v3093
  %v3437 = vpop.f32.mrf.mxu0
  %v3438 = vadd.f32 0.0, %v3437
  %v3439 = vpop.f32.mrf.mxu0
  %v3440 = vadd.f32 0.0, %v3439
  %3441 = vmatprep.mubr.f32.mxu0 %v3097
  %3442 = vmatmul.mubr.f32.gmra.mxu0 %v3096
  %v3443 = vpop.f32.mrf.mxu0
  %v3444 = vadd.f32 0.0, %v3443
  %v3445 = vpop.f32.mrf.mxu0
  %v3446 = vadd.f32 0.0, %v3445
  %3447 = vmatprep.mubr.f32.mxu0 %v3100
  %3448 = vmatmul.mubr.f32.gmra.mxu0 %v3099
  %v3449 = vpop.f32.mrf.mxu0
  %v3450 = vadd.f32 0.0, %v3449
  %v3451 = vpop.f32.mrf.mxu0
  %v3452 = vadd.f32 0.0, %v3451
  %3453 = vmatprep.mubr.f32.mxu0 %v3103
  %3454 = vmatmul.mubr.f32.gmra.mxu0 %v3102
  %v3455 = vpop.f32.mrf.mxu0
  %v3456 = vadd.f32 0.0, %v3455
  %v3457 = vpop.f32.mrf.mxu0
  %v3458 = vadd.f32 0.0, %v3457
  %3459 = vmatprep.mubr.f32.mxu0 %v3106
  %3460 = vmatmul.mubr.f32.gmra.mxu0 %v3105
  %v3461 = vpop.f32.mrf.mxu0
  %v3462 = vadd.f32 0.0, %v3461
  %v3463 = vpop.f32.mrf.mxu0
  %v3464 = vadd.f32 0.0, %v3463
  %3465 = vmatprep.mubr.f32.mxu0 %v3109
  %3466 = vmatmul.mubr.f32.gmra.mxu0 %v3108
  %v3467 = vpop.f32.mrf.mxu0
  %v3468 = vadd.f32 0.0, %v3467
  %v3469 = vpop.f32.mrf.mxu0
  %v3470 = vadd.f32 0.0, %v3469
  %3471 = vdwg.mxu0
  %3472 = vmatprep.subr.mxu0 0.0
  %3473 = vmatpush1.msra.mxu0 0.0
  %3474 = vmatprep.subr.mxu0 0.0
  %3475 = vmatpush1.msra.mxu0 0.0
  %3476 = vmatprep.subr.mxu0 0.0
  %3477 = vmatpush1.msra.mxu0 0.0
  %3478 = vmatprep.subr.mxu0 0.0
  %3479 = vmatpush1.msra.mxu0 0.0
  %3480 = vmatprep.subr.mxu0 0.0
  %3481 = vmatpush1.msra.mxu0 0.0
  %3482 = vmatprep.subr.mxu0 0.0
  %3483 = vmatpush1.msra.mxu0 0.0
  %3484 = vmatprep.subr.mxu0 0.0
  %3485 = vmatpush1.msra.mxu0 0.0
  %3486 = vmatprep.subr.mxu0 0.0
  %3487 = vmatpush1.msra.mxu0 0.0
  %3488 = vmatprep.subr.mxu0 %v3190
  %3489 = vmatpush1.msra.mxu0 %v3189
  %3490 = vmatprep.subr.mxu0 %v3188
  %3491 = vmatpush1.msra.mxu0 %v3187
  %3492 = vmatprep.subr.mxu0 %v3186
  %3493 = vmatpush1.msra.mxu0 %v3185
  %3494 = vmatprep.subr.mxu0 %v3184
  %3495 = vmatpush1.msra.mxu0 %v3183
  %3496 = vmatprep.subr.mxu0 %v3182
  %3497 = vmatpush1.msra.mxu0 %v3181
  %3498 = vmatprep.subr.mxu0 %v3180
  %3499 = vmatpush1.msra.mxu0 %v3179
  %3500 = vmatprep.subr.mxu0 %v3178
  %3501 = vmatpush1.msra.mxu0 %v3177
  %3502 = vmatprep.subr.mxu0 %v3176
  %3503 = vmatpush1.msra.mxu0 %v3175
  %3504 = vmatprep.subr.mxu0 0.0
  %3505 = vmatpush2.msra.mxu0 0.0
  %3506 = vmatprep.subr.mxu0 0.0
  %3507 = vmatpush2.msra.mxu0 0.0
  %3508 = vmatprep.subr.mxu0 0.0
  %3509 = vmatpush2.msra.mxu0 0.0
  %3510 = vmatprep.subr.mxu0 0.0
  %3511 = vmatpush2.msra.mxu0 0.0
  %3512 = vmatprep.subr.mxu0 0.0
  %3513 = vmatpush2.msra.mxu0 0.0
  %3514 = vmatprep.subr.mxu0 0.0
  %3515 = vmatpush2.msra.mxu0 0.0
  %3516 = vmatprep.subr.mxu0 0.0
  %3517 = vmatpush2.msra.mxu0 0.0
  %3518 = vmatprep.subr.mxu0 0.0
  %3519 = vmatpush2.msra.mxu0 0.0
  %3520 = vmatprep.subr.mxu0 0.0
  %3521 = vmatpush2.msra.mxu0 0.0
  %3522 = vmatprep.subr.mxu0 0.0
  %3523 = vmatpush2.msra.mxu0 0.0
  %3524 = vmatprep.subr.mxu0 0.0
  %3525 = vmatpush2.msra.mxu0 0.0
  %3526 = vmatprep.subr.mxu0 0.0
  %3527 = vmatpush2.msra.mxu0 0.0
  %3528 = vmatprep.subr.mxu0 0.0
  %3529 = vmatpush2.msra.mxu0 0.0
  %3530 = vmatprep.subr.mxu0 0.0
  %3531 = vmatpush2.msra.mxu0 0.0
  %3532 = vmatprep.subr.mxu0 0.0
  %3533 = vmatpush2.msra.mxu0 0.0
  %3534 = vmatprep.subr.mxu0 0.0
  %3535 = vmatpush2.msra.mxu0 0.0
  %3536 = vmatprep.mubr.f32.mxu0 0.0
  %3537 = vmatmul.mubr.f32.gmra.mxu0 %v3192
  %v3538 = vpop.f32.mrf.mxu0
  %v3539 = vadd.f32 %v3330, %v3538
  %v3540 = vpop.f32.mrf.mxu0
  %v3541 = vadd.f32 %v3332, %v3540
  %3542 = vmatprep.mubr.f32.mxu0 0.0
  %3543 = vmatmul.mubr.f32.gmra.mxu0 %v3195
  %v3544 = vpop.f32.mrf.mxu0
  %v3545 = vadd.f32 %v3336, %v3544
  %v3546 = vpop.f32.mrf.mxu0
  %v3547 = vadd.f32 %v3338, %v3546
  %3548 = vmatprep.mubr.f32.mxu0 0.0
  %3549 = vmatmul.mubr.f32.gmra.mxu0 %v3198
  %v3550 = vpop.f32.mrf.mxu0
  %v3551 = vadd.f32 %v3342, %v3550
  %v3552 = vpop.f32.mrf.mxu0
  %v3553 = vadd.f32 %v3344, %v3552
  %3554 = vmatprep.mubr.f32.mxu0 0.0
  %3555 = vmatmul.mubr.f32.gmra.mxu0 %v3201
  %v3556 = vpop.f32.mrf.mxu0
  %v3557 = vadd.f32 %v3348, %v3556
  %v3558 = vpop.f32.mrf.mxu0
  %v3559 = vadd.f32 %v3350, %v3558
  %3560 = vmatprep.mubr.f32.mxu0 0.0
  %3561 = vmatmul.mubr.f32.gmra.mxu0 %v3204
  %v3562 = vpop.f32.mrf.mxu0
  %v3563 = vadd.f32 %v3354, %v3562
  %v3564 = vpop.f32.mrf.mxu0
  %v3565 = vadd.f32 %v3356, %v3564
  %3566 = vmatprep.mubr.f32.mxu0 0.0
  %3567 = vmatmul.mubr.f32.gmra.mxu0 %v3207
  %v3568 = vpop.f32.mrf.mxu0
  %v3569 = vadd.f32 %v3360, %v3568
  %v3570 = vpop.f32.mrf.mxu0
  %v3571 = vadd.f32 %v3362, %v3570
  %3572 = vmatprep.mubr.f32.mxu0 0.0
  %3573 = vmatmul.mubr.f32.gmra.mxu0 %v3210
  %v3574 = vpop.f32.mrf.mxu0
  %v3575 = vadd.f32 %v3366, %v3574
  %v3576 = vpop.f32.mrf.mxu0
  %v3577 = vadd.f32 %v3368, %v3576
  %3578 = vmatprep.mubr.f32.mxu0 0.0
  %3579 = vmatmul.mubr.f32.gmra.mxu0 %v3213
  %v3580 = vpop.f32.mrf.mxu0
  %v3581 = vadd.f32 %v3372, %v3580
  %v3582 = vpop.f32.mrf.mxu0
  %v3583 = vadd.f32 %v3374, %v3582
  %3584 = vmatprep.mubr.f32.mxu0 0.0
  %3585 = vmatmul.mubr.f32.gmra.mxu0 %v3216
  %v3586 = vpop.f32.mrf.mxu0
  %v3587 = vadd.f32 %v3378, %v3586
  %v3588 = vpop.f32.mrf.mxu0
  %v3589 = vadd.f32 %v3380, %v3588
  %3590 = vmatprep.mubr.f32.mxu0 0.0
  %3591 = vmatmul.mubr.f32.gmra.mxu0 %v3219
  %v3592 = vpop.f32.mrf.mxu0
  %v3593 = vadd.f32 %v3384, %v3592
  %v3594 = vpop.f32.mrf.mxu0
  %v3595 = vadd.f32 %v3386, %v3594
  %3596 = vmatprep.mubr.f32.mxu0 0.0
  %3597 = vmatmul.mubr.f32.gmra.mxu0 %v3222
  %v3598 = vpop.f32.mrf.mxu0
  %v3599 = vadd.f32 %v3390, %v3598
  %v3600 = vpop.f32.mrf.mxu0
  %v3601 = vadd.f32 %v3392, %v3600
  %3602 = vmatprep.mubr.f32.mxu0 0.0
  %3603 = vmatmul.mubr.f32.gmra.mxu0 %v3225
  %v3604 = vpop.f32.mrf.mxu0
  %v3605 = vadd.f32 %v3396, %v3604
  %v3606 = vpop.f32.mrf.mxu0
  %v3607 = vadd.f32 %v3398, %v3606
  %3608 = vmatprep.mubr.f32.mxu0 0.0
  %3609 = vmatmul.mubr.f32.gmra.mxu0 %v3228
  %v3610 = vpop.f32.mrf.mxu0
  %v3611 = vadd.f32 %v3402, %v3610
  %v3612 = vpop.f32.mrf.mxu0
  %v3613 = vadd.f32 %v3404, %v3612
  %3614 = vmatprep.mubr.f32.mxu0 0.0
  %3615 = vmatmul.mubr.f32.gmra.mxu0 %v3231
  %v3616 = vpop.f32.mrf.mxu0
  %v3617 = vadd.f32 %v3408, %v3616
  %v3618 = vpop.f32.mrf.mxu0
  %v3619 = vadd.f32 %v3410, %v3618
  %3620 = vmatprep.mubr.f32.mxu0 0.0
  %3621 = vmatmul.mubr.f32.gmra.mxu0 %v3234
  %v3622 = vpop.f32.mrf.mxu0
  %v3623 = vadd.f32 %v3414, %v3622
  %v3624 = vpop.f32.mrf.mxu0
  %v3625 = vadd.f32 %v3416, %v3624
  %3626 = vmatprep.mubr.f32.mxu0 0.0
  %3627 = vmatmul.mubr.f32.gmra.mxu0 %v3237
  %v3628 = vpop.f32.mrf.mxu0
  %v3629 = vadd.f32 %v3420, %v3628
  %v3630 = vpop.f32.mrf.mxu0
  %v3631 = vadd.f32 %v3422, %v3630
  %3632 = vmatprep.mubr.f32.mxu0 0.0
  %3633 = vmatmul.mubr.f32.gmra.mxu0 %v3240
  %v3634 = vpop.f32.mrf.mxu0
  %v3635 = vadd.f32 %v3426, %v3634
  %v3636 = vpop.f32.mrf.mxu0
  %v3637 = vadd.f32 %v3428, %v3636
  %3638 = vmatprep.mubr.f32.mxu0 0.0
  %3639 = vmatmul.mubr.f32.gmra.mxu0 %v3243
  %v3640 = vpop.f32.mrf.mxu0
  %v3641 = vadd.f32 %v3432, %v3640
  %v3642 = vpop.f32.mrf.mxu0
  %v3643 = vadd.f32 %v3434, %v3642
  %3644 = vmatprep.mubr.f32.mxu0 0.0
  %3645 = vmatmul.mubr.f32.gmra.mxu0 %v3246
  %v3646 = vpop.f32.mrf.mxu0
  %v3647 = vadd.f32 %v3438, %v3646
  %v3648 = vpop.f32.mrf.mxu0
  %v3649 = vadd.f32 %v3440, %v3648
  %3650 = vmatprep.mubr.f32.mxu0 0.0
  %3651 = vmatmul.mubr.f32.gmra.mxu0 %v3249
  %v3652 = vpop.f32.mrf.mxu0
  %v3653 = vadd.f32 %v3444, %v3652
  %v3654 = vpop.f32.mrf.mxu0
  %v3655 = vadd.f32 %v3446, %v3654
  %3656 = vmatprep.mubr.f32.mxu0 0.0
  %3657 = vmatmul.mubr.f32.gmra.mxu0 %v3252
  %v3658 = vpop.f32.mrf.mxu0
  %v3659 = vadd.f32 %v3450, %v3658
  %v3660 = vpop.f32.mrf.mxu0
  %v3661 = vadd.f32 %v3452, %v3660
  %3662 = vmatprep.mubr.f32.mxu0 0.0
  %3663 = vmatmul.mubr.f32.gmra.mxu0 %v3255
  %v3664 = vpop.f32.mrf.mxu0
  %v3665 = vadd.f32 %v3456, %v3664
  %v3666 = vpop.f32.mrf.mxu0
  %v3667 = vadd.f32 %v3458, %v3666
  %3668 = vmatprep.mubr.f32.mxu0 0.0
  %3669 = vmatmul.mubr.f32.gmra.mxu0 %v3258
  %v3670 = vpop.f32.mrf.mxu0
  %v3671 = vadd.f32 %v3462, %v3670
  %v3672 = vpop.f32.mrf.mxu0
  %v3673 = vadd.f32 %v3464, %v3672
  %3674 = vmatprep.mubr.f32.mxu0 0.0
  %3675 = vmatmul.mubr.f32.gmra.mxu0 %v3261
  %v3676 = vpop.f32.mrf.mxu0
  %v3677 = vadd.f32 %v3468, %v3676
  %v3678 = vpop.f32.mrf.mxu0
  %v3679 = vadd.f32 %v3470, %v3678
  %3680 = vdwg.mxu0
  %v3681 = vld [vmem:[%s7] sm:$0x1]
  %v3683 = vlaneseq
  %v3684 = vshrl.u32 %v3683, 7
  %v3685 = vsub.s32 0, %v3684
  %v3686 = vrot.slane %v3681, %v3685
  %v3688 = vmul.f32 %v3539, %v3686
  %v3689 = vmul.f32 %v3545, %v3686
  %v3690 = vmul.f32 %v3551, %v3686
  %v3691 = vmul.f32 %v3557, %v3686
  %v3692 = vmul.f32 %v3563, %v3686
  %v3693 = vmul.f32 %v3569, %v3686
  %v3694 = vmul.f32 %v3575, %v3686
  %v3695 = vmul.f32 %v3581, %v3686
  %v3696 = vmul.f32 %v3587, %v3686
  %v3697 = vmul.f32 %v3593, %v3686
  %v3698 = vmul.f32 %v3599, %v3686
  %v3699 = vmul.f32 %v3605, %v3686
  %v3700 = vmul.f32 %v3611, %v3686
  %v3701 = vmul.f32 %v3617, %v3686
  %v3702 = vmul.f32 %v3623, %v3686
  %v3703 = vmul.f32 %v3629, %v3686
  %v3704 = vmul.f32 %v3635, %v3686
  %v3705 = vmul.f32 %v3641, %v3686
  %v3706 = vmul.f32 %v3647, %v3686
  %v3707 = vmul.f32 %v3653, %v3686
  %v3708 = vmul.f32 %v3659, %v3686
  %v3709 = vmul.f32 %v3665, %v3686
  %v3710 = vmul.f32 %v3671, %v3686
  %v3711 = vmul.f32 %v3677, %v3686
  %v3712 = vld [vmem:[%s8] sm:$0x1]
  %v3714 = vlaneseq
  %v3715 = vshrl.u32 %v3714, 7
  %v3716 = vsub.s32 0, %v3715
  %v3717 = vrot.slane %v3712, %v3716
  %v3719 = vadd.f32 %v3688, %v3717
  %v3720 = vadd.f32 %v3689, %v3717
  %v3721 = vadd.f32 %v3690, %v3717
  %v3722 = vadd.f32 %v3691, %v3717
  %v3723 = vadd.f32 %v3692, %v3717
  %v3724 = vadd.f32 %v3693, %v3717
  %v3725 = vadd.f32 %v3694, %v3717
  %v3726 = vadd.f32 %v3695, %v3717
  %v3727 = vadd.f32 %v3696, %v3717
  %v3728 = vadd.f32 %v3697, %v3717
  %v3729 = vadd.f32 %v3698, %v3717
  %v3730 = vadd.f32 %v3699, %v3717
  %v3731 = vadd.f32 %v3700, %v3717
  %v3732 = vadd.f32 %v3701, %v3717
  %v3733 = vadd.f32 %v3702, %v3717
  %v3734 = vadd.f32 %v3703, %v3717
  %v3735 = vadd.f32 %v3704, %v3717
  %v3736 = vadd.f32 %v3705, %v3717
  %v3737 = vadd.f32 %v3706, %v3717
  %v3738 = vadd.f32 %v3707, %v3717
  %v3739 = vadd.f32 %v3708, %v3717
  %v3740 = vadd.f32 %v3709, %v3717
  %v3741 = vadd.f32 %v3710, %v3717
  %v3742 = vadd.f32 %v3711, %v3717
  %v3743 = vld [vmem:[%s9] sm:$0x1]
  %v3745 = vlaneseq
  %v3746 = vshrl.u32 %v3745, 7
  %v3747 = vsub.s32 0, %v3746
  %v3748 = vrot.slane %v3743, %v3747
  %v3750 = vmul.f32 %v3539, %v3748
  %v3751 = vmul.f32 %v3545, %v3748
  %v3752 = vmul.f32 %v3551, %v3748
  %v3753 = vmul.f32 %v3557, %v3748
  %v3754 = vmul.f32 %v3563, %v3748
  %v3755 = vmul.f32 %v3569, %v3748
  %v3756 = vmul.f32 %v3575, %v3748
  %v3757 = vmul.f32 %v3581, %v3748
  %v3758 = vmul.f32 %v3587, %v3748
  %v3759 = vmul.f32 %v3593, %v3748
  %v3760 = vmul.f32 %v3599, %v3748
  %v3761 = vmul.f32 %v3605, %v3748
  %v3762 = vmul.f32 %v3611, %v3748
  %v3763 = vmul.f32 %v3617, %v3748
  %v3764 = vmul.f32 %v3623, %v3748
  %v3765 = vmul.f32 %v3629, %v3748
  %v3766 = vmul.f32 %v3635, %v3748
  %v3767 = vmul.f32 %v3641, %v3748
  %v3768 = vmul.f32 %v3647, %v3748
  %v3769 = vmul.f32 %v3653, %v3748
  %v3770 = vmul.f32 %v3659, %v3748
  %v3771 = vmul.f32 %v3665, %v3748
  %v3772 = vmul.f32 %v3671, %v3748
  %v3773 = vmul.f32 %v3677, %v3748
  %v3774 = vmul.f32 %v3541, %v3686
  %v3775 = vmul.f32 %v3547, %v3686
  %v3776 = vmul.f32 %v3553, %v3686
  %v3777 = vmul.f32 %v3559, %v3686
  %v3778 = vmul.f32 %v3565, %v3686
  %v3779 = vmul.f32 %v3571, %v3686
  %v3780 = vmul.f32 %v3577, %v3686
  %v3781 = vmul.f32 %v3583, %v3686
  %v3782 = vmul.f32 %v3589, %v3686
  %v3783 = vmul.f32 %v3595, %v3686
  %v3784 = vmul.f32 %v3601, %v3686
  %v3785 = vmul.f32 %v3607, %v3686
  %v3786 = vmul.f32 %v3613, %v3686
  %v3787 = vmul.f32 %v3619, %v3686
  %v3788 = vmul.f32 %v3625, %v3686
  %v3789 = vmul.f32 %v3631, %v3686
  %v3790 = vmul.f32 %v3637, %v3686
  %v3791 = vmul.f32 %v3643, %v3686
  %v3792 = vmul.f32 %v3649, %v3686
  %v3793 = vmul.f32 %v3655, %v3686
  %v3794 = vmul.f32 %v3661, %v3686
  %v3795 = vmul.f32 %v3667, %v3686
  %v3796 = vmul.f32 %v3673, %v3686
  %v3797 = vmul.f32 %v3679, %v3686
  %v3798 = vadd.f32 %v3750, %v3774
  %v3799 = vadd.f32 %v3751, %v3775
  %v3800 = vadd.f32 %v3752, %v3776
  %v3801 = vadd.f32 %v3753, %v3777
  %v3802 = vadd.f32 %v3754, %v3778
  %v3803 = vadd.f32 %v3755, %v3779
  %v3804 = vadd.f32 %v3756, %v3780
  %v3805 = vadd.f32 %v3757, %v3781
  %v3806 = vadd.f32 %v3758, %v3782
  %v3807 = vadd.f32 %v3759, %v3783
  %v3808 = vadd.f32 %v3760, %v3784
  %v3809 = vadd.f32 %v3761, %v3785
  %v3810 = vadd.f32 %v3762, %v3786
  %v3811 = vadd.f32 %v3763, %v3787
  %v3812 = vadd.f32 %v3764, %v3788
  %v3813 = vadd.f32 %v3765, %v3789
  %v3814 = vadd.f32 %v3766, %v3790
  %v3815 = vadd.f32 %v3767, %v3791
  %v3816 = vadd.f32 %v3768, %v3792
  %v3817 = vadd.f32 %v3769, %v3793
  %v3818 = vadd.f32 %v3770, %v3794
  %v3819 = vadd.f32 %v3771, %v3795
  %v3820 = vadd.f32 %v3772, %v3796
  %v3821 = vadd.f32 %v3773, %v3797
  %v3822 = vld [vmem:[%s10] sm:$0x1]
  %v3824 = vlaneseq
  %v3825 = vshrl.u32 %v3824, 7
  %v3826 = vsub.s32 0, %v3825
  %v3827 = vrot.slane %v3822, %v3826
  %v3829 = vadd.f32 %v3798, %v3827
  %v3830 = vadd.f32 %v3799, %v3827
  %v3831 = vadd.f32 %v3800, %v3827
  %v3832 = vadd.f32 %v3801, %v3827
  %v3833 = vadd.f32 %v3802, %v3827
  %v3834 = vadd.f32 %v3803, %v3827
  %v3835 = vadd.f32 %v3804, %v3827
  %v3836 = vadd.f32 %v3805, %v3827
  %v3837 = vadd.f32 %v3806, %v3827
  %v3838 = vadd.f32 %v3807, %v3827
  %v3839 = vadd.f32 %v3808, %v3827
  %v3840 = vadd.f32 %v3809, %v3827
  %v3841 = vadd.f32 %v3810, %v3827
  %v3842 = vadd.f32 %v3811, %v3827
  %v3843 = vadd.f32 %v3812, %v3827
  %v3844 = vadd.f32 %v3813, %v3827
  %v3845 = vadd.f32 %v3814, %v3827
  %v3846 = vadd.f32 %v3815, %v3827
  %v3847 = vadd.f32 %v3816, %v3827
  %v3848 = vadd.f32 %v3817, %v3827
  %v3849 = vadd.f32 %v3818, %v3827
  %v3850 = vadd.f32 %v3819, %v3827
  %v3851 = vadd.f32 %v3820, %v3827
  %v3852 = vadd.f32 %v3821, %v3827
  %vm3853 = vcmp.gt.f32.partialorder %v3719, 0.0
  %vm3854 = vcmp.gt.f32.partialorder %v3720, 0.0
  %vm3855 = vcmp.gt.f32.partialorder %v3721, 0.0
  %vm3856 = vcmp.gt.f32.partialorder %v3722, 0.0
  %vm3857 = vcmp.gt.f32.partialorder %v3723, 0.0
  %vm3858 = vcmp.gt.f32.partialorder %v3724, 0.0
  %vm3859 = vcmp.gt.f32.partialorder %v3725, 0.0
  %vm3860 = vcmp.gt.f32.partialorder %v3726, 0.0
  %vm3861 = vcmp.gt.f32.partialorder %v3727, 0.0
  %vm3862 = vcmp.gt.f32.partialorder %v3728, 0.0
  %vm3863 = vcmp.gt.f32.partialorder %v3729, 0.0
  %vm3864 = vcmp.gt.f32.partialorder %v3730, 0.0
  %vm3865 = vcmp.gt.f32.partialorder %v3731, 0.0
  %vm3866 = vcmp.gt.f32.partialorder %v3732, 0.0
  %vm3867 = vcmp.gt.f32.partialorder %v3733, 0.0
  %vm3868 = vcmp.gt.f32.partialorder %v3734, 0.0
  %vm3869 = vcmp.gt.f32.partialorder %v3735, 0.0
  %vm3870 = vcmp.gt.f32.partialorder %v3736, 0.0
  %vm3871 = vcmp.gt.f32.partialorder %v3737, 0.0
  %vm3872 = vcmp.gt.f32.partialorder %v3738, 0.0
  %vm3873 = vcmp.gt.f32.partialorder %v3739, 0.0
  %vm3874 = vcmp.gt.f32.partialorder %v3740, 0.0
  %vm3875 = vcmp.gt.f32.partialorder %v3741, 0.0
  %vm3876 = vcmp.gt.f32.partialorder %v3742, 0.0
  %v3877 = vsel %vm3853, 1, 0
  %v3878 = vsel %vm3854, 1, 0
  %v3879 = vsel %vm3855, 1, 0
  %v3880 = vsel %vm3856, 1, 0
  %v3881 = vsel %vm3857, 1, 0
  %v3882 = vsel %vm3858, 1, 0
  %v3883 = vsel %vm3859, 1, 0
  %v3884 = vsel %vm3860, 1, 0
  %v3885 = vsel %vm3861, 1, 0
  %v3886 = vsel %vm3862, 1, 0
  %v3887 = vsel %vm3863, 1, 0
  %v3888 = vsel %vm3864, 1, 0
  %v3889 = vsel %vm3865, 1, 0
  %v3890 = vsel %vm3866, 1, 0
  %v3891 = vsel %vm3867, 1, 0
  %v3892 = vsel %vm3868, 1, 0
  %v3893 = vsel %vm3869, 1, 0
  %v3894 = vsel %vm3870, 1, 0
  %v3895 = vsel %vm3871, 1, 0
  %v3896 = vsel %vm3872, 1, 0
  %v3897 = vsel %vm3873, 1, 0
  %v3898 = vsel %vm3874, 1, 0
  %v3899 = vsel %vm3875, 1, 0
  %v3900 = vsel %vm3876, 1, 0
  %v3901 = vcvt.s32.f32 %v3877
  %v3902 = vcvt.s32.f32 %v3878
  %v3903 = vcvt.s32.f32 %v3879
  %v3904 = vcvt.s32.f32 %v3880
  %v3905 = vcvt.s32.f32 %v3881
  %v3906 = vcvt.s32.f32 %v3882
  %v3907 = vcvt.s32.f32 %v3883
  %v3908 = vcvt.s32.f32 %v3884
  %v3909 = vcvt.s32.f32 %v3885
  %v3910 = vcvt.s32.f32 %v3886
  %v3911 = vcvt.s32.f32 %v3887
  %v3912 = vcvt.s32.f32 %v3888
  %v3913 = vcvt.s32.f32 %v3889
  %v3914 = vcvt.s32.f32 %v3890
  %v3915 = vcvt.s32.f32 %v3891
  %v3916 = vcvt.s32.f32 %v3892
  %v3917 = vcvt.s32.f32 %v3893
  %v3918 = vcvt.s32.f32 %v3894
  %v3919 = vcvt.s32.f32 %v3895
  %v3920 = vcvt.s32.f32 %v3896
  %v3921 = vcvt.s32.f32 %v3897
  %v3922 = vcvt.s32.f32 %v3898
  %v3923 = vcvt.s32.f32 %v3899
  %v3924 = vcvt.s32.f32 %v3900
  %v3925 = vmul.f32 %v3719, %v3901
  %v3926 = vmul.f32 %v3720, %v3902
  %v3927 = vmul.f32 %v3721, %v3903
  %v3928 = vmul.f32 %v3722, %v3904
  %v3929 = vmul.f32 %v3723, %v3905
  %v3930 = vmul.f32 %v3724, %v3906
  %v3931 = vmul.f32 %v3725, %v3907
  %v3932 = vmul.f32 %v3726, %v3908
  %v3933 = vmul.f32 %v3727, %v3909
  %v3934 = vmul.f32 %v3728, %v3910
  %v3935 = vmul.f32 %v3729, %v3911
  %v3936 = vmul.f32 %v3730, %v3912
  %v3937 = vmul.f32 %v3731, %v3913
  %v3938 = vmul.f32 %v3732, %v3914
  %v3939 = vmul.f32 %v3733, %v3915
  %v3940 = vmul.f32 %v3734, %v3916
  %v3941 = vmul.f32 %v3735, %v3917
  %v3942 = vmul.f32 %v3736, %v3918
  %v3943 = vmul.f32 %v3737, %v3919
  %v3944 = vmul.f32 %v3738, %v3920
  %v3945 = vmul.f32 %v3739, %v3921
  %v3946 = vmul.f32 %v3740, %v3922
  %v3947 = vmul.f32 %v3741, %v3923
  %v3948 = vmul.f32 %v3742, %v3924
  %v3949 = vmul.f32 %v3829, %v3901
  %v3950 = vmul.f32 %v3830, %v3902
  %v3951 = vmul.f32 %v3831, %v3903
  %v3952 = vmul.f32 %v3832, %v3904
  %v3953 = vmul.f32 %v3833, %v3905
  %v3954 = vmul.f32 %v3834, %v3906
  %v3955 = vmul.f32 %v3835, %v3907
  %v3956 = vmul.f32 %v3836, %v3908
  %v3957 = vmul.f32 %v3837, %v3909
  %v3958 = vmul.f32 %v3838, %v3910
  %v3959 = vmul.f32 %v3839, %v3911
  %v3960 = vmul.f32 %v3840, %v3912
  %v3961 = vmul.f32 %v3841, %v3913
  %v3962 = vmul.f32 %v3842, %v3914
  %v3963 = vmul.f32 %v3843, %v3915
  %v3964 = vmul.f32 %v3844, %v3916
  %v3965 = vmul.f32 %v3845, %v3917
  %v3966 = vmul.f32 %v3846, %v3918
  %v3967 = vmul.f32 %v3847, %v3919
  %v3968 = vmul.f32 %v3848, %v3920
  %v3969 = vmul.f32 %v3849, %v3921
  %v3970 = vmul.f32 %v3850, %v3922
  %v3971 = vmul.f32 %v3851, %v3923
  %v3972 = vmul.f32 %v3852, %v3924
  %3973 = vst [vmem:[#allocation4] sm:$0xff] %v3925
  %3974 = vst [vmem:[#allocation4 + $0xc0] sm:$0xff] %v3949
  %3975 = vst [vmem:[#allocation4 + $0x8] sm:$0xff] %v3926
  %3976 = vst [vmem:[#allocation4 + $0xc8] sm:$0xff] %v3950
  %3977 = vst [vmem:[#allocation4 + $0x10] sm:$0xff] %v3927
  %3978 = vst [vmem:[#allocation4 + $0xd0] sm:$0xff] %v3951
  %3979 = vst [vmem:[#allocation4 + $0x18] sm:$0xff] %v3928
  %3980 = vst [vmem:[#allocation4 + $0xd8] sm:$0xff] %v3952
  %3981 = vst [vmem:[#allocation4 + $0x20] sm:$0xff] %v3929
  %3982 = vst [vmem:[#allocation4 + $0xe0] sm:$0xff] %v3953
  %3983 = vst [vmem:[#allocation4 + $0x28] sm:$0xff] %v3930
  %3984 = vst [vmem:[#allocation4 + $0xe8] sm:$0xff] %v3954
  %3985 = vst [vmem:[#allocation4 + $0x30] sm:$0xff] %v3931
  %3986 = vst [vmem:[#allocation4 + $0xf0] sm:$0xff] %v3955
  %3987 = vst [vmem:[#allocation4 + $0x38] sm:$0xff] %v3932
  %3988 = vst [vmem:[#allocation4 + $0xf8] sm:$0xff] %v3956
  %3989 = vst [vmem:[#allocation4 + $0x40] sm:$0xff] %v3933
  %3990 = vst [vmem:[#allocation4 + $0x100] sm:$0xff] %v3957
  %3991 = vst [vmem:[#allocation4 + $0x48] sm:$0xff] %v3934
  %3992 = vst [vmem:[#allocation4 + $0x108] sm:$0xff] %v3958
  %3993 = vst [vmem:[#allocation4 + $0x50] sm:$0xff] %v3935
  %3994 = vst [vmem:[#allocation4 + $0x110] sm:$0xff] %v3959
  %3995 = vst [vmem:[#allocation4 + $0x58] sm:$0xff] %v3936
  %3996 = vst [vmem:[#allocation4 + $0x118] sm:$0xff] %v3960
  %3997 = vst [vmem:[#allocation4 + $0x60] sm:$0xff] %v3937
  %3998 = vst [vmem:[#allocation4 + $0x120] sm:$0xff] %v3961
  %3999 = vst [vmem:[#allocation4 + $0x68] sm:$0xff] %v3938
  %4000 = vst [vmem:[#allocation4 + $0x128] sm:$0xff] %v3962
  %4001 = vst [vmem:[#allocation4 + $0x70] sm:$0xff] %v3939
  %4002 = vst [vmem:[#allocation4 + $0x130] sm:$0xff] %v3963
  %4003 = vst [vmem:[#allocation4 + $0x78] sm:$0xff] %v3940
  %4004 = vst [vmem:[#allocation4 + $0x138] sm:$0xff] %v3964
  %4005 = vst [vmem:[#allocation4 + $0x80] sm:$0xff] %v3941
  %4006 = vst [vmem:[#allocation4 + $0x140] sm:$0xff] %v3965
  %4007 = vst [vmem:[#allocation4 + $0x88] sm:$0xff] %v3942
  %4008 = vst [vmem:[#allocation4 + $0x148] sm:$0xff] %v3966
  %4009 = vst [vmem:[#allocation4 + $0x90] sm:$0xff] %v3943
  %4010 = vst [vmem:[#allocation4 + $0x150] sm:$0xff] %v3967
  %4011 = vst [vmem:[#allocation4 + $0x98] sm:$0xff] %v3944
  %4012 = vst [vmem:[#allocation4 + $0x158] sm:$0xff] %v3968
  %4013 = vst [vmem:[#allocation4 + $0xa0] sm:$0xff] %v3945
  %4014 = vst [vmem:[#allocation4 + $0x160] sm:$0xff] %v3969
  %4015 = vst [vmem:[#allocation4 + $0xa8] sm:$0xff] %v3946
  %4016 = vst [vmem:[#allocation4 + $0x168] sm:$0xff] %v3970
  %4017 = vst [vmem:[#allocation4 + $0xb0] sm:$0xff] %v3947
  %4018 = vst [vmem:[#allocation4 + $0x170] sm:$0xff] %v3971
  %4019 = vst [vmem:[#allocation4 + $0xb8] sm:$0xff] %v3948
  %4020 = vst [vmem:[#allocation4 + $0x178] sm:$0xff] %v3972
  %v4021 = vld [vmem:[#allocation4] sm:$0xff]
  %v4022 = vld [vmem:[#allocation4 + $0x8] sm:$0xff]
  %v4023 = vld [vmem:[#allocation4 + $0x10] sm:$0xff]
  %v4024 = vld [vmem:[#allocation4 + $0x18] sm:$0xff]
  %v4025 = vld [vmem:[#allocation4 + $0x20] sm:$0xff]
  %v4026 = vld [vmem:[#allocation4 + $0x28] sm:$0xff]
  %v4027 = vld [vmem:[#allocation4 + $0x30] sm:$0xff]
  %v4028 = vld [vmem:[#allocation4 + $0x38] sm:$0xff]
  %v4029 = vld [vmem:[#allocation4 + $0x40] sm:$0xff]
  %v4030 = vld [vmem:[#allocation4 + $0x48] sm:$0xff]
  %v4031 = vld [vmem:[#allocation4 + $0x50] sm:$0xff]
  %v4032 = vld [vmem:[#allocation4 + $0x58] sm:$0xff]
  %v4033 = vld [vmem:[#allocation4 + $0x60] sm:$0xff]
  %v4034 = vld [vmem:[#allocation4 + $0x68] sm:$0xff]
  %v4035 = vld [vmem:[#allocation4 + $0x70] sm:$0xff]
  %v4036 = vld [vmem:[#allocation4 + $0x78] sm:$0xff]
  %v4037 = vld [vmem:[#allocation4 + $0x80] sm:$0xff]
  %v4038 = vld [vmem:[#allocation4 + $0x88] sm:$0xff]
  %v4039 = vld [vmem:[#allocation4 + $0x90] sm:$0xff]
  %v4040 = vld [vmem:[#allocation4 + $0x98] sm:$0xff]
  %v4041 = vld [vmem:[#allocation4 + $0xa0] sm:$0xff]
  %v4042 = vld [vmem:[#allocation4 + $0xa8] sm:$0xff]
  %v4043 = vld [vmem:[#allocation4 + $0xb0] sm:$0xff]
  %v4044 = vld [vmem:[#allocation4 + $0xb8] sm:$0xff]
  %v4045 = vld [vmem:[#allocation4 + $0xc0] sm:$0xff]
  %v4046 = vld [vmem:[#allocation4 + $0xc8] sm:$0xff]
  %v4047 = vld [vmem:[#allocation4 + $0xd0] sm:$0xff]
  %v4048 = vld [vmem:[#allocation4 + $0xd8] sm:$0xff]
  %v4049 = vld [vmem:[#allocation4 + $0xe0] sm:$0xff]
  %v4050 = vld [vmem:[#allocation4 + $0xe8] sm:$0xff]
  %v4051 = vld [vmem:[#allocation4 + $0xf0] sm:$0xff]
  %v4052 = vld [vmem:[#allocation4 + $0xf8] sm:$0xff]
  %v4053 = vld [vmem:[#allocation4 + $0x100] sm:$0xff]
  %v4054 = vld [vmem:[#allocation4 + $0x108] sm:$0xff]
  %v4055 = vld [vmem:[#allocation4 + $0x110] sm:$0xff]
  %v4056 = vld [vmem:[#allocation4 + $0x118] sm:$0xff]
  %v4057 = vld [vmem:[#allocation4 + $0x120] sm:$0xff]
  %v4058 = vld [vmem:[#allocation4 + $0x128] sm:$0xff]
  %v4059 = vld [vmem:[#allocation4 + $0x130] sm:$0xff]
  %v4060 = vld [vmem:[#allocation4 + $0x138] sm:$0xff]
  %v4061 = vld [vmem:[#allocation4 + $0x140] sm:$0xff]
  %v4062 = vld [vmem:[#allocation4 + $0x148] sm:$0xff]
  %v4063 = vld [vmem:[#allocation4 + $0x150] sm:$0xff]
  %v4064 = vld [vmem:[#allocation4 + $0x158] sm:$0xff]
  %v4065 = vld [vmem:[#allocation4 + $0x160] sm:$0xff]
  %v4066 = vld [vmem:[#allocation4 + $0x168] sm:$0xff]
  %v4067 = vld [vmem:[#allocation4 + $0x170] sm:$0xff]
  %v4068 = vld [vmem:[#allocation4 + $0x178] sm:$0xff]
  %v4069 = vld [vmem:[%s11] sm:$0xff]
  %v4070 = vld [vmem:[%s11 + $0x8] sm:$0xff]
  %v4071 = vld [vmem:[%s11 + $0x10] sm:$0xff]
  %v4072 = vld [vmem:[%s11 + $0x18] sm:$0xff]
  %v4073 = vld [vmem:[%s11 + $0x20] sm:$0xff]
  %v4074 = vld [vmem:[%s11 + $0x28] sm:$0xff]
  %v4075 = vld [vmem:[%s11 + $0x30] sm:$0xff]
  %v4076 = vld [vmem:[%s11 + $0x38] sm:$0xff]
  %v4077 = vld [vmem:[%s11 + $0x40] sm:$0xff]
  %v4078 = vld [vmem:[%s11 + $0x48] sm:$0xff]
  %v4079 = vld [vmem:[%s11 + $0x50] sm:$0xff]
  %v4080 = vld [vmem:[%s11 + $0x58] sm:$0xff]
  %v4081 = vld [vmem:[%s11 + $0x60] sm:$0xff]
  %v4082 = vld [vmem:[%s11 + $0x68] sm:$0xff]
  %v4083 = vld [vmem:[%s11 + $0x70] sm:$0xff]
  %v4084 = vld [vmem:[%s11 + $0x78] sm:$0xff]
  %v4085 = vld [vmem:[%s11 + $0x80] sm:$0xff]
  %v4086 = vld [vmem:[%s11 + $0x88] sm:$0xff]
  %v4087 = vld [vmem:[%s11 + $0x90] sm:$0xff]
  %v4088 = vld [vmem:[%s11 + $0x98] sm:$0xff]
  %v4089 = vld [vmem:[%s11 + $0xa0] sm:$0xff]
  %v4090 = vld [vmem:[%s11 + $0xa8] sm:$0xff]
  %v4091 = vld [vmem:[%s11 + $0xb0] sm:$0xff]
  %v4092 = vld [vmem:[%s11 + $0xb8] sm:$0xff]
  %v4093 = vld [vmem:[%s11 + $0xc0] sm:$0xff]
  %v4094 = vld [vmem:[%s11 + $0xc8] sm:$0xff]
  %v4095 = vld [vmem:[%s11 + $0xd0] sm:$0xff]
  %v4096 = vld [vmem:[%s11 + $0xd8] sm:$0xff]
  %v4097 = vld [vmem:[%s11 + $0xe0] sm:$0xff]
  %v4098 = vld [vmem:[%s11 + $0xe8] sm:$0xff]
  %v4099 = vld [vmem:[%s11 + $0xf0] sm:$0xff]
  %v4100 = vld [vmem:[%s11 + $0xf8] sm:$0xff]
  %v4101 = vld [vmem:[%s11 + $0x100] sm:$0xff]
  %v4102 = vld [vmem:[%s11 + $0x108] sm:$0xff]
  %v4103 = vld [vmem:[%s11 + $0x110] sm:$0xff]
  %v4104 = vld [vmem:[%s11 + $0x118] sm:$0xff]
  %v4105 = vld [vmem:[%s11 + $0x120] sm:$0xff]
  %v4106 = vld [vmem:[%s11 + $0x128] sm:$0xff]
  %v4107 = vld [vmem:[%s11 + $0x130] sm:$0xff]
  %v4108 = vld [vmem:[%s11 + $0x138] sm:$0xff]
  %v4109 = vld [vmem:[%s11 + $0x140] sm:$0xff]
  %v4110 = vld [vmem:[%s11 + $0x148] sm:$0xff]
  %v4111 = vld [vmem:[%s11 + $0x150] sm:$0xff]
  %v4112 = vld [vmem:[%s11 + $0x158] sm:$0xff]
  %v4113 = vld [vmem:[%s11 + $0x160] sm:$0xff]
  %v4114 = vld [vmem:[%s11 + $0x168] sm:$0xff]
  %v4115 = vld [vmem:[%s11 + $0x170] sm:$0xff]
  %v4116 = vld [vmem:[%s11 + $0x178] sm:$0xff]
  %v4117 = vld [vmem:[%s11 + $0x180] sm:$0xff]
  %v4118 = vld [vmem:[%s11 + $0x188] sm:$0xff]
  %v4119 = vld [vmem:[%s11 + $0x190] sm:$0xff]
  %v4120 = vld [vmem:[%s11 + $0x198] sm:$0xff]
  %v4121 = vld [vmem:[%s11 + $0x1a0] sm:$0xff]
  %v4122 = vld [vmem:[%s11 + $0x1a8] sm:$0xff]
  %v4123 = vld [vmem:[%s11 + $0x1b0] sm:$0xff]
  %v4124 = vld [vmem:[%s11 + $0x1b8] sm:$0xff]
  %v4125 = vld [vmem:[%s11 + $0x1c0] sm:$0xff]
  %v4126 = vld [vmem:[%s11 + $0x1c8] sm:$0xff]
  %v4127 = vld [vmem:[%s11 + $0x1d0] sm:$0xff]
  %v4128 = vld [vmem:[%s11 + $0x1d8] sm:$0xff]
  %v4129 = vld [vmem:[%s11 + $0x1e0] sm:$0xff]
  %v4130 = vld [vmem:[%s11 + $0x1e8] sm:$0xff]
  %v4131 = vld [vmem:[%s11 + $0x1f0] sm:$0xff]
  %v4132 = vld [vmem:[%s11 + $0x1f8] sm:$0xff]
  %v4133 = vld [vmem:[%s11 + $0x200] sm:$0xff]
  %v4134 = vld [vmem:[%s11 + $0x208] sm:$0xff]
  %v4135 = vld [vmem:[%s11 + $0x210] sm:$0xff]
  %v4136 = vld [vmem:[%s11 + $0x218] sm:$0xff]
  %v4137 = vld [vmem:[%s11 + $0x220] sm:$0xff]
  %v4138 = vld [vmem:[%s11 + $0x228] sm:$0xff]
  %v4139 = vld [vmem:[%s11 + $0x230] sm:$0xff]
  %v4140 = vld [vmem:[%s11 + $0x238] sm:$0xff]
  %v4141 = vld [vmem:[%s11 + $0x240] sm:$0xff]
  %v4142 = vld [vmem:[%s11 + $0x248] sm:$0xff]
  %v4143 = vld [vmem:[%s11 + $0x250] sm:$0xff]
  %v4144 = vld [vmem:[%s11 + $0x258] sm:$0xff]
  %v4145 = vld [vmem:[%s11 + $0x260] sm:$0xff]
  %v4146 = vld [vmem:[%s11 + $0x268] sm:$0xff]
  %v4147 = vld [vmem:[%s11 + $0x270] sm:$0xff]
  %v4148 = vld [vmem:[%s11 + $0x278] sm:$0xff]
  %v4149 = vld [vmem:[%s11 + $0x280] sm:$0xff]
  %v4150 = vld [vmem:[%s11 + $0x288] sm:$0xff]
  %v4151 = vld [vmem:[%s11 + $0x290] sm:$0xff]
  %v4152 = vld [vmem:[%s11 + $0x298] sm:$0xff]
  %v4153 = vld [vmem:[%s11 + $0x2a0] sm:$0xff]
  %v4154 = vld [vmem:[%s11 + $0x2a8] sm:$0xff]
  %v4155 = vld [vmem:[%s11 + $0x2b0] sm:$0xff]
  %v4156 = vld [vmem:[%s11 + $0x2b8] sm:$0xff]
  %v4157 = vld [vmem:[%s11 + $0x2c0] sm:$0xff]
  %v4158 = vld [vmem:[%s11 + $0x2c8] sm:$0xff]
  %v4159 = vld [vmem:[%s11 + $0x2d0] sm:$0xff]
  %v4160 = vld [vmem:[%s11 + $0x2d8] sm:$0xff]
  %v4161 = vld [vmem:[%s11 + $0x2e0] sm:$0xff]
  %v4162 = vld [vmem:[%s11 + $0x2e8] sm:$0xff]
  %v4163 = vld [vmem:[%s11 + $0x2f0] sm:$0xff]
  %v4164 = vld [vmem:[%s11 + $0x2f8] sm:$0xff]
  %v4165 = vld [vmem:[%s11 + $0x300] sm:$0xff]
  %v4166 = vld [vmem:[%s11 + $0x308] sm:$0xff]
  %v4167 = vld [vmem:[%s11 + $0x310] sm:$0xff]
  %v4168 = vld [vmem:[%s11 + $0x318] sm:$0xff]
  %v4169 = vld [vmem:[%s11 + $0x320] sm:$0xff]
  %v4170 = vld [vmem:[%s11 + $0x328] sm:$0xff]
  %v4171 = vld [vmem:[%s11 + $0x330] sm:$0xff]
  %v4172 = vld [vmem:[%s11 + $0x338] sm:$0xff]
  %v4173 = vld [vmem:[%s11 + $0x340] sm:$0xff]
  %v4174 = vld [vmem:[%s11 + $0x348] sm:$0xff]
  %v4175 = vld [vmem:[%s11 + $0x350] sm:$0xff]
  %v4176 = vld [vmem:[%s11 + $0x358] sm:$0xff]
  %v4177 = vld [vmem:[%s11 + $0x360] sm:$0xff]
  %v4178 = vld [vmem:[%s11 + $0x368] sm:$0xff]
  %v4179 = vld [vmem:[%s11 + $0x370] sm:$0xff]
  %v4180 = vld [vmem:[%s11 + $0x378] sm:$0xff]
  %v4181 = vld [vmem:[%s11 + $0x380] sm:$0xff]
  %v4182 = vld [vmem:[%s11 + $0x388] sm:$0xff]
  %v4183 = vld [vmem:[%s11 + $0x390] sm:$0xff]
  %v4184 = vld [vmem:[%s11 + $0x398] sm:$0xff]
  %v4185 = vld [vmem:[%s11 + $0x3a0] sm:$0xff]
  %v4186 = vld [vmem:[%s11 + $0x3a8] sm:$0xff]
  %v4187 = vld [vmem:[%s11 + $0x3b0] sm:$0xff]
  %v4188 = vld [vmem:[%s11 + $0x3b8] sm:$0xff]
  %v4189 = vld [vmem:[%s11 + $0x3c0] sm:$0xff]
  %v4190 = vld [vmem:[%s11 + $0x3c8] sm:$0xff]
  %v4191 = vld [vmem:[%s11 + $0x3d0] sm:$0xff]
  %v4192 = vld [vmem:[%s11 + $0x3d8] sm:$0xff]
  %v4193 = vld [vmem:[%s11 + $0x3e0] sm:$0xff]
  %v4194 = vld [vmem:[%s11 + $0x3e8] sm:$0xff]
  %v4195 = vld [vmem:[%s11 + $0x3f0] sm:$0xff]
  %v4196 = vld [vmem:[%s11 + $0x3f8] sm:$0xff]
  %v4197 = vld [vmem:[%s11 + $0x400] sm:$0xff]
  %v4198 = vld [vmem:[%s11 + $0x408] sm:$0xff]
  %v4199 = vld [vmem:[%s11 + $0x410] sm:$0xff]
  %v4200 = vld [vmem:[%s11 + $0x418] sm:$0xff]
  %v4201 = vld [vmem:[%s11 + $0x420] sm:$0xff]
  %v4202 = vld [vmem:[%s11 + $0x428] sm:$0xff]
  %v4203 = vld [vmem:[%s11 + $0x430] sm:$0xff]
  %v4204 = vld [vmem:[%s11 + $0x438] sm:$0xff]
  %v4205 = vld [vmem:[%s11 + $0x440] sm:$0xff]
  %v4206 = vld [vmem:[%s11 + $0x448] sm:$0xff]
  %v4207 = vld [vmem:[%s11 + $0x450] sm:$0xff]
  %v4208 = vld [vmem:[%s11 + $0x458] sm:$0xff]
  %v4209 = vld [vmem:[%s11 + $0x460] sm:$0xff]
  %v4210 = vld [vmem:[%s11 + $0x468] sm:$0xff]
  %v4211 = vld [vmem:[%s11 + $0x470] sm:$0xff]
  %v4212 = vld [vmem:[%s11 + $0x478] sm:$0xff]
  %v4213 = vld [vmem:[%s11 + $0x480] sm:$0xff]
  %v4214 = vld [vmem:[%s11 + $0x488] sm:$0xff]
  %v4215 = vld [vmem:[%s11 + $0x490] sm:$0xff]
  %v4216 = vld [vmem:[%s11 + $0x498] sm:$0xff]
  %v4217 = vld [vmem:[%s11 + $0x4a0] sm:$0xff]
  %v4218 = vld [vmem:[%s11 + $0x4a8] sm:$0xff]
  %v4219 = vld [vmem:[%s11 + $0x4b0] sm:$0xff]
  %v4220 = vld [vmem:[%s11 + $0x4b8] sm:$0xff]
  %v4221 = vld [vmem:[%s11 + $0x4c0] sm:$0xff]
  %v4222 = vld [vmem:[%s11 + $0x4c8] sm:$0xff]
  %v4223 = vld [vmem:[%s11 + $0x4d0] sm:$0xff]
  %v4224 = vld [vmem:[%s11 + $0x4d8] sm:$0xff]
  %v4225 = vld [vmem:[%s11 + $0x4e0] sm:$0xff]
  %v4226 = vld [vmem:[%s11 + $0x4e8] sm:$0xff]
  %v4227 = vld [vmem:[%s11 + $0x4f0] sm:$0xff]
  %v4228 = vld [vmem:[%s11 + $0x4f8] sm:$0xff]
  %v4229 = vld [vmem:[%s11 + $0x500] sm:$0xff]
  %v4230 = vld [vmem:[%s11 + $0x508] sm:$0xff]
  %v4231 = vld [vmem:[%s11 + $0x510] sm:$0xff]
  %v4232 = vld [vmem:[%s11 + $0x518] sm:$0xff]
  %v4233 = vld [vmem:[%s11 + $0x520] sm:$0xff]
  %v4234 = vld [vmem:[%s11 + $0x528] sm:$0xff]
  %v4235 = vld [vmem:[%s11 + $0x530] sm:$0xff]
  %v4236 = vld [vmem:[%s11 + $0x538] sm:$0xff]
  %v4237 = vld [vmem:[%s11 + $0x540] sm:$0xff]
  %v4238 = vld [vmem:[%s11 + $0x548] sm:$0xff]
  %v4239 = vld [vmem:[%s11 + $0x550] sm:$0xff]
  %v4240 = vld [vmem:[%s11 + $0x558] sm:$0xff]
  %v4241 = vld [vmem:[%s11 + $0x560] sm:$0xff]
  %v4242 = vld [vmem:[%s11 + $0x568] sm:$0xff]
  %v4243 = vld [vmem:[%s11 + $0x570] sm:$0xff]
  %v4244 = vld [vmem:[%s11 + $0x578] sm:$0xff]
  %v4245 = vld [vmem:[%s11 + $0x580] sm:$0xff]
  %v4246 = vld [vmem:[%s11 + $0x588] sm:$0xff]
  %v4247 = vld [vmem:[%s11 + $0x590] sm:$0xff]
  %v4248 = vld [vmem:[%s11 + $0x598] sm:$0xff]
  %v4249 = vld [vmem:[%s11 + $0x5a0] sm:$0xff]
  %v4250 = vld [vmem:[%s11 + $0x5a8] sm:$0xff]
  %v4251 = vld [vmem:[%s11 + $0x5b0] sm:$0xff]
  %v4252 = vld [vmem:[%s11 + $0x5b8] sm:$0xff]
  %v4253 = vld [vmem:[%s11 + $0x5c0] sm:$0xff]
  %v4254 = vld [vmem:[%s11 + $0x5c8] sm:$0xff]
  %v4255 = vld [vmem:[%s11 + $0x5d0] sm:$0xff]
  %v4256 = vld [vmem:[%s11 + $0x5d8] sm:$0xff]
  %v4257 = vld [vmem:[%s11 + $0x5e0] sm:$0xff]
  %v4258 = vld [vmem:[%s11 + $0x5e8] sm:$0xff]
  %v4259 = vld [vmem:[%s11 + $0x5f0] sm:$0xff]
  %v4260 = vld [vmem:[%s11 + $0x5f8] sm:$0xff]
  %v4261 = vld [vmem:[%s11 + $0x600] sm:$0xff]
  %v4262 = vld [vmem:[%s11 + $0x608] sm:$0xff]
  %v4263 = vld [vmem:[%s11 + $0x610] sm:$0xff]
  %v4264 = vld [vmem:[%s11 + $0x618] sm:$0xff]
  %v4265 = vld [vmem:[%s11 + $0x620] sm:$0xff]
  %v4266 = vld [vmem:[%s11 + $0x628] sm:$0xff]
  %v4267 = vld [vmem:[%s11 + $0x630] sm:$0xff]
  %v4268 = vld [vmem:[%s11 + $0x638] sm:$0xff]
  %v4269 = vld [vmem:[%s11 + $0x640] sm:$0xff]
  %v4270 = vld [vmem:[%s11 + $0x648] sm:$0xff]
  %v4271 = vld [vmem:[%s11 + $0x650] sm:$0xff]
  %v4272 = vld [vmem:[%s11 + $0x658] sm:$0xff]
  %v4273 = vld [vmem:[%s11 + $0x660] sm:$0xff]
  %v4274 = vld [vmem:[%s11 + $0x668] sm:$0xff]
  %v4275 = vld [vmem:[%s11 + $0x670] sm:$0xff]
  %v4276 = vld [vmem:[%s11 + $0x678] sm:$0xff]
  %v4277 = vld [vmem:[%s11 + $0x680] sm:$0xff]
  %v4278 = vld [vmem:[%s11 + $0x688] sm:$0xff]
  %v4279 = vld [vmem:[%s11 + $0x690] sm:$0xff]
  %v4280 = vld [vmem:[%s11 + $0x698] sm:$0xff]
  %v4281 = vld [vmem:[%s11 + $0x6a0] sm:$0xff]
  %v4282 = vld [vmem:[%s11 + $0x6a8] sm:$0xff]
  %v4283 = vld [vmem:[%s11 + $0x6b0] sm:$0xff]
  %v4284 = vld [vmem:[%s11 + $0x6b8] sm:$0xff]
  %v4285 = vld [vmem:[%s11 + $0x6c0] sm:$0xff]
  %v4286 = vld [vmem:[%s11 + $0x6c8] sm:$0xff]
  %v4287 = vld [vmem:[%s11 + $0x6d0] sm:$0xff]
  %v4288 = vld [vmem:[%s11 + $0x6d8] sm:$0xff]
  %v4289 = vld [vmem:[%s11 + $0x6e0] sm:$0xff]
  %v4290 = vld [vmem:[%s11 + $0x6e8] sm:$0xff]
  %v4291 = vld [vmem:[%s11 + $0x6f0] sm:$0xff]
  %v4292 = vld [vmem:[%s11 + $0x6f8] sm:$0xff]
  %v4293 = vld [vmem:[%s11 + $0x700] sm:$0xff]
  %v4294 = vld [vmem:[%s11 + $0x708] sm:$0xff]
  %v4295 = vld [vmem:[%s11 + $0x710] sm:$0xff]
  %v4296 = vld [vmem:[%s11 + $0x718] sm:$0xff]
  %v4297 = vld [vmem:[%s11 + $0x720] sm:$0xff]
  %v4298 = vld [vmem:[%s11 + $0x728] sm:$0xff]
  %v4299 = vld [vmem:[%s11 + $0x730] sm:$0xff]
  %v4300 = vld [vmem:[%s11 + $0x738] sm:$0xff]
  %v4301 = vld [vmem:[%s11 + $0x740] sm:$0xff]
  %v4302 = vld [vmem:[%s11 + $0x748] sm:$0xff]
  %v4303 = vld [vmem:[%s11 + $0x750] sm:$0xff]
  %v4304 = vld [vmem:[%s11 + $0x758] sm:$0xff]
  %v4305 = vld [vmem:[%s11 + $0x760] sm:$0xff]
  %v4306 = vld [vmem:[%s11 + $0x768] sm:$0xff]
  %v4307 = vld [vmem:[%s11 + $0x770] sm:$0xff]
  %v4308 = vld [vmem:[%s11 + $0x778] sm:$0xff]
  %v4309 = vld [vmem:[%s11 + $0x780] sm:$0xff]
  %v4310 = vld [vmem:[%s11 + $0x788] sm:$0xff]
  %v4311 = vld [vmem:[%s11 + $0x790] sm:$0xff]
  %v4312 = vld [vmem:[%s11 + $0x798] sm:$0xff]
  %v4313 = vld [vmem:[%s11 + $0x7a0] sm:$0xff]
  %v4314 = vld [vmem:[%s11 + $0x7a8] sm:$0xff]
  %v4315 = vld [vmem:[%s11 + $0x7b0] sm:$0xff]
  %v4316 = vld [vmem:[%s11 + $0x7b8] sm:$0xff]
  %v4317 = vld [vmem:[%s11 + $0x7c0] sm:$0xff]
  %v4318 = vld [vmem:[%s11 + $0x7c8] sm:$0xff]
  %v4319 = vld [vmem:[%s11 + $0x7d0] sm:$0xff]
  %v4320 = vld [vmem:[%s11 + $0x7d8] sm:$0xff]
  %v4321 = vld [vmem:[%s11 + $0x7e0] sm:$0xff]
  %v4322 = vld [vmem:[%s11 + $0x7e8] sm:$0xff]
  %v4323 = vld [vmem:[%s11 + $0x7f0] sm:$0xff]
  %v4324 = vld [vmem:[%s11 + $0x7f8] sm:$0xff]
  %v4325 = vld [vmem:[%s11 + $0x800] sm:$0xff]
  %v4326 = vld [vmem:[%s11 + $0x808] sm:$0xff]
  %v4327 = vld [vmem:[%s11 + $0x810] sm:$0xff]
  %v4328 = vld [vmem:[%s11 + $0x818] sm:$0xff]
  %v4329 = vld [vmem:[%s11 + $0x820] sm:$0xff]
  %v4330 = vld [vmem:[%s11 + $0x828] sm:$0xff]
  %v4331 = vld [vmem:[%s11 + $0x830] sm:$0xff]
  %v4332 = vld [vmem:[%s11 + $0x838] sm:$0xff]
  %v4333 = vld [vmem:[%s11 + $0x840] sm:$0xff]
  %v4334 = vld [vmem:[%s11 + $0x848] sm:$0xff]
  %v4335 = vld [vmem:[%s11 + $0x850] sm:$0xff]
  %v4336 = vld [vmem:[%s11 + $0x858] sm:$0xff]
  %v4337 = vld [vmem:[%s11 + $0x860] sm:$0xff]
  %v4338 = vld [vmem:[%s11 + $0x868] sm:$0xff]
  %v4339 = vld [vmem:[%s11 + $0x870] sm:$0xff]
  %v4340 = vld [vmem:[%s11 + $0x878] sm:$0xff]
  %v4341 = vld [vmem:[%s11 + $0x880] sm:$0xff]
  %v4342 = vld [vmem:[%s11 + $0x888] sm:$0xff]
  %v4343 = vld [vmem:[%s11 + $0x890] sm:$0xff]
  %v4344 = vld [vmem:[%s11 + $0x898] sm:$0xff]
  %v4345 = vld [vmem:[%s11 + $0x8a0] sm:$0xff]
  %v4346 = vld [vmem:[%s11 + $0x8a8] sm:$0xff]
  %v4347 = vld [vmem:[%s11 + $0x8b0] sm:$0xff]
  %v4348 = vld [vmem:[%s11 + $0x8b8] sm:$0xff]
  %v4349 = vld [vmem:[%s11 + $0x8c0] sm:$0xff]
  %v4350 = vld [vmem:[%s11 + $0x8c8] sm:$0xff]
  %v4351 = vld [vmem:[%s11 + $0x8d0] sm:$0xff]
  %v4352 = vld [vmem:[%s11 + $0x8d8] sm:$0xff]
  %v4353 = vld [vmem:[%s11 + $0x8e0] sm:$0xff]
  %v4354 = vld [vmem:[%s11 + $0x8e8] sm:$0xff]
  %v4355 = vld [vmem:[%s11 + $0x8f0] sm:$0xff]
  %v4356 = vld [vmem:[%s11 + $0x8f8] sm:$0xff]
  %v4357 = vld [vmem:[%s11 + $0x900] sm:$0xff]
  %v4358 = vld [vmem:[%s11 + $0x908] sm:$0xff]
  %v4359 = vld [vmem:[%s11 + $0x910] sm:$0xff]
  %v4360 = vld [vmem:[%s11 + $0x918] sm:$0xff]
  %v4361 = vld [vmem:[%s11 + $0x920] sm:$0xff]
  %v4362 = vld [vmem:[%s11 + $0x928] sm:$0xff]
  %v4363 = vld [vmem:[%s11 + $0x930] sm:$0xff]
  %v4364 = vld [vmem:[%s11 + $0x938] sm:$0xff]
  %v4365 = vld [vmem:[%s11 + $0x940] sm:$0xff]
  %v4366 = vld [vmem:[%s11 + $0x948] sm:$0xff]
  %v4367 = vld [vmem:[%s11 + $0x950] sm:$0xff]
  %v4368 = vld [vmem:[%s11 + $0x958] sm:$0xff]
  %v4369 = vld [vmem:[%s11 + $0x960] sm:$0xff]
  %v4370 = vld [vmem:[%s11 + $0x968] sm:$0xff]
  %v4371 = vld [vmem:[%s11 + $0x970] sm:$0xff]
  %v4372 = vld [vmem:[%s11 + $0x978] sm:$0xff]
  %v4373 = vld [vmem:[%s11 + $0x980] sm:$0xff]
  %v4374 = vld [vmem:[%s11 + $0x988] sm:$0xff]
  %v4375 = vld [vmem:[%s11 + $0x990] sm:$0xff]
  %v4376 = vld [vmem:[%s11 + $0x998] sm:$0xff]
  %v4377 = vld [vmem:[%s11 + $0x9a0] sm:$0xff]
  %v4378 = vld [vmem:[%s11 + $0x9a8] sm:$0xff]
  %v4379 = vld [vmem:[%s11 + $0x9b0] sm:$0xff]
  %v4380 = vld [vmem:[%s11 + $0x9b8] sm:$0xff]
  %v4381 = vld [vmem:[%s11 + $0x9c0] sm:$0xff]
  %v4382 = vld [vmem:[%s11 + $0x9c8] sm:$0xff]
  %v4383 = vld [vmem:[%s11 + $0x9d0] sm:$0xff]
  %v4384 = vld [vmem:[%s11 + $0x9d8] sm:$0xff]
  %v4385 = vld [vmem:[%s11 + $0x9e0] sm:$0xff]
  %v4386 = vld [vmem:[%s11 + $0x9e8] sm:$0xff]
  %v4387 = vld [vmem:[%s11 + $0x9f0] sm:$0xff]
  %v4388 = vld [vmem:[%s11 + $0x9f8] sm:$0xff]
  %v4389 = vld [vmem:[%s11 + $0xa00] sm:$0xff]
  %v4390 = vld [vmem:[%s11 + $0xa08] sm:$0xff]
  %v4391 = vld [vmem:[%s11 + $0xa10] sm:$0xff]
  %v4392 = vld [vmem:[%s11 + $0xa18] sm:$0xff]
  %v4393 = vld [vmem:[%s11 + $0xa20] sm:$0xff]
  %v4394 = vld [vmem:[%s11 + $0xa28] sm:$0xff]
  %v4395 = vld [vmem:[%s11 + $0xa30] sm:$0xff]
  %v4396 = vld [vmem:[%s11 + $0xa38] sm:$0xff]
  %v4397 = vld [vmem:[%s11 + $0xa40] sm:$0xff]
  %v4398 = vld [vmem:[%s11 + $0xa48] sm:$0xff]
  %v4399 = vld [vmem:[%s11 + $0xa50] sm:$0xff]
  %v4400 = vld [vmem:[%s11 + $0xa58] sm:$0xff]
  %v4401 = vld [vmem:[%s11 + $0xa60] sm:$0xff]
  %v4402 = vld [vmem:[%s11 + $0xa68] sm:$0xff]
  %v4403 = vld [vmem:[%s11 + $0xa70] sm:$0xff]
  %v4404 = vld [vmem:[%s11 + $0xa78] sm:$0xff]
  %v4405 = vld [vmem:[%s11 + $0xa80] sm:$0xff]
  %v4406 = vld [vmem:[%s11 + $0xa88] sm:$0xff]
  %v4407 = vld [vmem:[%s11 + $0xa90] sm:$0xff]
  %v4408 = vld [vmem:[%s11 + $0xa98] sm:$0xff]
  %v4409 = vld [vmem:[%s11 + $0xaa0] sm:$0xff]
  %v4410 = vld [vmem:[%s11 + $0xaa8] sm:$0xff]
  %v4411 = vld [vmem:[%s11 + $0xab0] sm:$0xff]
  %v4412 = vld [vmem:[%s11 + $0xab8] sm:$0xff]
  %v4413 = vld [vmem:[%s11 + $0xac0] sm:$0xff]
  %v4414 = vld [vmem:[%s11 + $0xac8] sm:$0xff]
  %v4415 = vld [vmem:[%s11 + $0xad0] sm:$0xff]
  %v4416 = vld [vmem:[%s11 + $0xad8] sm:$0xff]
  %v4417 = vld [vmem:[%s11 + $0xae0] sm:$0xff]
  %v4418 = vld [vmem:[%s11 + $0xae8] sm:$0xff]
  %v4419 = vld [vmem:[%s11 + $0xaf0] sm:$0xff]
  %v4420 = vld [vmem:[%s11 + $0xaf8] sm:$0xff]
  %v4421 = vld [vmem:[%s11 + $0xb00] sm:$0xff]
  %v4422 = vld [vmem:[%s11 + $0xb08] sm:$0xff]
  %v4423 = vld [vmem:[%s11 + $0xb10] sm:$0xff]
  %v4424 = vld [vmem:[%s11 + $0xb18] sm:$0xff]
  %v4425 = vld [vmem:[%s11 + $0xb20] sm:$0xff]
  %v4426 = vld [vmem:[%s11 + $0xb28] sm:$0xff]
  %v4427 = vld [vmem:[%s11 + $0xb30] sm:$0xff]
  %v4428 = vld [vmem:[%s11 + $0xb38] sm:$0xff]
  %v4429 = vld [vmem:[%s11 + $0xb40] sm:$0xff]
  %v4430 = vld [vmem:[%s11 + $0xb48] sm:$0xff]
  %v4431 = vld [vmem:[%s11 + $0xb50] sm:$0xff]
  %v4432 = vld [vmem:[%s11 + $0xb58] sm:$0xff]
  %v4433 = vld [vmem:[%s11 + $0xb60] sm:$0xff]
  %v4434 = vld [vmem:[%s11 + $0xb68] sm:$0xff]
  %v4435 = vld [vmem:[%s11 + $0xb70] sm:$0xff]
  %v4436 = vld [vmem:[%s11 + $0xb78] sm:$0xff]
  %v4437 = vld [vmem:[%s11 + $0xb80] sm:$0xff]
  %v4438 = vld [vmem:[%s11 + $0xb88] sm:$0xff]
  %v4439 = vld [vmem:[%s11 + $0xb90] sm:$0xff]
  %v4440 = vld [vmem:[%s11 + $0xb98] sm:$0xff]
  %v4441 = vld [vmem:[%s11 + $0xba0] sm:$0xff]
  %v4442 = vld [vmem:[%s11 + $0xba8] sm:$0xff]
  %v4443 = vld [vmem:[%s11 + $0xbb0] sm:$0xff]
  %v4444 = vld [vmem:[%s11 + $0xbb8] sm:$0xff]
  %v4445 = vld [vmem:[%s11 + $0xbc0] sm:$0xff]
  %v4446 = vld [vmem:[%s11 + $0xbc8] sm:$0xff]
  %v4447 = vld [vmem:[%s11 + $0xbd0] sm:$0xff]
  %v4448 = vld [vmem:[%s11 + $0xbd8] sm:$0xff]
  %v4449 = vld [vmem:[%s11 + $0xbe0] sm:$0xff]
  %v4450 = vld [vmem:[%s11 + $0xbe8] sm:$0xff]
  %v4451 = vld [vmem:[%s11 + $0xbf0] sm:$0xff]
  %v4452 = vld [vmem:[%s11 + $0xbf8] sm:$0xff]
  %4453 = vmatprep.subr.mxu0 0.0
  %4454 = vmatpush1.msra.mxu0 %v4084
  %4455 = vmatprep.subr.mxu0 0.0
  %4456 = vmatpush1.msra.mxu0 %v4083
  %4457 = vmatprep.subr.mxu0 0.0
  %4458 = vmatpush1.msra.mxu0 %v4082
  %4459 = vmatprep.subr.mxu0 0.0
  %4460 = vmatpush1.msra.mxu0 %v4081
  %4461 = vmatprep.subr.mxu0 0.0
  %4462 = vmatpush1.msra.mxu0 %v4080
  %4463 = vmatprep.subr.mxu0 0.0
  %4464 = vmatpush1.msra.mxu0 %v4079
  %4465 = vmatprep.subr.mxu0 0.0
  %4466 = vmatpush1.msra.mxu0 %v4078
  %4467 = vmatprep.subr.mxu0 0.0
  %4468 = vmatpush1.msra.mxu0 %v4077
  %4469 = vmatprep.subr.mxu0 0.0
  %4470 = vmatpush1.msra.mxu0 %v4076
  %4471 = vmatprep.subr.mxu0 0.0
  %4472 = vmatpush1.msra.mxu0 %v4075
  %4473 = vmatprep.subr.mxu0 0.0
  %4474 = vmatpush1.msra.mxu0 %v4074
  %4475 = vmatprep.subr.mxu0 0.0
  %4476 = vmatpush1.msra.mxu0 %v4073
  %4477 = vmatprep.subr.mxu0 0.0
  %4478 = vmatpush1.msra.mxu0 %v4072
  %4479 = vmatprep.subr.mxu0 0.0
  %4480 = vmatpush1.msra.mxu0 %v4071
  %4481 = vmatprep.subr.mxu0 0.0
  %4482 = vmatpush1.msra.mxu0 %v4070
  %4483 = vmatprep.subr.mxu0 0.0
  %4484 = vmatpush1.msra.mxu0 %v4069
  %4485 = vmatprep.subr.mxu0 0.0
  %4486 = vmatpush2.msra.mxu0 %v4100
  %4487 = vmatprep.subr.mxu0 0.0
  %4488 = vmatpush2.msra.mxu0 %v4099
  %4489 = vmatprep.subr.mxu0 0.0
  %4490 = vmatpush2.msra.mxu0 %v4098
  %4491 = vmatprep.subr.mxu0 0.0
  %4492 = vmatpush2.msra.mxu0 %v4097
  %4493 = vmatprep.subr.mxu0 0.0
  %4494 = vmatpush2.msra.mxu0 %v4096
  %4495 = vmatprep.subr.mxu0 0.0
  %4496 = vmatpush2.msra.mxu0 %v4095
  %4497 = vmatprep.subr.mxu0 0.0
  %4498 = vmatpush2.msra.mxu0 %v4094
  %4499 = vmatprep.subr.mxu0 0.0
  %4500 = vmatpush2.msra.mxu0 %v4093
  %4501 = vmatprep.subr.mxu0 0.0
  %4502 = vmatpush2.msra.mxu0 %v4092
  %4503 = vmatprep.subr.mxu0 0.0
  %4504 = vmatpush2.msra.mxu0 %v4091
  %4505 = vmatprep.subr.mxu0 0.0
  %4506 = vmatpush2.msra.mxu0 %v4090
  %4507 = vmatprep.subr.mxu0 0.0
  %4508 = vmatpush2.msra.mxu0 %v4089
  %4509 = vmatprep.subr.mxu0 0.0
  %4510 = vmatpush2.msra.mxu0 %v4088
  %4511 = vmatprep.subr.mxu0 0.0
  %4512 = vmatpush2.msra.mxu0 %v4087
  %4513 = vmatprep.subr.mxu0 0.0
  %4514 = vmatpush2.msra.mxu0 %v4086
  %4515 = vmatprep.subr.mxu0 0.0
  %4516 = vmatpush2.msra.mxu0 %v4085
  %4517 = vmatprep.mubr.f32.mxu0 %v4022
  %4518 = vmatmul.mubr.f32.gmra.mxu0 %v4021
  %v4519 = vpop.f32.mrf.mxu0
  %v4520 = vadd.f32 0.0, %v4519
  %v4521 = vpop.f32.mrf.mxu0
  %4522 = vmatprep.mubr.f32.mxu0 %v4046
  %4523 = vmatmul.mubr.f32.gmra.mxu0 %v4045
  %v4524 = vpop.f32.mrf.mxu0
  %v4525 = vadd.f32 0.0, %v4524
  %v4526 = vpop.f32.mrf.mxu0
  %4527 = vdwg.mxu0
  %4528 = vmatprep.subr.mxu0 0.0
  %4529 = vmatpush1.msra.mxu0 %v4116
  %4530 = vmatprep.subr.mxu0 0.0
  %4531 = vmatpush1.msra.mxu0 %v4115
  %4532 = vmatprep.subr.mxu0 0.0
  %4533 = vmatpush1.msra.mxu0 %v4114
  %4534 = vmatprep.subr.mxu0 0.0
  %4535 = vmatpush1.msra.mxu0 %v4113
  %4536 = vmatprep.subr.mxu0 0.0
  %4537 = vmatpush1.msra.mxu0 %v4112
  %4538 = vmatprep.subr.mxu0 0.0
  %4539 = vmatpush1.msra.mxu0 %v4111
  %4540 = vmatprep.subr.mxu0 0.0
  %4541 = vmatpush1.msra.mxu0 %v4110
  %4542 = vmatprep.subr.mxu0 0.0
  %4543 = vmatpush1.msra.mxu0 %v4109
  %4544 = vmatprep.subr.mxu0 0.0
  %4545 = vmatpush1.msra.mxu0 %v4108
  %4546 = vmatprep.subr.mxu0 0.0
  %4547 = vmatpush1.msra.mxu0 %v4107
  %4548 = vmatprep.subr.mxu0 0.0
  %4549 = vmatpush1.msra.mxu0 %v4106
  %4550 = vmatprep.subr.mxu0 0.0
  %4551 = vmatpush1.msra.mxu0 %v4105
  %4552 = vmatprep.subr.mxu0 0.0
  %4553 = vmatpush1.msra.mxu0 %v4104
  %4554 = vmatprep.subr.mxu0 0.0
  %4555 = vmatpush1.msra.mxu0 %v4103
  %4556 = vmatprep.subr.mxu0 0.0
  %4557 = vmatpush1.msra.mxu0 %v4102
  %4558 = vmatprep.subr.mxu0 0.0
  %4559 = vmatpush1.msra.mxu0 %v4101
  %4560 = vmatprep.subr.mxu0 0.0
  %4561 = vmatpush2.msra.mxu0 %v4132
  %4562 = vmatprep.subr.mxu0 0.0
  %4563 = vmatpush2.msra.mxu0 %v4131
  %4564 = vmatprep.subr.mxu0 0.0
  %4565 = vmatpush2.msra.mxu0 %v4130
  %4566 = vmatprep.subr.mxu0 0.0
  %4567 = vmatpush2.msra.mxu0 %v4129
  %4568 = vmatprep.subr.mxu0 0.0
  %4569 = vmatpush2.msra.mxu0 %v4128
  %4570 = vmatprep.subr.mxu0 0.0
  %4571 = vmatpush2.msra.mxu0 %v4127
  %4572 = vmatprep.subr.mxu0 0.0
  %4573 = vmatpush2.msra.mxu0 %v4126
  %4574 = vmatprep.subr.mxu0 0.0
  %4575 = vmatpush2.msra.mxu0 %v4125
  %4576 = vmatprep.subr.mxu0 0.0
  %4577 = vmatpush2.msra.mxu0 %v4124
  %4578 = vmatprep.subr.mxu0 0.0
  %4579 = vmatpush2.msra.mxu0 %v4123
  %4580 = vmatprep.subr.mxu0 0.0
  %4581 = vmatpush2.msra.mxu0 %v4122
  %4582 = vmatprep.subr.mxu0 0.0
  %4583 = vmatpush2.msra.mxu0 %v4121
  %4584 = vmatprep.subr.mxu0 0.0
  %4585 = vmatpush2.msra.mxu0 %v4120
  %4586 = vmatprep.subr.mxu0 0.0
  %4587 = vmatpush2.msra.mxu0 %v4119
  %4588 = vmatprep.subr.mxu0 0.0
  %4589 = vmatpush2.msra.mxu0 %v4118
  %4590 = vmatprep.subr.mxu0 0.0
  %4591 = vmatpush2.msra.mxu0 %v4117
  %4592 = vmatprep.mubr.f32.mxu0 %v4024
  %4593 = vmatmul.mubr.f32.gmra.mxu0 %v4023
  %v4594 = vpop.f32.mrf.mxu0
  %v4595 = vadd.f32 %v4520, %v4594
  %v4596 = vpop.f32.mrf.mxu0
  %4597 = vmatprep.mubr.f32.mxu0 %v4048
  %4598 = vmatmul.mubr.f32.gmra.mxu0 %v4047
  %v4599 = vpop.f32.mrf.mxu0
  %v4600 = vadd.f32 %v4525, %v4599
  %v4601 = vpop.f32.mrf.mxu0
  %4602 = vdwg.mxu0
  %4603 = vmatprep.subr.mxu0 0.0
  %4604 = vmatpush1.msra.mxu0 %v4148
  %4605 = vmatprep.subr.mxu0 0.0
  %4606 = vmatpush1.msra.mxu0 %v4147
  %4607 = vmatprep.subr.mxu0 0.0
  %4608 = vmatpush1.msra.mxu0 %v4146
  %4609 = vmatprep.subr.mxu0 0.0
  %4610 = vmatpush1.msra.mxu0 %v4145
  %4611 = vmatprep.subr.mxu0 0.0
  %4612 = vmatpush1.msra.mxu0 %v4144
  %4613 = vmatprep.subr.mxu0 0.0
  %4614 = vmatpush1.msra.mxu0 %v4143
  %4615 = vmatprep.subr.mxu0 0.0
  %4616 = vmatpush1.msra.mxu0 %v4142
  %4617 = vmatprep.subr.mxu0 0.0
  %4618 = vmatpush1.msra.mxu0 %v4141
  %4619 = vmatprep.subr.mxu0 0.0
  %4620 = vmatpush1.msra.mxu0 %v4140
  %4621 = vmatprep.subr.mxu0 0.0
  %4622 = vmatpush1.msra.mxu0 %v4139
  %4623 = vmatprep.subr.mxu0 0.0
  %4624 = vmatpush1.msra.mxu0 %v4138
  %4625 = vmatprep.subr.mxu0 0.0
  %4626 = vmatpush1.msra.mxu0 %v4137
  %4627 = vmatprep.subr.mxu0 0.0
  %4628 = vmatpush1.msra.mxu0 %v4136
  %4629 = vmatprep.subr.mxu0 0.0
  %4630 = vmatpush1.msra.mxu0 %v4135
  %4631 = vmatprep.subr.mxu0 0.0
  %4632 = vmatpush1.msra.mxu0 %v4134
  %4633 = vmatprep.subr.mxu0 0.0
  %4634 = vmatpush1.msra.mxu0 %v4133
  %4635 = vmatprep.subr.mxu0 0.0
  %4636 = vmatpush2.msra.mxu0 %v4164
  %4637 = vmatprep.subr.mxu0 0.0
  %4638 = vmatpush2.msra.mxu0 %v4163
  %4639 = vmatprep.subr.mxu0 0.0
  %4640 = vmatpush2.msra.mxu0 %v4162
  %4641 = vmatprep.subr.mxu0 0.0
  %4642 = vmatpush2.msra.mxu0 %v4161
  %4643 = vmatprep.subr.mxu0 0.0
  %4644 = vmatpush2.msra.mxu0 %v4160
  %4645 = vmatprep.subr.mxu0 0.0
  %4646 = vmatpush2.msra.mxu0 %v4159
  %4647 = vmatprep.subr.mxu0 0.0
  %4648 = vmatpush2.msra.mxu0 %v4158
  %4649 = vmatprep.subr.mxu0 0.0
  %4650 = vmatpush2.msra.mxu0 %v4157
  %4651 = vmatprep.subr.mxu0 0.0
  %4652 = vmatpush2.msra.mxu0 %v4156
  %4653 = vmatprep.subr.mxu0 0.0
  %4654 = vmatpush2.msra.mxu0 %v4155
  %4655 = vmatprep.subr.mxu0 0.0
  %4656 = vmatpush2.msra.mxu0 %v4154
  %4657 = vmatprep.subr.mxu0 0.0
  %4658 = vmatpush2.msra.mxu0 %v4153
  %4659 = vmatprep.subr.mxu0 0.0
  %4660 = vmatpush2.msra.mxu0 %v4152
  %4661 = vmatprep.subr.mxu0 0.0
  %4662 = vmatpush2.msra.mxu0 %v4151
  %4663 = vmatprep.subr.mxu0 0.0
  %4664 = vmatpush2.msra.mxu0 %v4150
  %4665 = vmatprep.subr.mxu0 0.0
  %4666 = vmatpush2.msra.mxu0 %v4149
  %4667 = vmatprep.mubr.f32.mxu0 %v4026
  %4668 = vmatmul.mubr.f32.gmra.mxu0 %v4025
  %v4669 = vpop.f32.mrf.mxu0
  %v4670 = vadd.f32 %v4595, %v4669
  %v4671 = vpop.f32.mrf.mxu0
  %4672 = vmatprep.mubr.f32.mxu0 %v4050
  %4673 = vmatmul.mubr.f32.gmra.mxu0 %v4049
  %v4674 = vpop.f32.mrf.mxu0
  %v4675 = vadd.f32 %v4600, %v4674
  %v4676 = vpop.f32.mrf.mxu0
  %4677 = vdwg.mxu0
  %4678 = vmatprep.subr.mxu0 0.0
  %4679 = vmatpush1.msra.mxu0 %v4180
  %4680 = vmatprep.subr.mxu0 0.0
  %4681 = vmatpush1.msra.mxu0 %v4179
  %4682 = vmatprep.subr.mxu0 0.0
  %4683 = vmatpush1.msra.mxu0 %v4178
  %4684 = vmatprep.subr.mxu0 0.0
  %4685 = vmatpush1.msra.mxu0 %v4177
  %4686 = vmatprep.subr.mxu0 0.0
  %4687 = vmatpush1.msra.mxu0 %v4176
  %4688 = vmatprep.subr.mxu0 0.0
  %4689 = vmatpush1.msra.mxu0 %v4175
  %4690 = vmatprep.subr.mxu0 0.0
  %4691 = vmatpush1.msra.mxu0 %v4174
  %4692 = vmatprep.subr.mxu0 0.0
  %4693 = vmatpush1.msra.mxu0 %v4173
  %4694 = vmatprep.subr.mxu0 0.0
  %4695 = vmatpush1.msra.mxu0 %v4172
  %4696 = vmatprep.subr.mxu0 0.0
  %4697 = vmatpush1.msra.mxu0 %v4171
  %4698 = vmatprep.subr.mxu0 0.0
  %4699 = vmatpush1.msra.mxu0 %v4170
  %4700 = vmatprep.subr.mxu0 0.0
  %4701 = vmatpush1.msra.mxu0 %v4169
  %4702 = vmatprep.subr.mxu0 0.0
  %4703 = vmatpush1.msra.mxu0 %v4168
  %4704 = vmatprep.subr.mxu0 0.0
  %4705 = vmatpush1.msra.mxu0 %v4167
  %4706 = vmatprep.subr.mxu0 0.0
  %4707 = vmatpush1.msra.mxu0 %v4166
  %4708 = vmatprep.subr.mxu0 0.0
  %4709 = vmatpush1.msra.mxu0 %v4165
  %4710 = vmatprep.subr.mxu0 0.0
  %4711 = vmatpush2.msra.mxu0 %v4196
  %4712 = vmatprep.subr.mxu0 0.0
  %4713 = vmatpush2.msra.mxu0 %v4195
  %4714 = vmatprep.subr.mxu0 0.0
  %4715 = vmatpush2.msra.mxu0 %v4194
  %4716 = vmatprep.subr.mxu0 0.0
  %4717 = vmatpush2.msra.mxu0 %v4193
  %4718 = vmatprep.subr.mxu0 0.0
  %4719 = vmatpush2.msra.mxu0 %v4192
  %4720 = vmatprep.subr.mxu0 0.0
  %4721 = vmatpush2.msra.mxu0 %v4191
  %4722 = vmatprep.subr.mxu0 0.0
  %4723 = vmatpush2.msra.mxu0 %v4190
  %4724 = vmatprep.subr.mxu0 0.0
  %4725 = vmatpush2.msra.mxu0 %v4189
  %4726 = vmatprep.subr.mxu0 0.0
  %4727 = vmatpush2.msra.mxu0 %v4188
  %4728 = vmatprep.subr.mxu0 0.0
  %4729 = vmatpush2.msra.mxu0 %v4187
  %4730 = vmatprep.subr.mxu0 0.0
  %4731 = vmatpush2.msra.mxu0 %v4186
  %4732 = vmatprep.subr.mxu0 0.0
  %4733 = vmatpush2.msra.mxu0 %v4185
  %4734 = vmatprep.subr.mxu0 0.0
  %4735 = vmatpush2.msra.mxu0 %v4184
  %4736 = vmatprep.subr.mxu0 0.0
  %4737 = vmatpush2.msra.mxu0 %v4183
  %4738 = vmatprep.subr.mxu0 0.0
  %4739 = vmatpush2.msra.mxu0 %v4182
  %4740 = vmatprep.subr.mxu0 0.0
  %4741 = vmatpush2.msra.mxu0 %v4181
  %4742 = vmatprep.mubr.f32.mxu0 %v4028
  %4743 = vmatmul.mubr.f32.gmra.mxu0 %v4027
  %v4744 = vpop.f32.mrf.mxu0
  %v4745 = vadd.f32 %v4670, %v4744
  %v4746 = vpop.f32.mrf.mxu0
  %4747 = vmatprep.mubr.f32.mxu0 %v4052
  %4748 = vmatmul.mubr.f32.gmra.mxu0 %v4051
  %v4749 = vpop.f32.mrf.mxu0
  %v4750 = vadd.f32 %v4675, %v4749
  %v4751 = vpop.f32.mrf.mxu0
  %4752 = vdwg.mxu0
  %4753 = vmatprep.subr.mxu0 0.0
  %4754 = vmatpush1.msra.mxu0 %v4212
  %4755 = vmatprep.subr.mxu0 0.0
  %4756 = vmatpush1.msra.mxu0 %v4211
  %4757 = vmatprep.subr.mxu0 0.0
  %4758 = vmatpush1.msra.mxu0 %v4210
  %4759 = vmatprep.subr.mxu0 0.0
  %4760 = vmatpush1.msra.mxu0 %v4209
  %4761 = vmatprep.subr.mxu0 0.0
  %4762 = vmatpush1.msra.mxu0 %v4208
  %4763 = vmatprep.subr.mxu0 0.0
  %4764 = vmatpush1.msra.mxu0 %v4207
  %4765 = vmatprep.subr.mxu0 0.0
  %4766 = vmatpush1.msra.mxu0 %v4206
  %4767 = vmatprep.subr.mxu0 0.0
  %4768 = vmatpush1.msra.mxu0 %v4205
  %4769 = vmatprep.subr.mxu0 0.0
  %4770 = vmatpush1.msra.mxu0 %v4204
  %4771 = vmatprep.subr.mxu0 0.0
  %4772 = vmatpush1.msra.mxu0 %v4203
  %4773 = vmatprep.subr.mxu0 0.0
  %4774 = vmatpush1.msra.mxu0 %v4202
  %4775 = vmatprep.subr.mxu0 0.0
  %4776 = vmatpush1.msra.mxu0 %v4201
  %4777 = vmatprep.subr.mxu0 0.0
  %4778 = vmatpush1.msra.mxu0 %v4200
  %4779 = vmatprep.subr.mxu0 0.0
  %4780 = vmatpush1.msra.mxu0 %v4199
  %4781 = vmatprep.subr.mxu0 0.0
  %4782 = vmatpush1.msra.mxu0 %v4198
  %4783 = vmatprep.subr.mxu0 0.0
  %4784 = vmatpush1.msra.mxu0 %v4197
  %4785 = vmatprep.subr.mxu0 0.0
  %4786 = vmatpush2.msra.mxu0 %v4228
  %4787 = vmatprep.subr.mxu0 0.0
  %4788 = vmatpush2.msra.mxu0 %v4227
  %4789 = vmatprep.subr.mxu0 0.0
  %4790 = vmatpush2.msra.mxu0 %v4226
  %4791 = vmatprep.subr.mxu0 0.0
  %4792 = vmatpush2.msra.mxu0 %v4225
  %4793 = vmatprep.subr.mxu0 0.0
  %4794 = vmatpush2.msra.mxu0 %v4224
  %4795 = vmatprep.subr.mxu0 0.0
  %4796 = vmatpush2.msra.mxu0 %v4223
  %4797 = vmatprep.subr.mxu0 0.0
  %4798 = vmatpush2.msra.mxu0 %v4222
  %4799 = vmatprep.subr.mxu0 0.0
  %4800 = vmatpush2.msra.mxu0 %v4221
  %4801 = vmatprep.subr.mxu0 0.0
  %4802 = vmatpush2.msra.mxu0 %v4220
  %4803 = vmatprep.subr.mxu0 0.0
  %4804 = vmatpush2.msra.mxu0 %v4219
  %4805 = vmatprep.subr.mxu0 0.0
  %4806 = vmatpush2.msra.mxu0 %v4218
  %4807 = vmatprep.subr.mxu0 0.0
  %4808 = vmatpush2.msra.mxu0 %v4217
  %4809 = vmatprep.subr.mxu0 0.0
  %4810 = vmatpush2.msra.mxu0 %v4216
  %4811 = vmatprep.subr.mxu0 0.0
  %4812 = vmatpush2.msra.mxu0 %v4215
  %4813 = vmatprep.subr.mxu0 0.0
  %4814 = vmatpush2.msra.mxu0 %v4214
  %4815 = vmatprep.subr.mxu0 0.0
  %4816 = vmatpush2.msra.mxu0 %v4213
  %4817 = vmatprep.mubr.f32.mxu0 %v4030
  %4818 = vmatmul.mubr.f32.gmra.mxu0 %v4029
  %v4819 = vpop.f32.mrf.mxu0
  %v4820 = vadd.f32 %v4745, %v4819
  %v4821 = vpop.f32.mrf.mxu0
  %4822 = vmatprep.mubr.f32.mxu0 %v4054
  %4823 = vmatmul.mubr.f32.gmra.mxu0 %v4053
  %v4824 = vpop.f32.mrf.mxu0
  %v4825 = vadd.f32 %v4750, %v4824
  %v4826 = vpop.f32.mrf.mxu0
  %4827 = vdwg.mxu0
  %4828 = vmatprep.subr.mxu0 0.0
  %4829 = vmatpush1.msra.mxu0 %v4244
  %4830 = vmatprep.subr.mxu0 0.0
  %4831 = vmatpush1.msra.mxu0 %v4243
  %4832 = vmatprep.subr.mxu0 0.0
  %4833 = vmatpush1.msra.mxu0 %v4242
  %4834 = vmatprep.subr.mxu0 0.0
  %4835 = vmatpush1.msra.mxu0 %v4241
  %4836 = vmatprep.subr.mxu0 0.0
  %4837 = vmatpush1.msra.mxu0 %v4240
  %4838 = vmatprep.subr.mxu0 0.0
  %4839 = vmatpush1.msra.mxu0 %v4239
  %4840 = vmatprep.subr.mxu0 0.0
  %4841 = vmatpush1.msra.mxu0 %v4238
  %4842 = vmatprep.subr.mxu0 0.0
  %4843 = vmatpush1.msra.mxu0 %v4237
  %4844 = vmatprep.subr.mxu0 0.0
  %4845 = vmatpush1.msra.mxu0 %v4236
  %4846 = vmatprep.subr.mxu0 0.0
  %4847 = vmatpush1.msra.mxu0 %v4235
  %4848 = vmatprep.subr.mxu0 0.0
  %4849 = vmatpush1.msra.mxu0 %v4234
  %4850 = vmatprep.subr.mxu0 0.0
  %4851 = vmatpush1.msra.mxu0 %v4233
  %4852 = vmatprep.subr.mxu0 0.0
  %4853 = vmatpush1.msra.mxu0 %v4232
  %4854 = vmatprep.subr.mxu0 0.0
  %4855 = vmatpush1.msra.mxu0 %v4231
  %4856 = vmatprep.subr.mxu0 0.0
  %4857 = vmatpush1.msra.mxu0 %v4230
  %4858 = vmatprep.subr.mxu0 0.0
  %4859 = vmatpush1.msra.mxu0 %v4229
  %4860 = vmatprep.subr.mxu0 0.0
  %4861 = vmatpush2.msra.mxu0 %v4260
  %4862 = vmatprep.subr.mxu0 0.0
  %4863 = vmatpush2.msra.mxu0 %v4259
  %4864 = vmatprep.subr.mxu0 0.0
  %4865 = vmatpush2.msra.mxu0 %v4258
  %4866 = vmatprep.subr.mxu0 0.0
  %4867 = vmatpush2.msra.mxu0 %v4257
  %4868 = vmatprep.subr.mxu0 0.0
  %4869 = vmatpush2.msra.mxu0 %v4256
  %4870 = vmatprep.subr.mxu0 0.0
  %4871 = vmatpush2.msra.mxu0 %v4255
  %4872 = vmatprep.subr.mxu0 0.0
  %4873 = vmatpush2.msra.mxu0 %v4254
  %4874 = vmatprep.subr.mxu0 0.0
  %4875 = vmatpush2.msra.mxu0 %v4253
  %4876 = vmatprep.subr.mxu0 0.0
  %4877 = vmatpush2.msra.mxu0 %v4252
  %4878 = vmatprep.subr.mxu0 0.0
  %4879 = vmatpush2.msra.mxu0 %v4251
  %4880 = vmatprep.subr.mxu0 0.0
  %4881 = vmatpush2.msra.mxu0 %v4250
  %4882 = vmatprep.subr.mxu0 0.0
  %4883 = vmatpush2.msra.mxu0 %v4249
  %4884 = vmatprep.subr.mxu0 0.0
  %4885 = vmatpush2.msra.mxu0 %v4248
  %4886 = vmatprep.subr.mxu0 0.0
  %4887 = vmatpush2.msra.mxu0 %v4247
  %4888 = vmatprep.subr.mxu0 0.0
  %4889 = vmatpush2.msra.mxu0 %v4246
  %4890 = vmatprep.subr.mxu0 0.0
  %4891 = vmatpush2.msra.mxu0 %v4245
  %4892 = vmatprep.mubr.f32.mxu0 %v4032
  %4893 = vmatmul.mubr.f32.gmra.mxu0 %v4031
  %v4894 = vpop.f32.mrf.mxu0
  %v4895 = vadd.f32 %v4820, %v4894
  %v4896 = vpop.f32.mrf.mxu0
  %4897 = vmatprep.mubr.f32.mxu0 %v4056
  %4898 = vmatmul.mubr.f32.gmra.mxu0 %v4055
  %v4899 = vpop.f32.mrf.mxu0
  %v4900 = vadd.f32 %v4825, %v4899
  %v4901 = vpop.f32.mrf.mxu0
  %4902 = vdwg.mxu0
  %4903 = vmatprep.subr.mxu0 0.0
  %4904 = vmatpush1.msra.mxu0 %v4276
  %4905 = vmatprep.subr.mxu0 0.0
  %4906 = vmatpush1.msra.mxu0 %v4275
  %4907 = vmatprep.subr.mxu0 0.0
  %4908 = vmatpush1.msra.mxu0 %v4274
  %4909 = vmatprep.subr.mxu0 0.0
  %4910 = vmatpush1.msra.mxu0 %v4273
  %4911 = vmatprep.subr.mxu0 0.0
  %4912 = vmatpush1.msra.mxu0 %v4272
  %4913 = vmatprep.subr.mxu0 0.0
  %4914 = vmatpush1.msra.mxu0 %v4271
  %4915 = vmatprep.subr.mxu0 0.0
  %4916 = vmatpush1.msra.mxu0 %v4270
  %4917 = vmatprep.subr.mxu0 0.0
  %4918 = vmatpush1.msra.mxu0 %v4269
  %4919 = vmatprep.subr.mxu0 0.0
  %4920 = vmatpush1.msra.mxu0 %v4268
  %4921 = vmatprep.subr.mxu0 0.0
  %4922 = vmatpush1.msra.mxu0 %v4267
  %4923 = vmatprep.subr.mxu0 0.0
  %4924 = vmatpush1.msra.mxu0 %v4266
  %4925 = vmatprep.subr.mxu0 0.0
  %4926 = vmatpush1.msra.mxu0 %v4265
  %4927 = vmatprep.subr.mxu0 0.0
  %4928 = vmatpush1.msra.mxu0 %v4264
  %4929 = vmatprep.subr.mxu0 0.0
  %4930 = vmatpush1.msra.mxu0 %v4263
  %4931 = vmatprep.subr.mxu0 0.0
  %4932 = vmatpush1.msra.mxu0 %v4262
  %4933 = vmatprep.subr.mxu0 0.0
  %4934 = vmatpush1.msra.mxu0 %v4261
  %4935 = vmatprep.subr.mxu0 0.0
  %4936 = vmatpush2.msra.mxu0 %v4292
  %4937 = vmatprep.subr.mxu0 0.0
  %4938 = vmatpush2.msra.mxu0 %v4291
  %4939 = vmatprep.subr.mxu0 0.0
  %4940 = vmatpush2.msra.mxu0 %v4290
  %4941 = vmatprep.subr.mxu0 0.0
  %4942 = vmatpush2.msra.mxu0 %v4289
  %4943 = vmatprep.subr.mxu0 0.0
  %4944 = vmatpush2.msra.mxu0 %v4288
  %4945 = vmatprep.subr.mxu0 0.0
  %4946 = vmatpush2.msra.mxu0 %v4287
  %4947 = vmatprep.subr.mxu0 0.0
  %4948 = vmatpush2.msra.mxu0 %v4286
  %4949 = vmatprep.subr.mxu0 0.0
  %4950 = vmatpush2.msra.mxu0 %v4285
  %4951 = vmatprep.subr.mxu0 0.0
  %4952 = vmatpush2.msra.mxu0 %v4284
  %4953 = vmatprep.subr.mxu0 0.0
  %4954 = vmatpush2.msra.mxu0 %v4283
  %4955 = vmatprep.subr.mxu0 0.0
  %4956 = vmatpush2.msra.mxu0 %v4282
  %4957 = vmatprep.subr.mxu0 0.0
  %4958 = vmatpush2.msra.mxu0 %v4281
  %4959 = vmatprep.subr.mxu0 0.0
  %4960 = vmatpush2.msra.mxu0 %v4280
  %4961 = vmatprep.subr.mxu0 0.0
  %4962 = vmatpush2.msra.mxu0 %v4279
  %4963 = vmatprep.subr.mxu0 0.0
  %4964 = vmatpush2.msra.mxu0 %v4278
  %4965 = vmatprep.subr.mxu0 0.0
  %4966 = vmatpush2.msra.mxu0 %v4277
  %4967 = vmatprep.mubr.f32.mxu0 %v4034
  %4968 = vmatmul.mubr.f32.gmra.mxu0 %v4033
  %v4969 = vpop.f32.mrf.mxu0
  %v4970 = vadd.f32 %v4895, %v4969
  %v4971 = vpop.f32.mrf.mxu0
  %4972 = vmatprep.mubr.f32.mxu0 %v4058
  %4973 = vmatmul.mubr.f32.gmra.mxu0 %v4057
  %v4974 = vpop.f32.mrf.mxu0
  %v4975 = vadd.f32 %v4900, %v4974
  %v4976 = vpop.f32.mrf.mxu0
  %4977 = vdwg.mxu0
  %4978 = vmatprep.subr.mxu0 0.0
  %4979 = vmatpush1.msra.mxu0 %v4308
  %4980 = vmatprep.subr.mxu0 0.0
  %4981 = vmatpush1.msra.mxu0 %v4307
  %4982 = vmatprep.subr.mxu0 0.0
  %4983 = vmatpush1.msra.mxu0 %v4306
  %4984 = vmatprep.subr.mxu0 0.0
  %4985 = vmatpush1.msra.mxu0 %v4305
  %4986 = vmatprep.subr.mxu0 0.0
  %4987 = vmatpush1.msra.mxu0 %v4304
  %4988 = vmatprep.subr.mxu0 0.0
  %4989 = vmatpush1.msra.mxu0 %v4303
  %4990 = vmatprep.subr.mxu0 0.0
  %4991 = vmatpush1.msra.mxu0 %v4302
  %4992 = vmatprep.subr.mxu0 0.0
  %4993 = vmatpush1.msra.mxu0 %v4301
  %4994 = vmatprep.subr.mxu0 0.0
  %4995 = vmatpush1.msra.mxu0 %v4300
  %4996 = vmatprep.subr.mxu0 0.0
  %4997 = vmatpush1.msra.mxu0 %v4299
  %4998 = vmatprep.subr.mxu0 0.0
  %4999 = vmatpush1.msra.mxu0 %v4298
  %5000 = vmatprep.subr.mxu0 0.0
  %5001 = vmatpush1.msra.mxu0 %v4297
  %5002 = vmatprep.subr.mxu0 0.0
  %5003 = vmatpush1.msra.mxu0 %v4296
  %5004 = vmatprep.subr.mxu0 0.0
  %5005 = vmatpush1.msra.mxu0 %v4295
  %5006 = vmatprep.subr.mxu0 0.0
  %5007 = vmatpush1.msra.mxu0 %v4294
  %5008 = vmatprep.subr.mxu0 0.0
  %5009 = vmatpush1.msra.mxu0 %v4293
  %5010 = vmatprep.subr.mxu0 0.0
  %5011 = vmatpush2.msra.mxu0 %v4324
  %5012 = vmatprep.subr.mxu0 0.0
  %5013 = vmatpush2.msra.mxu0 %v4323
  %5014 = vmatprep.subr.mxu0 0.0
  %5015 = vmatpush2.msra.mxu0 %v4322
  %5016 = vmatprep.subr.mxu0 0.0
  %5017 = vmatpush2.msra.mxu0 %v4321
  %5018 = vmatprep.subr.mxu0 0.0
  %5019 = vmatpush2.msra.mxu0 %v4320
  %5020 = vmatprep.subr.mxu0 0.0
  %5021 = vmatpush2.msra.mxu0 %v4319
  %5022 = vmatprep.subr.mxu0 0.0
  %5023 = vmatpush2.msra.mxu0 %v4318
  %5024 = vmatprep.subr.mxu0 0.0
  %5025 = vmatpush2.msra.mxu0 %v4317
  %5026 = vmatprep.subr.mxu0 0.0
  %5027 = vmatpush2.msra.mxu0 %v4316
  %5028 = vmatprep.subr.mxu0 0.0
  %5029 = vmatpush2.msra.mxu0 %v4315
  %5030 = vmatprep.subr.mxu0 0.0
  %5031 = vmatpush2.msra.mxu0 %v4314
  %5032 = vmatprep.subr.mxu0 0.0
  %5033 = vmatpush2.msra.mxu0 %v4313
  %5034 = vmatprep.subr.mxu0 0.0
  %5035 = vmatpush2.msra.mxu0 %v4312
  %5036 = vmatprep.subr.mxu0 0.0
  %5037 = vmatpush2.msra.mxu0 %v4311
  %5038 = vmatprep.subr.mxu0 0.0
  %5039 = vmatpush2.msra.mxu0 %v4310
  %5040 = vmatprep.subr.mxu0 0.0
  %5041 = vmatpush2.msra.mxu0 %v4309
  %5042 = vmatprep.mubr.f32.mxu0 %v4036
  %5043 = vmatmul.mubr.f32.gmra.mxu0 %v4035
  %v5044 = vpop.f32.mrf.mxu0
  %v5045 = vadd.f32 %v4970, %v5044
  %v5046 = vpop.f32.mrf.mxu0
  %5047 = vmatprep.mubr.f32.mxu0 %v4060
  %5048 = vmatmul.mubr.f32.gmra.mxu0 %v4059
  %v5049 = vpop.f32.mrf.mxu0
  %v5050 = vadd.f32 %v4975, %v5049
  %v5051 = vpop.f32.mrf.mxu0
  %5052 = vdwg.mxu0
  %5053 = vmatprep.subr.mxu0 0.0
  %5054 = vmatpush1.msra.mxu0 %v4340
  %5055 = vmatprep.subr.mxu0 0.0
  %5056 = vmatpush1.msra.mxu0 %v4339
  %5057 = vmatprep.subr.mxu0 0.0
  %5058 = vmatpush1.msra.mxu0 %v4338
  %5059 = vmatprep.subr.mxu0 0.0
  %5060 = vmatpush1.msra.mxu0 %v4337
  %5061 = vmatprep.subr.mxu0 0.0
  %5062 = vmatpush1.msra.mxu0 %v4336
  %5063 = vmatprep.subr.mxu0 0.0
  %5064 = vmatpush1.msra.mxu0 %v4335
  %5065 = vmatprep.subr.mxu0 0.0
  %5066 = vmatpush1.msra.mxu0 %v4334
  %5067 = vmatprep.subr.mxu0 0.0
  %5068 = vmatpush1.msra.mxu0 %v4333
  %5069 = vmatprep.subr.mxu0 0.0
  %5070 = vmatpush1.msra.mxu0 %v4332
  %5071 = vmatprep.subr.mxu0 0.0
  %5072 = vmatpush1.msra.mxu0 %v4331
  %5073 = vmatprep.subr.mxu0 0.0
  %5074 = vmatpush1.msra.mxu0 %v4330
  %5075 = vmatprep.subr.mxu0 0.0
  %5076 = vmatpush1.msra.mxu0 %v4329
  %5077 = vmatprep.subr.mxu0 0.0
  %5078 = vmatpush1.msra.mxu0 %v4328
  %5079 = vmatprep.subr.mxu0 0.0
  %5080 = vmatpush1.msra.mxu0 %v4327
  %5081 = vmatprep.subr.mxu0 0.0
  %5082 = vmatpush1.msra.mxu0 %v4326
  %5083 = vmatprep.subr.mxu0 0.0
  %5084 = vmatpush1.msra.mxu0 %v4325
  %5085 = vmatprep.subr.mxu0 0.0
  %5086 = vmatpush2.msra.mxu0 %v4356
  %5087 = vmatprep.subr.mxu0 0.0
  %5088 = vmatpush2.msra.mxu0 %v4355
  %5089 = vmatprep.subr.mxu0 0.0
  %5090 = vmatpush2.msra.mxu0 %v4354
  %5091 = vmatprep.subr.mxu0 0.0
  %5092 = vmatpush2.msra.mxu0 %v4353
  %5093 = vmatprep.subr.mxu0 0.0
  %5094 = vmatpush2.msra.mxu0 %v4352
  %5095 = vmatprep.subr.mxu0 0.0
  %5096 = vmatpush2.msra.mxu0 %v4351
  %5097 = vmatprep.subr.mxu0 0.0
  %5098 = vmatpush2.msra.mxu0 %v4350
  %5099 = vmatprep.subr.mxu0 0.0
  %5100 = vmatpush2.msra.mxu0 %v4349
  %5101 = vmatprep.subr.mxu0 0.0
  %5102 = vmatpush2.msra.mxu0 %v4348
  %5103 = vmatprep.subr.mxu0 0.0
  %5104 = vmatpush2.msra.mxu0 %v4347
  %5105 = vmatprep.subr.mxu0 0.0
  %5106 = vmatpush2.msra.mxu0 %v4346
  %5107 = vmatprep.subr.mxu0 0.0
  %5108 = vmatpush2.msra.mxu0 %v4345
  %5109 = vmatprep.subr.mxu0 0.0
  %5110 = vmatpush2.msra.mxu0 %v4344
  %5111 = vmatprep.subr.mxu0 0.0
  %5112 = vmatpush2.msra.mxu0 %v4343
  %5113 = vmatprep.subr.mxu0 0.0
  %5114 = vmatpush2.msra.mxu0 %v4342
  %5115 = vmatprep.subr.mxu0 0.0
  %5116 = vmatpush2.msra.mxu0 %v4341
  %5117 = vmatprep.mubr.f32.mxu0 %v4038
  %5118 = vmatmul.mubr.f32.gmra.mxu0 %v4037
  %v5119 = vpop.f32.mrf.mxu0
  %v5120 = vadd.f32 %v5045, %v5119
  %v5121 = vpop.f32.mrf.mxu0
  %5122 = vmatprep.mubr.f32.mxu0 %v4062
  %5123 = vmatmul.mubr.f32.gmra.mxu0 %v4061
  %v5124 = vpop.f32.mrf.mxu0
  %v5125 = vadd.f32 %v5050, %v5124
  %v5126 = vpop.f32.mrf.mxu0
  %5127 = vdwg.mxu0
  %5128 = vmatprep.subr.mxu0 0.0
  %5129 = vmatpush1.msra.mxu0 %v4372
  %5130 = vmatprep.subr.mxu0 0.0
  %5131 = vmatpush1.msra.mxu0 %v4371
  %5132 = vmatprep.subr.mxu0 0.0
  %5133 = vmatpush1.msra.mxu0 %v4370
  %5134 = vmatprep.subr.mxu0 0.0
  %5135 = vmatpush1.msra.mxu0 %v4369
  %5136 = vmatprep.subr.mxu0 0.0
  %5137 = vmatpush1.msra.mxu0 %v4368
  %5138 = vmatprep.subr.mxu0 0.0
  %5139 = vmatpush1.msra.mxu0 %v4367
  %5140 = vmatprep.subr.mxu0 0.0
  %5141 = vmatpush1.msra.mxu0 %v4366
  %5142 = vmatprep.subr.mxu0 0.0
  %5143 = vmatpush1.msra.mxu0 %v4365
  %5144 = vmatprep.subr.mxu0 0.0
  %5145 = vmatpush1.msra.mxu0 %v4364
  %5146 = vmatprep.subr.mxu0 0.0
  %5147 = vmatpush1.msra.mxu0 %v4363
  %5148 = vmatprep.subr.mxu0 0.0
  %5149 = vmatpush1.msra.mxu0 %v4362
  %5150 = vmatprep.subr.mxu0 0.0
  %5151 = vmatpush1.msra.mxu0 %v4361
  %5152 = vmatprep.subr.mxu0 0.0
  %5153 = vmatpush1.msra.mxu0 %v4360
  %5154 = vmatprep.subr.mxu0 0.0
  %5155 = vmatpush1.msra.mxu0 %v4359
  %5156 = vmatprep.subr.mxu0 0.0
  %5157 = vmatpush1.msra.mxu0 %v4358
  %5158 = vmatprep.subr.mxu0 0.0
  %5159 = vmatpush1.msra.mxu0 %v4357
  %5160 = vmatprep.subr.mxu0 0.0
  %5161 = vmatpush2.msra.mxu0 %v4388
  %5162 = vmatprep.subr.mxu0 0.0
  %5163 = vmatpush2.msra.mxu0 %v4387
  %5164 = vmatprep.subr.mxu0 0.0
  %5165 = vmatpush2.msra.mxu0 %v4386
  %5166 = vmatprep.subr.mxu0 0.0
  %5167 = vmatpush2.msra.mxu0 %v4385
  %5168 = vmatprep.subr.mxu0 0.0
  %5169 = vmatpush2.msra.mxu0 %v4384
  %5170 = vmatprep.subr.mxu0 0.0
  %5171 = vmatpush2.msra.mxu0 %v4383
  %5172 = vmatprep.subr.mxu0 0.0
  %5173 = vmatpush2.msra.mxu0 %v4382
  %5174 = vmatprep.subr.mxu0 0.0
  %5175 = vmatpush2.msra.mxu0 %v4381
  %5176 = vmatprep.subr.mxu0 0.0
  %5177 = vmatpush2.msra.mxu0 %v4380
  %5178 = vmatprep.subr.mxu0 0.0
  %5179 = vmatpush2.msra.mxu0 %v4379
  %5180 = vmatprep.subr.mxu0 0.0
  %5181 = vmatpush2.msra.mxu0 %v4378
  %5182 = vmatprep.subr.mxu0 0.0
  %5183 = vmatpush2.msra.mxu0 %v4377
  %5184 = vmatprep.subr.mxu0 0.0
  %5185 = vmatpush2.msra.mxu0 %v4376
  %5186 = vmatprep.subr.mxu0 0.0
  %5187 = vmatpush2.msra.mxu0 %v4375
  %5188 = vmatprep.subr.mxu0 0.0
  %5189 = vmatpush2.msra.mxu0 %v4374
  %5190 = vmatprep.subr.mxu0 0.0
  %5191 = vmatpush2.msra.mxu0 %v4373
  %5192 = vmatprep.mubr.f32.mxu0 %v4040
  %5193 = vmatmul.mubr.f32.gmra.mxu0 %v4039
  %v5194 = vpop.f32.mrf.mxu0
  %v5195 = vadd.f32 %v5120, %v5194
  %v5196 = vpop.f32.mrf.mxu0
  %5197 = vmatprep.mubr.f32.mxu0 %v4064
  %5198 = vmatmul.mubr.f32.gmra.mxu0 %v4063
  %v5199 = vpop.f32.mrf.mxu0
  %v5200 = vadd.f32 %v5125, %v5199
  %v5201 = vpop.f32.mrf.mxu0
  %5202 = vdwg.mxu0
  %5203 = vmatprep.subr.mxu0 0.0
  %5204 = vmatpush1.msra.mxu0 %v4404
  %5205 = vmatprep.subr.mxu0 0.0
  %5206 = vmatpush1.msra.mxu0 %v4403
  %5207 = vmatprep.subr.mxu0 0.0
  %5208 = vmatpush1.msra.mxu0 %v4402
  %5209 = vmatprep.subr.mxu0 0.0
  %5210 = vmatpush1.msra.mxu0 %v4401
  %5211 = vmatprep.subr.mxu0 0.0
  %5212 = vmatpush1.msra.mxu0 %v4400
  %5213 = vmatprep.subr.mxu0 0.0
  %5214 = vmatpush1.msra.mxu0 %v4399
  %5215 = vmatprep.subr.mxu0 0.0
  %5216 = vmatpush1.msra.mxu0 %v4398
  %5217 = vmatprep.subr.mxu0 0.0
  %5218 = vmatpush1.msra.mxu0 %v4397
  %5219 = vmatprep.subr.mxu0 0.0
  %5220 = vmatpush1.msra.mxu0 %v4396
  %5221 = vmatprep.subr.mxu0 0.0
  %5222 = vmatpush1.msra.mxu0 %v4395
  %5223 = vmatprep.subr.mxu0 0.0
  %5224 = vmatpush1.msra.mxu0 %v4394
  %5225 = vmatprep.subr.mxu0 0.0
  %5226 = vmatpush1.msra.mxu0 %v4393
  %5227 = vmatprep.subr.mxu0 0.0
  %5228 = vmatpush1.msra.mxu0 %v4392
  %5229 = vmatprep.subr.mxu0 0.0
  %5230 = vmatpush1.msra.mxu0 %v4391
  %5231 = vmatprep.subr.mxu0 0.0
  %5232 = vmatpush1.msra.mxu0 %v4390
  %5233 = vmatprep.subr.mxu0 0.0
  %5234 = vmatpush1.msra.mxu0 %v4389
  %5235 = vmatprep.subr.mxu0 0.0
  %5236 = vmatpush2.msra.mxu0 %v4420
  %5237 = vmatprep.subr.mxu0 0.0
  %5238 = vmatpush2.msra.mxu0 %v4419
  %5239 = vmatprep.subr.mxu0 0.0
  %5240 = vmatpush2.msra.mxu0 %v4418
  %5241 = vmatprep.subr.mxu0 0.0
  %5242 = vmatpush2.msra.mxu0 %v4417
  %5243 = vmatprep.subr.mxu0 0.0
  %5244 = vmatpush2.msra.mxu0 %v4416
  %5245 = vmatprep.subr.mxu0 0.0
  %5246 = vmatpush2.msra.mxu0 %v4415
  %5247 = vmatprep.subr.mxu0 0.0
  %5248 = vmatpush2.msra.mxu0 %v4414
  %5249 = vmatprep.subr.mxu0 0.0
  %5250 = vmatpush2.msra.mxu0 %v4413
  %5251 = vmatprep.subr.mxu0 0.0
  %5252 = vmatpush2.msra.mxu0 %v4412
  %5253 = vmatprep.subr.mxu0 0.0
  %5254 = vmatpush2.msra.mxu0 %v4411
  %5255 = vmatprep.subr.mxu0 0.0
  %5256 = vmatpush2.msra.mxu0 %v4410
  %5257 = vmatprep.subr.mxu0 0.0
  %5258 = vmatpush2.msra.mxu0 %v4409
  %5259 = vmatprep.subr.mxu0 0.0
  %5260 = vmatpush2.msra.mxu0 %v4408
  %5261 = vmatprep.subr.mxu0 0.0
  %5262 = vmatpush2.msra.mxu0 %v4407
  %5263 = vmatprep.subr.mxu0 0.0
  %5264 = vmatpush2.msra.mxu0 %v4406
  %5265 = vmatprep.subr.mxu0 0.0
  %5266 = vmatpush2.msra.mxu0 %v4405
  %5267 = vmatprep.mubr.f32.mxu0 %v4042
  %5268 = vmatmul.mubr.f32.gmra.mxu0 %v4041
  %v5269 = vpop.f32.mrf.mxu0
  %v5270 = vadd.f32 %v5195, %v5269
  %v5271 = vpop.f32.mrf.mxu0
  %5272 = vmatprep.mubr.f32.mxu0 %v4066
  %5273 = vmatmul.mubr.f32.gmra.mxu0 %v4065
  %v5274 = vpop.f32.mrf.mxu0
  %v5275 = vadd.f32 %v5200, %v5274
  %v5276 = vpop.f32.mrf.mxu0
  %5277 = vdwg.mxu0
  %5278 = vmatprep.subr.mxu0 0.0
  %5279 = vmatpush1.msra.mxu0 %v4436
  %5280 = vmatprep.subr.mxu0 0.0
  %5281 = vmatpush1.msra.mxu0 %v4435
  %5282 = vmatprep.subr.mxu0 0.0
  %5283 = vmatpush1.msra.mxu0 %v4434
  %5284 = vmatprep.subr.mxu0 0.0
  %5285 = vmatpush1.msra.mxu0 %v4433
  %5286 = vmatprep.subr.mxu0 0.0
  %5287 = vmatpush1.msra.mxu0 %v4432
  %5288 = vmatprep.subr.mxu0 0.0
  %5289 = vmatpush1.msra.mxu0 %v4431
  %5290 = vmatprep.subr.mxu0 0.0
  %5291 = vmatpush1.msra.mxu0 %v4430
  %5292 = vmatprep.subr.mxu0 0.0
  %5293 = vmatpush1.msra.mxu0 %v4429
  %5294 = vmatprep.subr.mxu0 0.0
  %5295 = vmatpush1.msra.mxu0 %v4428
  %5296 = vmatprep.subr.mxu0 0.0
  %5297 = vmatpush1.msra.mxu0 %v4427
  %5298 = vmatprep.subr.mxu0 0.0
  %5299 = vmatpush1.msra.mxu0 %v4426
  %5300 = vmatprep.subr.mxu0 0.0
  %5301 = vmatpush1.msra.mxu0 %v4425
  %5302 = vmatprep.subr.mxu0 0.0
  %5303 = vmatpush1.msra.mxu0 %v4424
  %5304 = vmatprep.subr.mxu0 0.0
  %5305 = vmatpush1.msra.mxu0 %v4423
  %5306 = vmatprep.subr.mxu0 0.0
  %5307 = vmatpush1.msra.mxu0 %v4422
  %5308 = vmatprep.subr.mxu0 0.0
  %5309 = vmatpush1.msra.mxu0 %v4421
  %5310 = vmatprep.subr.mxu0 0.0
  %5311 = vmatpush2.msra.mxu0 %v4452
  %5312 = vmatprep.subr.mxu0 0.0
  %5313 = vmatpush2.msra.mxu0 %v4451
  %5314 = vmatprep.subr.mxu0 0.0
  %5315 = vmatpush2.msra.mxu0 %v4450
  %5316 = vmatprep.subr.mxu0 0.0
  %5317 = vmatpush2.msra.mxu0 %v4449
  %5318 = vmatprep.subr.mxu0 0.0
  %5319 = vmatpush2.msra.mxu0 %v4448
  %5320 = vmatprep.subr.mxu0 0.0
  %5321 = vmatpush2.msra.mxu0 %v4447
  %5322 = vmatprep.subr.mxu0 0.0
  %5323 = vmatpush2.msra.mxu0 %v4446
  %5324 = vmatprep.subr.mxu0 0.0
  %5325 = vmatpush2.msra.mxu0 %v4445
  %5326 = vmatprep.subr.mxu0 0.0
  %5327 = vmatpush2.msra.mxu0 %v4444
  %5328 = vmatprep.subr.mxu0 0.0
  %5329 = vmatpush2.msra.mxu0 %v4443
  %5330 = vmatprep.subr.mxu0 0.0
  %5331 = vmatpush2.msra.mxu0 %v4442
  %5332 = vmatprep.subr.mxu0 0.0
  %5333 = vmatpush2.msra.mxu0 %v4441
  %5334 = vmatprep.subr.mxu0 0.0
  %5335 = vmatpush2.msra.mxu0 %v4440
  %5336 = vmatprep.subr.mxu0 0.0
  %5337 = vmatpush2.msra.mxu0 %v4439
  %5338 = vmatprep.subr.mxu0 0.0
  %5339 = vmatpush2.msra.mxu0 %v4438
  %5340 = vmatprep.subr.mxu0 0.0
  %5341 = vmatpush2.msra.mxu0 %v4437
  %5342 = vmatprep.mubr.f32.mxu0 %v4044
  %5343 = vmatmul.mubr.f32.gmra.mxu0 %v4043
  %v5344 = vpop.f32.mrf.mxu0
  %v5345 = vadd.f32 %v5270, %v5344
  %v5346 = vpop.f32.mrf.mxu0
  %5347 = vmatprep.mubr.f32.mxu0 %v4068
  %5348 = vmatmul.mubr.f32.gmra.mxu0 %v4067
  %v5349 = vpop.f32.mrf.mxu0
  %v5350 = vadd.f32 %v5275, %v5349
  %v5351 = vpop.f32.mrf.mxu0
  %5352 = vdwg.mxu0
  %v5353 = vld [vmem:[%s12] sm:$0x1]
  %v5355 = vlaneseq
  %v5356 = vshrl.u32 %v5355, 7
  %v5357 = vsub.s32 0, %v5356
  %v5358 = vrot.slane %v5353, %v5357
  %v5360 = vadd.f32 %v5345, %v5358
  %vm5361 = vcmask 48128
  %5362 = vst.msk [vmem:[%s13] sm:$0xff] %vm5361, %v5360
  %5364 = vrot.lane.b32.xlu0 %v5350, 6
  %v5365 = vpop.permute.xlu0 %5364
  %v5367 = vadd.f32 %v5345, %v5365
  %v5368 = vadd.f32 %v5367, %v5358
  %5370 = vrot.lane.b32.xlu0 %v5368, 122
  %v5371 = vpop.permute.xlu0 %5370
  %5373 = vst.msk [vmem:[%s14] sm:$0xff] %vm5361, %v5371
  // Predicated region
  $region54: #{net_wisdm_tmc_forward.1} parent=0 // pred_check
    _
  $region55: #{net_wisdm_tmc_forward.1} parent=0 // pred_check_branch
    %5375 = sbr.rel (0) target = $region57
  $region56: #{net_wisdm_tmc_forward.1} parent=0 // pred_region
    _
  $region57: #{net_wisdm_tmc_forward.1} parent=0 // pred_fallthru
    _
  // Predicated region
  $region58: #{net_wisdm_tmc_forward.1} parent=0 // pred_check
    _
  $region59: #{net_wisdm_tmc_forward.1} parent=0 // pred_check_branch
    %5377 = sbr.rel (0) target = $region61
  $region60: #{net_wisdm_tmc_forward.1} parent=0 // pred_region
    _
  $region61: #{net_wisdm_tmc_forward.1} parent=0 // pred_fallthru
    _
  // Predicated region
  $region62: #{net_wisdm_tmc_forward.1} parent=0 // pred_check
    _
  $region63: #{net_wisdm_tmc_forward.1} parent=0 // pred_check_branch
    %5379 = sbr.rel (0) target = $region65
  $region64: #{net_wisdm_tmc_forward.1} parent=0 // pred_region
    _
  $region65: #{net_wisdm_tmc_forward.1} parent=0 // pred_fallthru
    _
  // Predicated region
  $region66: #{net_wisdm_tmc_forward.1} parent=0 // pred_check
    _
  $region67: #{net_wisdm_tmc_forward.1} parent=0 // pred_check_branch
    %5381 = sbr.rel (0) target = $region69
  $region68: #{net_wisdm_tmc_forward.1} parent=0 // pred_region
    _
  $region69: #{net_wisdm_tmc_forward.1} parent=0 // pred_fallthru
    _

</llo_original>
